<compile_context>
chip_gen: v6e
topology: v6e:2x2x1
jax: 0.10.0
libtpu: 0.0.40
codegen_flags: <defaults>
</compile_context>

<pallas_src>
import functools
import math

import jax
import jax.numpy as jnp
import numpy as np
from jax.experimental import pallas as pl
from jax.experimental.pallas import tpu as pltpu

LEAKY_SLOPE = 0.01
N_OFF = 2 * 27                       # DeformConvPack_d(dimension='HW'): (dh, dw) per 3x3x3 tap
VMEM_LIMIT_BYTES = 48 * 1024 * 1024  # fits v7x's 64 MiB physical VMEM; plenty on v5e/v6e


def _choose_tm(m):
    """M-tile for the fused final kernel: target 2048 rows but keep >=2 grid steps."""
    tm = 2048
    while tm > 128 and m < 2 * tm:
        tm //= 2
    return min(tm, m)


# ----------------------------------------------------------------------------
# Pallas kernels
# ----------------------------------------------------------------------------
def _conv3x3x3_kernel(x0_ref, x1_ref, x2_ref, w_ref, b_ref, o_ref, *, slope, taps_per_dot):
    """3x3x3 conv (pad=1) for one (batch, depth) output slab; taps formed in-kernel.

    x{kd}_ref: (1, 1, H+2, W+2, C)   spatially padded input depth slice d+kd
    w_ref:     (27*C, Cout)          tap-major weights (row = t*C + c, t = kd*9+kh*3+kw)
    b_ref:     (1, Cout)
    o_ref:     (1, 1, H, W, Cout)    real channel width (no 128-lane padding)

    taps_per_dot in {27, 9}: shifted windows are concatenated along channels so the MXU sees
    K = taps_per_dot*C per dot instead of 27 separate K=C dots.
    """
    _, _, hh, ww, cout = o_ref.shape
    c = x0_ref.shape[-1]

    wins = []
    for xr in (x0_ref, x1_ref, x2_ref):
        slab = xr[...].reshape(hh + 2, ww + 2, c)
        for kh in range(3):
            for kw in range(3):
                wins.append(slab[kh:kh + hh, kw:kw + ww, :])     # (H, W, C), tap order kd,kh,kw

    acc = jnp.zeros((hh * ww, cout), jnp.float32)
    kg = taps_per_dot * c
    for g in range(27 // taps_per_dot):
        patch = jnp.concatenate(wins[g * taps_per_dot:(g + 1) * taps_per_dot], axis=-1)
        patch = patch.reshape(hh * ww, kg)
        acc = acc + jnp.dot(patch, w_ref[g * kg:(g + 1) * kg, :],
                            preferred_element_type=jnp.float32)

    acc = acc + b_ref[...]
    if slope is not None:
        acc = jnp.where(acc >= 0.0, acc, slope * acc)
    o_ref[...] = acc.reshape(o_ref.shape).astype(o_ref.dtype)


def _deform_residual_kernel(p_ref, x_ref, wd_ref, bd_ref, wr_ref, br_ref, o_ref, *, slope):
    """Deformable contraction + bias + LeakyReLU, then add the 1x1x1 residual conv.

    p_ref:  (TM, 27*Cout)  bilinearly sampled patches
    x_ref:  (TM, Cin)      original input rows
    wd_ref: (27*Cout, Cout), bd_ref: (1, Cout)
    wr_ref: (Cin, Cout),     br_ref: (1, Cout)
    o_ref:  (TM, Cout) = LeakyReLU(P@Wd + bd) + (X@Wr + br)
    """
    yd = jnp.dot(p_ref[...], wd_ref[...], preferred_element_type=jnp.float32) + bd_ref[...]
    yd = jnp.where(yd >= 0.0, yd, slope * yd)
    yr = jnp.dot(x_ref[...], wr_ref[...], preferred_element_type=jnp.float32) + br_ref[...]
    o_ref[...] = (yd + yr).astype(o_ref.dtype)


# ----------------------------------------------------------------------------
# Pallas wrappers
# ----------------------------------------------------------------------------
def conv3x3x3_pallas(x, wt, bias, *, act):
    """x: (N,D,H,W,C), wt: (27*C, Cout), bias: (1, Cout) -> (N,D,H,W,Cout). Grid (N, D)."""
    n, d, h, w, c = x.shape
    cout = wt.shape[-1]
    xp = jnp.pad(x, ((0, 0), (1, 1), (1, 1), (1, 1), (0, 0)))   # halo only (no im2col in HBM)
    taps_per_dot = 27 if 27 * c <= 512 else 9                   # one K=27C dot for small C
    kern = functools.partial(_conv3x3x3_kernel,
                             slope=(LEAKY_SLOPE if act else None),
                             taps_per_dot=taps_per_dot)
    # TODO(synk): the three overlapping depth-slab in_specs could become a manual 3-deep VMEM
    # ring (pl.ANY + make_async_copy) to cut the input DMA 3x; kept declarative for robustness.
    return pl.pallas_call(
        kern,
        out_shape=jax.ShapeDtypeStruct((n, d, h, w, cout), jnp.float32),
        grid_spec=pltpu.PrefetchScalarGridSpec(
            num_scalar_prefetch=0,
            grid=(n, d),
            in_specs=[
                # depth slices d, d+1, d+2 in padded coordinates -> D halo without im2col
                pl.BlockSpec((1, 1, h + 2, w + 2, c), lambda ni, di: (ni, di, 0, 0, 0)),
                pl.BlockSpec((1, 1, h + 2, w + 2, c), lambda ni, di: (ni, di + 1, 0, 0, 0)),
                pl.BlockSpec((1, 1, h + 2, w + 2, c), lambda ni, di: (ni, di + 2, 0, 0, 0)),
                pl.BlockSpec((27 * c, cout), lambda ni, di: (0, 0)),
                pl.BlockSpec((1, cout), lambda ni, di: (0, 0)),
            ],
            out_specs=pl.BlockSpec((1, 1, h, w, cout), lambda ni, di: (ni, di, 0, 0, 0)),
        ),
        compiler_params=pltpu.CompilerParams(
            dimension_semantics=("parallel", "parallel"),
            vmem_limit_bytes=VMEM_LIMIT_BYTES),
    )(xp, xp, xp, wt, bias)


def fused_deform_residual_pallas(patches, x2d, wd, bd, wr, br):
    """patches: (M, 27*Cout), x2d: (M, Cin) -> (M, Cout); two dots, no concat / block-diag."""
    m, kdim = patches.shape
    cin = x2d.shape[1]
    cout = wd.shape[1]
    tm = _choose_tm(m)
    return pl.pallas_call(
        functools.partial(_deform_residual_kernel, slope=LEAKY_SLOPE),
        out_shape=jax.ShapeDtypeStruct((m, cout), jnp.float32),
        grid_spec=pltpu.PrefetchScalarGridSpec(
            num_scalar_prefetch=0,
            grid=(pl.cdiv(m, tm),),
            in_specs=[
                pl.BlockSpec((tm, kdim), lambda i: (i, 0)),
                pl.BlockSpec((tm, cin), lambda i: (i, 0)),
                pl.BlockSpec((kdim, cout), lambda i: (0, 0)),
                pl.BlockSpec((1, cout), lambda i: (0, 0)),
                pl.BlockSpec((cin, cout), lambda i: (0, 0)),
                pl.BlockSpec((1, cout), lambda i: (0, 0)),
            ],
            out_specs=pl.BlockSpec((tm, cout), lambda i: (i, 0)),
        ),
        compiler_params=pltpu.CompilerParams(
            dimension_semantics=("parallel",),
            vmem_limit_bytes=VMEM_LIMIT_BYTES),
    )(patches, x2d, wd, bd, wr, br)


# ----------------------------------------------------------------------------
# Deformable 'HW' bilinear sampling (plain JAX -- 4 corner gathers total)
# ----------------------------------------------------------------------------
def deform_sample_hw(y, off):
    """y: (N,D,H,W,C); off: (N,D,H,W,54) -> (N*D*H*W, 27*C) sampled patches.

    Tap t = kd*9 + kh*3 + kw; offset channels (2t, 2t+1) = (dh, dw); depth tap is integer
    d + kd - 1 (no D offset); zero padding outside the volume.
    """
    # TODO(synk): data-dependent bilinear gather stays in plain JAX -- an in-kernel Pallas
    # version needs per-row dynamic gather / manual DMA which does not lower cleanly here.
    n, d, h, w, c = y.shape
    off = off.reshape(n, d, h, w, 27, 2)
    dh_off = off[..., 0]
    dw_off = off[..., 1]

    t = jnp.arange(27)
    kd_b = (t // 9 - 1).reshape(1, 1, 1, 1, 27)
    kh_b = ((t // 3) % 3 - 1).astype(jnp.float32).reshape(1, 1, 1, 1, 27)
    kw_b = (t % 3 - 1).astype(jnp.float32).reshape(1, 1, 1, 1, 27)

    dd = jnp.arange(d, dtype=jnp.int32).reshape(1, d, 1, 1, 1)
    hh = jnp.arange(h, dtype=jnp.float32).reshape(1, 1, h, 1, 1)
    ww = jnp.arange(w, dtype=jnp.float32).reshape(1, 1, 1, w, 1)

    ds = dd + kd_b
    hs = hh + kh_b + dh_off
    ws = ww + kw_b + dw_off

    d_ok = (ds >= 0) & (ds <= d - 1)
    d_cl = jnp.clip(ds, 0, d - 1)

    h0 = jnp.floor(hs)
    w0 = jnp.floor(ws)
    lh = hs - h0
    lw = ws - w0
    h0i = h0.astype(jnp.int32)
    w0i = w0.astype(jnp.int32)
    h1i = h0i + 1
    w1i = w0i + 1

    y_flat = y.reshape(n, d * h * w, c)

    def gather(hi, wi):
        valid = d_ok & (hi >= 0) & (hi <= h - 1) & (wi >= 0) & (wi <= w - 1)
        hc = jnp.clip(hi, 0, h - 1)
        wc = jnp.clip(wi, 0, w - 1)
        flat = (d_cl * h + hc) * w + wc
        flat = jnp.broadcast_to(flat, (n, d, h, w, 27)).reshape(n, -1)
        v = jnp.take_along_axis(y_flat, flat[..., None], axis=1)
        v = v.reshape(n, d, h, w, 27, c)
        return jnp.where(valid[..., None], v, 0.0)

    v00 = gather(h0i, w0i)
    v01 = gather(h0i, w1i)
    v10 = gather(h1i, w0i)
    v11 = gather(h1i, w1i)

    patches = (((1 - lh) * (1 - lw))[..., None] * v00
               + ((1 - lh) * lw)[..., None] * v01
               + (lh * (1 - lw))[..., None] * v10
               + (lh * lw)[..., None] * v11)
    return patches.reshape(n * d * h * w, 27 * c)


# ----------------------------------------------------------------------------
# De_conv_block_3D forward (Pallas path)
# ----------------------------------------------------------------------------
@jax.jit
def de_conv_block_3d_pallas(x_ncdhw, pp):
    """x_ncdhw: (N, in_ch, D, H, W) -> (N, out_ch, D, H, W)."""
    n, cin, d, h, w = x_ncdhw.shape
    out_ch = pp["w_d"].shape[-1]
    x = jnp.transpose(x_ncdhw, (0, 2, 3, 4, 1)).astype(jnp.float32)   # NDHWC
    m = n * d * h * w

    # (1) Conv3d(in_ch, out_ch, 3, pad=1) + LeakyReLU      (real channel width, taps in-kernel)
    y1 = conv3x3x3_pallas(x, pp["w1"], pp["b1"], act=True)            # (N,D,H,W,out_ch)

    # (2a) DeformConvPack_d offset conv: K=out_ch, 54 output channels (no 128 padding)
    off = conv3x3x3_pallas(y1, pp["w_off"], pp["b_off"], act=False)   # (N,D,H,W,54)

    # (2b) bilinear HW sampling of the 27 taps
    patches = deform_sample_hw(y1, off)                               # (M, 27*out_ch)

    # (2c)+(3) deform contraction + bias + LeakyReLU, fused with the 1x1x1 residual conv
    outp = fused_deform_residual_pallas(patches, x.reshape(m, cin),
                                        pp["w_d"], pp["b_d"], pp["w_r"], pp["b_r"])

    out = outp.reshape(n, d, h, w, out_ch)
    return jnp.transpose(out, (0, 4, 1, 2, 3))                        # NCDHW


# ----------------------------------------------------------------------------
# Pure-JAX reference (im2col + highest-precision dots) -- used only for checking
# ----------------------------------------------------------------------------
def im2col_3x3x3(x):
    n, d, h, w, c = x.shape
    xp = jnp.pad(x, ((0, 0), (1, 1), (1, 1), (1, 1), (0, 0)))
    cols = [xp[:, kd:kd + d, kh:kh + h, kw:kw + w, :]
            for kd in range(3) for kh in range(3) for kw in range(3)]
    return jnp.stack(cols, axis=-2).reshape(n * d * h * w, 27 * c)


def de_conv_block_3d_ref(x_ncdhw, pr):
    n, cin, d, h, w = x_ncdhw.shape
    cout = pr["b1"].shape[0]
    x = jnp.transpose(x_ncdhw, (0, 2, 3, 4, 1)).astype(jnp.float32)
    m = n * d * h * w

    y1 = jnp.dot(im2col_3x3x3(x), pr["w1"].reshape(27 * cin, cout),
                 precision="highest") + pr["b1"]
    y1 = jnp.where(y1 >= 0, y1, LEAKY_SLOPE * y1).reshape(n, d, h, w, cout)

    off = (jnp.dot(im2col_3x3x3(y1), pr["w_off"].reshape(27 * cout, N_OFF),
                   precision="highest") + pr["b_off"]).reshape(n, d, h, w, N_OFF)
    patches = deform_sample_hw(y1, off)

    yd = jnp.dot(patches, pr["w_d"].reshape(27 * cout, cout), precision="highest") + pr["b_d"]
    yd = jnp.where(yd >= 0, yd, LEAKY_SLOPE * yd)
    yr = jnp.dot(x.reshape(m, cin), pr["w_r"], precision="highest") + pr["b_r"]
    out = (yd + yr).reshape(n, d, h, w, cout)
    return jnp.transpose(out, (0, 4, 1, 2, 3))


# ----------------------------------------------------------------------------
# Parameter init (shapes from the module's __init__) and packing for the kernels
# ----------------------------------------------------------------------------
def init_params(key, in_ch, out_ch):
    ks = jax.random.split(key, 7)

    def kaiming(k, shape, fan_in):
        return jax.random.normal(k, shape, jnp.float32) * math.sqrt(2.0 / fan_in)

    w1 = kaiming(ks[0], (27, in_ch, out_ch), 27 * in_ch)        # Conv3d(in_ch, out_ch, 3)
    b1 = jax.random.normal(ks[1], (out_ch,), jnp.float32) * 0.01
    w_d = kaiming(ks[2], (27, out_ch, out_ch), 27 * out_ch)     # DeformConvPack_d main weight
    b_d = jax.random.normal(ks[3], (out_ch,), jnp.float32) * 0.01
    # conv_offset (out_ch -> 2*27); real module zero-inits -- small random so the bilinear
    # sampling path is actually exercised.
    w_off = jax.random.normal(ks[4], (27, out_ch, N_OFF), jnp.float32) * 0.05
    b_off = jnp.zeros((N_OFF,), jnp.float32)
    w_r = kaiming(ks[5], (in_ch, out_ch), in_ch)                # residual Conv3d(in_ch, out_ch, 1)
    b_r = jax.random.normal(ks[6], (out_ch,), jnp.float32) * 0.01
    return dict(w1=w1, b1=b1, w_d=w_d, b_d=b_d, w_off=w_off, b_off=b_off, w_r=w_r, b_r=b_r)


def pack_params(pr, in_ch, out_ch):
    """Reshape weights to tap-major 2D matrices; no 128-lane padding anywhere."""
    return dict(
        w1=pr["w1"].reshape(27 * in_ch, out_ch),
        b1=pr["b1"].reshape(1, out_ch),
        w_off=pr["w_off"].reshape(27 * out_ch, N_OFF),
        b_off=pr["b_off"].reshape(1, N_OFF),
        w_d=pr["w_d"].reshape(27 * out_ch, out_ch),
        b_d=pr["b_d"].reshape(1, out_ch),
        w_r=pr["w_r"],
        b_r=pr["b_r"].reshape(1, out_ch),
    )


if __name__ == "__main__":
    key = jax.random.PRNGKey(0)
    kx, kp = jax.random.split(key)

    batch, in_ch, out_ch, frames, height, width = 2, 4, 8, 4, 8, 8
    x = jax.random.normal(kx, (batch, in_ch, frames, height, width), jnp.float32)

    pr = init_params(kp, in_ch, out_ch)
    pp = pack_params(pr, in_ch, out_ch)

    out = de_conv_block_3d_pallas(x, pp)
    out = jax.block_until_ready(out)
    assert out.shape == (batch, out_ch, frames, height, width)

    # NOTE: kernel dots use the MXU's default f32 path; reference uses precision='highest'.
    ref = de_conv_block_3d_ref(x, pr)
    np.testing.assert_allclose(np.asarray(out), np.asarray(ref), rtol=2e-2, atol=2e-2)

    print("KERNEL_OK")
</pallas_src>

<mosaic_0001>
module attributes {stable_mosaic.version = 11 : i64} {
  func.func @_conv3x3x3_kernel(%arg0: i32, %arg1: i32, %arg2: memref<1x1x10x10x4xf32, #tpu.memory_space<vmem>>, %arg3: memref<1x1x10x10x4xf32, #tpu.memory_space<vmem>>, %arg4: memref<1x1x10x10x4xf32, #tpu.memory_space<vmem>>, %arg5: memref<108x8xf32, #tpu.memory_space<vmem>>, %arg6: memref<1x8xf32, #tpu.memory_space<vmem>>, %arg7: memref<1x1x8x8x8xf32, #tpu.memory_space<vmem>>) attributes {dimension_semantics = [#tpu.dimension_semantics<parallel>, #tpu.dimension_semantics<parallel>], iteration_bounds = array<i64: 2, 4>, scalar_prefetch = 0 : i64, scratch_operands = 0 : i64, tpu.core_type = #tpu.core_type<tc>, window_params = [{transform_indices = @transform_0, window_bounds = array<i64: 1, 1, 10, 10, 4>}, {transform_indices = @transform_1, window_bounds = array<i64: 1, 1, 10, 10, 4>}, {transform_indices = @transform_2, window_bounds = array<i64: 1, 1, 10, 10, 4>}, {pipeline_mode = #tpu.pipeline_mode<synchronous>, transform_indices = @transform_3, window_bounds = array<i64: 108, 8>}, {pipeline_mode = #tpu.pipeline_mode<synchronous>, transform_indices = @transform_4, window_bounds = array<i64: 1, 8>}, {transform_indices = @transform_5, window_bounds = array<i64: 1, 1, 8, 8, 8>}]} {
    %c0 = arith.constant 0 : index
    %c0_0 = arith.constant 0 : index
    %c0_1 = arith.constant 0 : index
    %c0_2 = arith.constant 0 : index
    %c0_3 = arith.constant 0 : index
    %0 = vector.load %arg2[%c0, %c0_0, %c0_1, %c0_2, %c0_3] : memref<1x1x10x10x4xf32, #tpu.memory_space<vmem>>, vector<1x1x10x10x4xf32>
    %1 = vector.shape_cast %0 : vector<1x1x10x10x4xf32> to vector<10x10x4xf32>
    %2 = vector.extract_strided_slice %1 {offsets = [0, 0, 0], sizes = [8, 8, 4], strides = [1, 1, 1]} : vector<10x10x4xf32> to vector<8x8x4xf32>
    %3 = vector.extract_strided_slice %1 {offsets = [0, 1, 0], sizes = [8, 8, 4], strides = [1, 1, 1]} : vector<10x10x4xf32> to vector<8x8x4xf32>
    %4 = vector.extract_strided_slice %1 {offsets = [0, 2, 0], sizes = [8, 8, 4], strides = [1, 1, 1]} : vector<10x10x4xf32> to vector<8x8x4xf32>
    %5 = vector.extract_strided_slice %1 {offsets = [1, 0, 0], sizes = [8, 8, 4], strides = [1, 1, 1]} : vector<10x10x4xf32> to vector<8x8x4xf32>
    %6 = vector.extract_strided_slice %1 {offsets = [1, 1, 0], sizes = [8, 8, 4], strides = [1, 1, 1]} : vector<10x10x4xf32> to vector<8x8x4xf32>
    %7 = vector.extract_strided_slice %1 {offsets = [1, 2, 0], sizes = [8, 8, 4], strides = [1, 1, 1]} : vector<10x10x4xf32> to vector<8x8x4xf32>
    %8 = vector.extract_strided_slice %1 {offsets = [2, 0, 0], sizes = [8, 8, 4], strides = [1, 1, 1]} : vector<10x10x4xf32> to vector<8x8x4xf32>
    %9 = vector.extract_strided_slice %1 {offsets = [2, 1, 0], sizes = [8, 8, 4], strides = [1, 1, 1]} : vector<10x10x4xf32> to vector<8x8x4xf32>
    %10 = vector.extract_strided_slice %1 {offsets = [2, 2, 0], sizes = [8, 8, 4], strides = [1, 1, 1]} : vector<10x10x4xf32> to vector<8x8x4xf32>
    %c0_4 = arith.constant 0 : index
    %c0_5 = arith.constant 0 : index
    %c0_6 = arith.constant 0 : index
    %c0_7 = arith.constant 0 : index
    %c0_8 = arith.constant 0 : index
    %11 = vector.load %arg3[%c0_4, %c0_5, %c0_6, %c0_7, %c0_8] : memref<1x1x10x10x4xf32, #tpu.memory_space<vmem>>, vector<1x1x10x10x4xf32>
    %12 = vector.shape_cast %11 : vector<1x1x10x10x4xf32> to vector<10x10x4xf32>
    %13 = vector.extract_strided_slice %12 {offsets = [0, 0, 0], sizes = [8, 8, 4], strides = [1, 1, 1]} : vector<10x10x4xf32> to vector<8x8x4xf32>
    %14 = vector.extract_strided_slice %12 {offsets = [0, 1, 0], sizes = [8, 8, 4], strides = [1, 1, 1]} : vector<10x10x4xf32> to vector<8x8x4xf32>
    %15 = vector.extract_strided_slice %12 {offsets = [0, 2, 0], sizes = [8, 8, 4], strides = [1, 1, 1]} : vector<10x10x4xf32> to vector<8x8x4xf32>
    %16 = vector.extract_strided_slice %12 {offsets = [1, 0, 0], sizes = [8, 8, 4], strides = [1, 1, 1]} : vector<10x10x4xf32> to vector<8x8x4xf32>
    %17 = vector.extract_strided_slice %12 {offsets = [1, 1, 0], sizes = [8, 8, 4], strides = [1, 1, 1]} : vector<10x10x4xf32> to vector<8x8x4xf32>
    %18 = vector.extract_strided_slice %12 {offsets = [1, 2, 0], sizes = [8, 8, 4], strides = [1, 1, 1]} : vector<10x10x4xf32> to vector<8x8x4xf32>
    %19 = vector.extract_strided_slice %12 {offsets = [2, 0, 0], sizes = [8, 8, 4], strides = [1, 1, 1]} : vector<10x10x4xf32> to vector<8x8x4xf32>
    %20 = vector.extract_strided_slice %12 {offsets = [2, 1, 0], sizes = [8, 8, 4], strides = [1, 1, 1]} : vector<10x10x4xf32> to vector<8x8x4xf32>
    %21 = vector.extract_strided_slice %12 {offsets = [2, 2, 0], sizes = [8, 8, 4], strides = [1, 1, 1]} : vector<10x10x4xf32> to vector<8x8x4xf32>
    %c0_9 = arith.constant 0 : index
    %c0_10 = arith.constant 0 : index
    %c0_11 = arith.constant 0 : index
    %c0_12 = arith.constant 0 : index
    %c0_13 = arith.constant 0 : index
    %22 = vector.load %arg4[%c0_9, %c0_10, %c0_11, %c0_12, %c0_13] : memref<1x1x10x10x4xf32, #tpu.memory_space<vmem>>, vector<1x1x10x10x4xf32>
    %23 = vector.shape_cast %22 : vector<1x1x10x10x4xf32> to vector<10x10x4xf32>
    %24 = vector.extract_strided_slice %23 {offsets = [0, 0, 0], sizes = [8, 8, 4], strides = [1, 1, 1]} : vector<10x10x4xf32> to vector<8x8x4xf32>
    %25 = vector.extract_strided_slice %23 {offsets = [0, 1, 0], sizes = [8, 8, 4], strides = [1, 1, 1]} : vector<10x10x4xf32> to vector<8x8x4xf32>
    %26 = vector.extract_strided_slice %23 {offsets = [0, 2, 0], sizes = [8, 8, 4], strides = [1, 1, 1]} : vector<10x10x4xf32> to vector<8x8x4xf32>
    %27 = vector.extract_strided_slice %23 {offsets = [1, 0, 0], sizes = [8, 8, 4], strides = [1, 1, 1]} : vector<10x10x4xf32> to vector<8x8x4xf32>
    %28 = vector.extract_strided_slice %23 {offsets = [1, 1, 0], sizes = [8, 8, 4], strides = [1, 1, 1]} : vector<10x10x4xf32> to vector<8x8x4xf32>
    %29 = vector.extract_strided_slice %23 {offsets = [1, 2, 0], sizes = [8, 8, 4], strides = [1, 1, 1]} : vector<10x10x4xf32> to vector<8x8x4xf32>
    %30 = vector.extract_strided_slice %23 {offsets = [2, 0, 0], sizes = [8, 8, 4], strides = [1, 1, 1]} : vector<10x10x4xf32> to vector<8x8x4xf32>
    %31 = vector.extract_strided_slice %23 {offsets = [2, 1, 0], sizes = [8, 8, 4], strides = [1, 1, 1]} : vector<10x10x4xf32> to vector<8x8x4xf32>
    %32 = vector.extract_strided_slice %23 {offsets = [2, 2, 0], sizes = [8, 8, 4], strides = [1, 1, 1]} : vector<10x10x4xf32> to vector<8x8x4xf32>
    %cst = arith.constant 0.000000e+00 : f32
    %33 = vector.broadcast %cst : f32 to vector<64x8xf32>
    %34 = tpu.concatenate %2, %3, %4, %5, %6, %7, %8, %9, %10, %13, %14, %15, %16, %17, %18, %19 in 2 : vector<8x8x4xf32>, vector<8x8x4xf32>, vector<8x8x4xf32>, vector<8x8x4xf32>, vector<8x8x4xf32>, vector<8x8x4xf32>, vector<8x8x4xf32>, vector<8x8x4xf32>, vector<8x8x4xf32>, vector<8x8x4xf32>, vector<8x8x4xf32>, vector<8x8x4xf32>, vector<8x8x4xf32>, vector<8x8x4xf32>, vector<8x8x4xf32>, vector<8x8x4xf32> -> vector<8x8x64xf32>
    %35 = tpu.concatenate %20, %21, %24, %25, %26, %27, %28, %29, %30, %31, %32 in 2 : vector<8x8x4xf32>, vector<8x8x4xf32>, vector<8x8x4xf32>, vector<8x8x4xf32>, vector<8x8x4xf32>, vector<8x8x4xf32>, vector<8x8x4xf32>, vector<8x8x4xf32>, vector<8x8x4xf32>, vector<8x8x4xf32>, vector<8x8x4xf32> -> vector<8x8x44xf32>
    %36 = tpu.concatenate %34, %35 in 2 : vector<8x8x64xf32>, vector<8x8x44xf32> -> vector<8x8x108xf32>
    %37 = vector.shape_cast %36 : vector<8x8x108xf32> to vector<64x108xf32>
    %c0_14 = arith.constant 0 : index
    %c0_15 = arith.constant 0 : index
    %38 = vector.load %arg5[%c0_14, %c0_15] : memref<108x8xf32, #tpu.memory_space<vmem>>, vector<108x8xf32>
    %cst_16 = arith.constant dense<0.000000e+00> : vector<64x8xf32>
    %39 = tpu.matmul %37, %38, %cst_16 {dimension_numbers = #tpu.dot_dimension_numbers<[1], [0], [0], [1], [0, 0, 1, 1], [], []>} : vector<64x108xf32>, vector<108x8xf32>, vector<64x8xf32> -> vector<64x8xf32>
    %40 = arith.addf %33, %39 : vector<64x8xf32>
    %c0_17 = arith.constant 0 : index
    %c0_18 = arith.constant 0 : index
    %41 = vector.load %arg6[%c0_17, %c0_18] : memref<1x8xf32, #tpu.memory_space<vmem>>, vector<1x8xf32>
    %42 = vector.broadcast %41 : vector<1x8xf32> to vector<64x8xf32>
    %43 = arith.addf %40, %42 : vector<64x8xf32>
    %cst_19 = arith.constant 0.000000e+00 : f32
    %44 = vector.broadcast %cst_19 : f32 to vector<64x8xf32>
    %45 = arith.cmpf oge, %43, %44 : vector<64x8xf32>
    %cst_20 = arith.constant 0.00999999977 : f32
    %46 = vector.broadcast %cst_20 : f32 to vector<64x8xf32>
    %47 = arith.mulf %46, %43 : vector<64x8xf32>
    %48 = arith.select %45, %43, %47 : vector<64x8xi1>, vector<64x8xf32>
    %49 = vector.shape_cast %48 : vector<64x8xf32> to vector<1x1x8x8x8xf32>
    %c0_21 = arith.constant 0 : index
    %c0_22 = arith.constant 0 : index
    %c0_23 = arith.constant 0 : index
    %c0_24 = arith.constant 0 : index
    %c0_25 = arith.constant 0 : index
    %50 = vector.load %arg7[%c0_21, %c0_22, %c0_23, %c0_24, %c0_25] : memref<1x1x8x8x8xf32, #tpu.memory_space<vmem>>, vector<1x1x8x8x8xf32>
    tpu.vector_store %arg7[%c0_21, %c0_22, %c0_23, %c0_24, %c0_25], %49 {strides = array<i32>} : memref<1x1x8x8x8xf32, #tpu.memory_space<vmem>>, vector<1x1x8x8x8xf32>,
    return
  }
  func.func @transform_0(%arg0: i32, %arg1: i32) -> (i32, i32, i32, i32, i32) {
    %c0_i32 = arith.constant 0 : i32
    %c0_i32_0 = arith.constant 0 : i32
    %c0_i32_1 = arith.constant 0 : i32
    %c0_i32_2 = arith.constant 0 : i32
    return %arg0, %arg1, %c0_i32, %c0_i32_0, %c0_i32_1 : i32, i32, i32, i32, i32
  }
  func.func @transform_1(%arg0: i32, %arg1: i32) -> (i32, i32, i32, i32, i32) {
    %c1_i32 = arith.constant 1 : i32
    %0 = arith.addi %arg1, %c1_i32 : i32
    %c0_i32 = arith.constant 0 : i32
    %c0_i32_0 = arith.constant 0 : i32
    %c0_i32_1 = arith.constant 0 : i32
    %c0_i32_2 = arith.constant 0 : i32
    return %arg0, %0, %c0_i32, %c0_i32_0, %c0_i32_1 : i32, i32, i32, i32, i32
  }
  func.func @transform_2(%arg0: i32, %arg1: i32) -> (i32, i32, i32, i32, i32) {
    %c2_i32 = arith.constant 2 : i32
    %0 = arith.addi %arg1, %c2_i32 : i32
    %c0_i32 = arith.constant 0 : i32
    %c0_i32_0 = arith.constant 0 : i32
    %c0_i32_1 = arith.constant 0 : i32
    %c0_i32_2 = arith.constant 0 : i32
    return %arg0, %0, %c0_i32, %c0_i32_0, %c0_i32_1 : i32, i32, i32, i32, i32
  }
  func.func @transform_3(%arg0: i32, %arg1: i32) -> (i32, i32) {
    %c0_i32 = arith.constant 0 : i32
    %c0_i32_0 = arith.constant 0 : i32
    %c0_i32_1 = arith.constant 0 : i32
    return %c0_i32, %c0_i32_0 : i32, i32
  }
  func.func @transform_4(%arg0: i32, %arg1: i32) -> (i32, i32) {
    %c0_i32 = arith.constant 0 : i32
    %c0_i32_0 = arith.constant 0 : i32
    %c0_i32_1 = arith.constant 0 : i32
    return %c0_i32, %c0_i32_0 : i32, i32
  }
  func.func @transform_5(%arg0: i32, %arg1: i32) -> (i32, i32, i32, i32, i32) {
    %c0_i32 = arith.constant 0 : i32
    %c0_i32_0 = arith.constant 0 : i32
    %c0_i32_1 = arith.constant 0 : i32
    %c0_i32_2 = arith.constant 0 : i32
    return %arg0, %arg1, %c0_i32, %c0_i32_0, %c0_i32_1 : i32, i32, i32, i32, i32
  }
}

module attributes {stable_mosaic.version = 11 : i64} {
  func.func @_conv3x3x3_kernel(%arg0: i32, %arg1: i32, %arg2: memref<1x1x10x10x8xf32, #tpu.memory_space<vmem>>, %arg3: memref<1x1x10x10x8xf32, #tpu.memory_space<vmem>>, %arg4: memref<1x1x10x10x8xf32, #tpu.memory_space<vmem>>, %arg5: memref<216x54xf32, #tpu.memory_space<vmem>>, %arg6: memref<1x54xf32, #tpu.memory_space<vmem>>, %arg7: memref<1x1x8x8x54xf32, #tpu.memory_space<vmem>>) attributes {dimension_semantics = [#tpu.dimension_semantics<parallel>, #tpu.dimension_semantics<parallel>], iteration_bounds = array<i64: 2, 4>, scalar_prefetch = 0 : i64, scratch_operands = 0 : i64, tpu.core_type = #tpu.core_type<tc>, window_params = [{transform_indices = @transform_0, window_bounds = array<i64: 1, 1, 10, 10, 8>}, {transform_indices = @transform_1, window_bounds = array<i64: 1, 1, 10, 10, 8>}, {transform_indices = @transform_2, window_bounds = array<i64: 1, 1, 10, 10, 8>}, {pipeline_mode = #tpu.pipeline_mode<synchronous>, transform_indices = @transform_3, window_bounds = array<i64: 216, 54>}, {pipeline_mode = #tpu.pipeline_mode<synchronous>, transform_indices = @transform_4, window_bounds = array<i64: 1, 54>}, {transform_indices = @transform_5, window_bounds = array<i64: 1, 1, 8, 8, 54>}]} {
    %c0 = arith.constant 0 : index
    %c0_0 = arith.constant 0 : index
    %c0_1 = arith.constant 0 : index
    %c0_2 = arith.constant 0 : index
    %c0_3 = arith.constant 0 : index
    %0 = vector.load %arg2[%c0, %c0_0, %c0_1, %c0_2, %c0_3] : memref<1x1x10x10x8xf32, #tpu.memory_space<vmem>>, vector<1x1x10x10x8xf32>
    %1 = vector.shape_cast %0 : vector<1x1x10x10x8xf32> to vector<10x10x8xf32>
    %2 = vector.extract_strided_slice %1 {offsets = [0, 0, 0], sizes = [8, 8, 8], strides = [1, 1, 1]} : vector<10x10x8xf32> to vector<8x8x8xf32>
    %3 = vector.extract_strided_slice %1 {offsets = [0, 1, 0], sizes = [8, 8, 8], strides = [1, 1, 1]} : vector<10x10x8xf32> to vector<8x8x8xf32>
    %4 = vector.extract_strided_slice %1 {offsets = [0, 2, 0], sizes = [8, 8, 8], strides = [1, 1, 1]} : vector<10x10x8xf32> to vector<8x8x8xf32>
    %5 = vector.extract_strided_slice %1 {offsets = [1, 0, 0], sizes = [8, 8, 8], strides = [1, 1, 1]} : vector<10x10x8xf32> to vector<8x8x8xf32>
    %6 = vector.extract_strided_slice %1 {offsets = [1, 1, 0], sizes = [8, 8, 8], strides = [1, 1, 1]} : vector<10x10x8xf32> to vector<8x8x8xf32>
    %7 = vector.extract_strided_slice %1 {offsets = [1, 2, 0], sizes = [8, 8, 8], strides = [1, 1, 1]} : vector<10x10x8xf32> to vector<8x8x8xf32>
    %8 = vector.extract_strided_slice %1 {offsets = [2, 0, 0], sizes = [8, 8, 8], strides = [1, 1, 1]} : vector<10x10x8xf32> to vector<8x8x8xf32>
    %9 = vector.extract_strided_slice %1 {offsets = [2, 1, 0], sizes = [8, 8, 8], strides = [1, 1, 1]} : vector<10x10x8xf32> to vector<8x8x8xf32>
    %10 = vector.extract_strided_slice %1 {offsets = [2, 2, 0], sizes = [8, 8, 8], strides = [1, 1, 1]} : vector<10x10x8xf32> to vector<8x8x8xf32>
    %c0_4 = arith.constant 0 : index
    %c0_5 = arith.constant 0 : index
    %c0_6 = arith.constant 0 : index
    %c0_7 = arith.constant 0 : index
    %c0_8 = arith.constant 0 : index
    %11 = vector.load %arg3[%c0_4, %c0_5, %c0_6, %c0_7, %c0_8] : memref<1x1x10x10x8xf32, #tpu.memory_space<vmem>>, vector<1x1x10x10x8xf32>
    %12 = vector.shape_cast %11 : vector<1x1x10x10x8xf32> to vector<10x10x8xf32>
    %13 = vector.extract_strided_slice %12 {offsets = [0, 0, 0], sizes = [8, 8, 8], strides = [1, 1, 1]} : vector<10x10x8xf32> to vector<8x8x8xf32>
    %14 = vector.extract_strided_slice %12 {offsets = [0, 1, 0], sizes = [8, 8, 8], strides = [1, 1, 1]} : vector<10x10x8xf32> to vector<8x8x8xf32>
    %15 = vector.extract_strided_slice %12 {offsets = [0, 2, 0], sizes = [8, 8, 8], strides = [1, 1, 1]} : vector<10x10x8xf32> to vector<8x8x8xf32>
    %16 = vector.extract_strided_slice %12 {offsets = [1, 0, 0], sizes = [8, 8, 8], strides = [1, 1, 1]} : vector<10x10x8xf32> to vector<8x8x8xf32>
    %17 = vector.extract_strided_slice %12 {offsets = [1, 1, 0], sizes = [8, 8, 8], strides = [1, 1, 1]} : vector<10x10x8xf32> to vector<8x8x8xf32>
    %18 = vector.extract_strided_slice %12 {offsets = [1, 2, 0], sizes = [8, 8, 8], strides = [1, 1, 1]} : vector<10x10x8xf32> to vector<8x8x8xf32>
    %19 = vector.extract_strided_slice %12 {offsets = [2, 0, 0], sizes = [8, 8, 8], strides = [1, 1, 1]} : vector<10x10x8xf32> to vector<8x8x8xf32>
    %20 = vector.extract_strided_slice %12 {offsets = [2, 1, 0], sizes = [8, 8, 8], strides = [1, 1, 1]} : vector<10x10x8xf32> to vector<8x8x8xf32>
    %21 = vector.extract_strided_slice %12 {offsets = [2, 2, 0], sizes = [8, 8, 8], strides = [1, 1, 1]} : vector<10x10x8xf32> to vector<8x8x8xf32>
    %c0_9 = arith.constant 0 : index
    %c0_10 = arith.constant 0 : index
    %c0_11 = arith.constant 0 : index
    %c0_12 = arith.constant 0 : index
    %c0_13 = arith.constant 0 : index
    %22 = vector.load %arg4[%c0_9, %c0_10, %c0_11, %c0_12, %c0_13] : memref<1x1x10x10x8xf32, #tpu.memory_space<vmem>>, vector<1x1x10x10x8xf32>
    %23 = vector.shape_cast %22 : vector<1x1x10x10x8xf32> to vector<10x10x8xf32>
    %24 = vector.extract_strided_slice %23 {offsets = [0, 0, 0], sizes = [8, 8, 8], strides = [1, 1, 1]} : vector<10x10x8xf32> to vector<8x8x8xf32>
    %25 = vector.extract_strided_slice %23 {offsets = [0, 1, 0], sizes = [8, 8, 8], strides = [1, 1, 1]} : vector<10x10x8xf32> to vector<8x8x8xf32>
    %26 = vector.extract_strided_slice %23 {offsets = [0, 2, 0], sizes = [8, 8, 8], strides = [1, 1, 1]} : vector<10x10x8xf32> to vector<8x8x8xf32>
    %27 = vector.extract_strided_slice %23 {offsets = [1, 0, 0], sizes = [8, 8, 8], strides = [1, 1, 1]} : vector<10x10x8xf32> to vector<8x8x8xf32>
    %28 = vector.extract_strided_slice %23 {offsets = [1, 1, 0], sizes = [8, 8, 8], strides = [1, 1, 1]} : vector<10x10x8xf32> to vector<8x8x8xf32>
    %29 = vector.extract_strided_slice %23 {offsets = [1, 2, 0], sizes = [8, 8, 8], strides = [1, 1, 1]} : vector<10x10x8xf32> to vector<8x8x8xf32>
    %30 = vector.extract_strided_slice %23 {offsets = [2, 0, 0], sizes = [8, 8, 8], strides = [1, 1, 1]} : vector<10x10x8xf32> to vector<8x8x8xf32>
    %31 = vector.extract_strided_slice %23 {offsets = [2, 1, 0], sizes = [8, 8, 8], strides = [1, 1, 1]} : vector<10x10x8xf32> to vector<8x8x8xf32>
    %32 = vector.extract_strided_slice %23 {offsets = [2, 2, 0], sizes = [8, 8, 8], strides = [1, 1, 1]} : vector<10x10x8xf32> to vector<8x8x8xf32>
    %cst = arith.constant 0.000000e+00 : f32
    %33 = vector.broadcast %cst : f32 to vector<64x54xf32>
    %34 = tpu.concatenate %2, %3, %4, %5, %6, %7, %8, %9, %10, %13, %14, %15, %16, %17, %18, %19 in 2 : vector<8x8x8xf32>, vector<8x8x8xf32>, vector<8x8x8xf32>, vector<8x8x8xf32>, vector<8x8x8xf32>, vector<8x8x8xf32>, vector<8x8x8xf32>, vector<8x8x8xf32>, vector<8x8x8xf32>, vector<8x8x8xf32>, vector<8x8x8xf32>, vector<8x8x8xf32>, vector<8x8x8xf32>, vector<8x8x8xf32>, vector<8x8x8xf32>, vector<8x8x8xf32> -> vector<8x8x128xf32>
    %35 = tpu.concatenate %20, %21, %24, %25, %26, %27, %28, %29, %30, %31, %32 in 2 : vector<8x8x8xf32>, vector<8x8x8xf32>, vector<8x8x8xf32>, vector<8x8x8xf32>, vector<8x8x8xf32>, vector<8x8x8xf32>, vector<8x8x8xf32>, vector<8x8x8xf32>, vector<8x8x8xf32>, vector<8x8x8xf32>, vector<8x8x8xf32> -> vector<8x8x88xf32>
    %36 = tpu.concatenate %34, %35 in 2 : vector<8x8x128xf32>, vector<8x8x88xf32> -> vector<8x8x216xf32>
    %37 = vector.shape_cast %36 : vector<8x8x216xf32> to vector<64x216xf32>
    %c0_14 = arith.constant 0 : index
    %c0_15 = arith.constant 0 : index
    %38 = vector.load %arg5[%c0_14, %c0_15] : memref<216x54xf32, #tpu.memory_space<vmem>>, vector<216x54xf32>
    %cst_16 = arith.constant dense<0.000000e+00> : vector<64x54xf32>
    %39 = tpu.matmul %37, %38, %cst_16 {dimension_numbers = #tpu.dot_dimension_numbers<[1], [0], [0], [1], [0, 0, 1, 1], [], []>} : vector<64x216xf32>, vector<216x54xf32>, vector<64x54xf32> -> vector<64x54xf32>
    %40 = arith.addf %33, %39 : vector<64x54xf32>
    %c0_17 = arith.constant 0 : index
    %c0_18 = arith.constant 0 : index
    %41 = vector.load %arg6[%c0_17, %c0_18] : memref<1x54xf32, #tpu.memory_space<vmem>>, vector<1x54xf32>
    %42 = vector.broadcast %41 : vector<1x54xf32> to vector<64x54xf32>
    %43 = arith.addf %40, %42 : vector<64x54xf32>
    %44 = vector.shape_cast %43 : vector<64x54xf32> to vector<1x1x8x8x54xf32>
    %c0_19 = arith.constant 0 : index
    %c0_20 = arith.constant 0 : index
    %c0_21 = arith.constant 0 : index
    %c0_22 = arith.constant 0 : index
    %c0_23 = arith.constant 0 : index
    %45 = vector.load %arg7[%c0_19, %c0_20, %c0_21, %c0_22, %c0_23] : memref<1x1x8x8x54xf32, #tpu.memory_space<vmem>>, vector<1x1x8x8x54xf32>
    tpu.vector_store %arg7[%c0_19, %c0_20, %c0_21, %c0_22, %c0_23], %44 {strides = array<i32>} : memref<1x1x8x8x54xf32, #tpu.memory_space<vmem>>, vector<1x1x8x8x54xf32>,
    return
  }
  func.func @transform_0(%arg0: i32, %arg1: i32) -> (i32, i32, i32, i32, i32) {
    %c0_i32 = arith.constant 0 : i32
    %c0_i32_0 = arith.constant 0 : i32
    %c0_i32_1 = arith.constant 0 : i32
    %c0_i32_2 = arith.constant 0 : i32
    return %arg0, %arg1, %c0_i32, %c0_i32_0, %c0_i32_1 : i32, i32, i32, i32, i32
  }
  func.func @transform_1(%arg0: i32, %arg1: i32) -> (i32, i32, i32, i32, i32) {
    %c1_i32 = arith.constant 1 : i32
    %0 = arith.addi %arg1, %c1_i32 : i32
    %c0_i32 = arith.constant 0 : i32
    %c0_i32_0 = arith.constant 0 : i32
    %c0_i32_1 = arith.constant 0 : i32
    %c0_i32_2 = arith.constant 0 : i32
    return %arg0, %0, %c0_i32, %c0_i32_0, %c0_i32_1 : i32, i32, i32, i32, i32
  }
  func.func @transform_2(%arg0: i32, %arg1: i32) -> (i32, i32, i32, i32, i32) {
    %c2_i32 = arith.constant 2 : i32
    %0 = arith.addi %arg1, %c2_i32 : i32
    %c0_i32 = arith.constant 0 : i32
    %c0_i32_0 = arith.constant 0 : i32
    %c0_i32_1 = arith.constant 0 : i32
    %c0_i32_2 = arith.constant 0 : i32
    return %arg0, %0, %c0_i32, %c0_i32_0, %c0_i32_1 : i32, i32, i32, i32, i32
  }
  func.func @transform_3(%arg0: i32, %arg1: i32) -> (i32, i32) {
    %c0_i32 = arith.constant 0 : i32
    %c0_i32_0 = arith.constant 0 : i32
    %c0_i32_1 = arith.constant 0 : i32
    return %c0_i32, %c0_i32_0 : i32, i32
  }
  func.func @transform_4(%arg0: i32, %arg1: i32) -> (i32, i32) {
    %c0_i32 = arith.constant 0 : i32
    %c0_i32_0 = arith.constant 0 : i32
    %c0_i32_1 = arith.constant 0 : i32
    return %c0_i32, %c0_i32_0 : i32, i32
  }
  func.func @transform_5(%arg0: i32, %arg1: i32) -> (i32, i32, i32, i32, i32) {
    %c0_i32 = arith.constant 0 : i32
    %c0_i32_0 = arith.constant 0 : i32
    %c0_i32_1 = arith.constant 0 : i32
    %c0_i32_2 = arith.constant 0 : i32
    return %arg0, %arg1, %c0_i32, %c0_i32_0, %c0_i32_1 : i32, i32, i32, i32, i32
  }
}

module attributes {stable_mosaic.version = 11 : i64} {
  func.func @_deform_residual_kernel(%arg0: i32, %arg1: memref<256x216xf32, #tpu.memory_space<vmem>>, %arg2: memref<256x4xf32, #tpu.memory_space<vmem>>, %arg3: memref<216x8xf32, #tpu.memory_space<vmem>>, %arg4: memref<1x8xf32, #tpu.memory_space<vmem>>, %arg5: memref<4x8xf32, #tpu.memory_space<vmem>>, %arg6: memref<1x8xf32, #tpu.memory_space<vmem>>, %arg7: memref<256x8xf32, #tpu.memory_space<vmem>>) attributes {dimension_semantics = [#tpu.dimension_semantics<parallel>], iteration_bounds = array<i64: 2>, scalar_prefetch = 0 : i64, scratch_operands = 0 : i64, tpu.core_type = #tpu.core_type<tc>, window_params = [{transform_indices = @transform_0, window_bounds = array<i64: 256, 216>}, {transform_indices = @transform_1, window_bounds = array<i64: 256, 4>}, {pipeline_mode = #tpu.pipeline_mode<synchronous>, transform_indices = @transform_2, window_bounds = array<i64: 216, 8>}, {pipeline_mode = #tpu.pipeline_mode<synchronous>, transform_indices = @transform_3, window_bounds = array<i64: 1, 8>}, {pipeline_mode = #tpu.pipeline_mode<synchronous>, transform_indices = @transform_4, window_bounds = array<i64: 4, 8>}, {pipeline_mode = #tpu.pipeline_mode<synchronous>, transform_indices = @transform_5, window_bounds = array<i64: 1, 8>}, {transform_indices = @transform_6, window_bounds = array<i64: 256, 8>}]} {
    %c0 = arith.constant 0 : index
    %c0_0 = arith.constant 0 : index
    %0 = vector.load %arg1[%c0, %c0_0] : memref<256x216xf32, #tpu.memory_space<vmem>>, vector<256x216xf32>
    %c0_1 = arith.constant 0 : index
    %c0_2 = arith.constant 0 : index
    %1 = vector.load %arg3[%c0_1, %c0_2] : memref<216x8xf32, #tpu.memory_space<vmem>>, vector<216x8xf32>
    %cst = arith.constant dense<0.000000e+00> : vector<256x8xf32>
    %2 = tpu.matmul %0, %1, %cst {dimension_numbers = #tpu.dot_dimension_numbers<[1], [0], [0], [1], [0, 0, 1, 1], [], []>} : vector<256x216xf32>, vector<216x8xf32>, vector<256x8xf32> -> vector<256x8xf32>
    %c0_3 = arith.constant 0 : index
    %c0_4 = arith.constant 0 : index
    %3 = vector.load %arg4[%c0_3, %c0_4] : memref<1x8xf32, #tpu.memory_space<vmem>>, vector<1x8xf32>
    %4 = vector.broadcast %3 : vector<1x8xf32> to vector<256x8xf32>
    %5 = arith.addf %2, %4 : vector<256x8xf32>
    %cst_5 = arith.constant 0.000000e+00 : f32
    %6 = vector.broadcast %cst_5 : f32 to vector<256x8xf32>
    %7 = arith.cmpf oge, %5, %6 : vector<256x8xf32>
    %cst_6 = arith.constant 0.00999999977 : f32
    %8 = vector.broadcast %cst_6 : f32 to vector<256x8xf32>
    %9 = arith.mulf %8, %5 : vector<256x8xf32>
    %10 = arith.select %7, %5, %9 : vector<256x8xi1>, vector<256x8xf32>
    %c0_7 = arith.constant 0 : index
    %c0_8 = arith.constant 0 : index
    %11 = vector.load %arg2[%c0_7, %c0_8] : memref<256x4xf32, #tpu.memory_space<vmem>>, vector<256x4xf32>
    %c0_9 = arith.constant 0 : index
    %c0_10 = arith.constant 0 : index
    %12 = vector.load %arg5[%c0_9, %c0_10] : memref<4x8xf32, #tpu.memory_space<vmem>>, vector<4x8xf32>
    %cst_11 = arith.constant dense<0.000000e+00> : vector<256x8xf32>
    %13 = tpu.matmul %11, %12, %cst_11 {dimension_numbers = #tpu.dot_dimension_numbers<[1], [0], [0], [1], [0, 0, 1, 1], [], []>} : vector<256x4xf32>, vector<4x8xf32>, vector<256x8xf32> -> vector<256x8xf32>
    %c0_12 = arith.constant 0 : index
    %c0_13 = arith.constant 0 : index
    %14 = vector.load %arg6[%c0_12, %c0_13] : memref<1x8xf32, #tpu.memory_space<vmem>>, vector<1x8xf32>
    %15 = vector.broadcast %14 : vector<1x8xf32> to vector<256x8xf32>
    %16 = arith.addf %13, %15 : vector<256x8xf32>
    %17 = arith.addf %10, %16 : vector<256x8xf32>
    %c0_14 = arith.constant 0 : index
    %c0_15 = arith.constant 0 : index
    %18 = vector.load %arg7[%c0_14, %c0_15] : memref<256x8xf32, #tpu.memory_space<vmem>>, vector<256x8xf32>
    tpu.vector_store %arg7[%c0_14, %c0_15], %17 {strides = array<i32>} : memref<256x8xf32, #tpu.memory_space<vmem>>, vector<256x8xf32>,
    return
  }
  func.func @transform_0(%arg0: i32) -> (i32, i32) {
    %c0_i32 = arith.constant 0 : i32
    %c0_i32_0 = arith.constant 0 : i32
    return %arg0, %c0_i32 : i32, i32
  }
  func.func @transform_1(%arg0: i32) -> (i32, i32) {
    %c0_i32 = arith.constant 0 : i32
    %c0_i32_0 = arith.constant 0 : i32
    return %arg0, %c0_i32 : i32, i32
  }
  func.func @transform_2(%arg0: i32) -> (i32, i32) {
    %c0_i32 = arith.constant 0 : i32
    %c0_i32_0 = arith.constant 0 : i32
    %c0_i32_1 = arith.constant 0 : i32
    return %c0_i32, %c0_i32_0 : i32, i32
  }
  func.func @transform_3(%arg0: i32) -> (i32, i32) {
    %c0_i32 = arith.constant 0 : i32
    %c0_i32_0 = arith.constant 0 : i32
    %c0_i32_1 = arith.constant 0 : i32
    return %c0_i32, %c0_i32_0 : i32, i32
  }
  func.func @transform_4(%arg0: i32) -> (i32, i32) {
    %c0_i32 = arith.constant 0 : i32
    %c0_i32_0 = arith.constant 0 : i32
    %c0_i32_1 = arith.constant 0 : i32
    return %c0_i32, %c0_i32_0 : i32, i32
  }
  func.func @transform_5(%arg0: i32) -> (i32, i32) {
    %c0_i32 = arith.constant 0 : i32
    %c0_i32_0 = arith.constant 0 : i32
    %c0_i32_1 = arith.constant 0 : i32
    return %c0_i32, %c0_i32_0 : i32, i32
  }
  func.func @transform_6(%arg0: i32) -> (i32, i32) {
    %c0_i32 = arith.constant 0 : i32
    %c0_i32_0 = arith.constant 0 : i32
    return %arg0, %c0_i32 : i32, i32
  }
}

</mosaic_0001>

<llo_original>
// kernel: de_conv_block_3d_pallas.3
$region0: #{de_conv_block_3d_pallas.3}
  #allocation0 [shape = 'u32[]', space=smem, size = 0x4, offset = 0x4, fixed_abs, tag = 'smem constant byte address 0x4 - core index']
  #allocation1 [shape = 'u32[144,128]{1,0:T(1,128)}', space=vmem, size = 0x12000, scoped, tag = 'internal scratch']
  %s0 = inlined_call_operand.vmem [shape: f32[2,6,10,10,4], index: 0, kind: input, shape index: {}, may-alias: {0,1,2}]
  %s1 = inlined_call_operand.vmem [shape: f32[2,6,10,10,4], index: 1, kind: input, shape index: {}, may-alias: {0,1,2}]
  %s2 = inlined_call_operand.vmem [shape: f32[2,6,10,10,4], index: 2, kind: input, shape index: {}, may-alias: {0,1,2}]
  %s3 = inlined_call_operand.vmem [shape: f32[108,8], index: 3, kind: input, shape index: {}]
  %s4 = inlined_call_operand.hbm [shape: f32[1,8], index: 4, kind: input, shape index: {}]
  %s5 = inlined_call_operand.vmem [shape: f32[2,4,8,8,8], index: 5, kind: output, shape index: {}]
  %s6 = sld [smem:[#allocation0]]
  $region57: #{de_conv_block_3d_pallas.3} parent=0
    _
  %s8 = ssub.s32 1, %s6
  %s9 = scalar_select 0, %s8, %s6
  $region1: #{de_conv_block_3d_pallas.3} parent=0
    #allocation2 [shape = 'u8[512]{0}', space=vmem, size = 0x400, scoped, tag = 'input window, operand 4, single buffered']
    #allocation3 [shape = 's32[2]{0}', space=sflag, size = 0x8, scoped, tag = 'scoped memory for de_conv_block_3d_pallas.3']
    %10 = vsyncpa [#allocation3], 0
    loop: start=0, step=1, limit=10
    $region2: #{de_conv_block_3d_pallas.3} parent=1 // loop_pre_header
      _
    $region3: #{de_conv_block_3d_pallas.3} parent=1 // loop_header
      %s12 = sphi 0, %s16
      %p13 = scmp.ge.s32.totalorder %s12, 10
      %s19 = sphi 0, %s31
      %s20 = sphi 0, %s27
      %s21 = sphi 0, %s19
      %s22 = sphi 0, %s20
      %s23 = sphi 0, %s21
      %s24 = sphi 0, %s22
      %s36 = sphi 0, %s38
      %s39 = sphi 0, %s36
      %s40 = sphi 0, %s39
      %s56 = sphi 0, %s40
      %s66 = sphi 0, %s68
      %s69 = sphi 0, %s66
      %s70 = sphi 0, %s69
      %s86 = sphi 0, %s70
      %s96 = sphi 0, %s98
      %s99 = sphi 0, %s96
      %s100 = sphi 0, %s99
      %s116 = sphi 0, %s100
      %s120 = sphi 0, %s120
      %s122 = sphi 0, %s120
      %s123 = sphi 0, %s122
      %s137 = sphi 0, %s123
      %s141 = sphi 0, %s141
      %s143 = sphi 0, %s141
      %s144 = sphi 0, %s143
      %s158 = sphi 0, %s144
      %s166 = sphi 0, %s168
      %s169 = sphi 0, %s166
      %s170 = sphi 0, %s169
      %s186 = sphi 0, %s170
    $region4: #{de_conv_block_3d_pallas.3} parent=1 // loop_header_branch
      %15 = sbr.rel (%p13) target = $region8
    $region5: #{de_conv_block_3d_pallas.3} parent=1 // loop_body
      %s17 = ssub.s32 %s12, 1
      %s18 = ssub.s32 %s12, 2
      %s25 = sadd.s32 1, %s20
      %p26 = scmp.ge.s32.totalorder %s25, 4
      %s27 = scalar_select %p26, 0, %s25
      %s28 = sadd.s32 1, %s19
      %s29 = scalar_select %p26, %s28, %s19
      %p30 = scmp.ge.s32.totalorder %s29, 2
      %s31 = scalar_select %p30, 0, %s29
      %s32 = ssub.s32 %s19, %s31
      %s33 = ssub.s32 %s20, %s27
      %s34 = sor.u32 %s32, %s33
      %p35 = scmp.eq.s32.totalorder %s34, 0
      %s37 = sadd.s32 %s36, 1
      %s38 = scalar_select %p35, %s36, %s37
      %p41 = pneg %p35
      %p42 = scmp.eq.s32.totalorder %s12, 7
      %p43 = por %p41, %p42
      %p44 = scmp.ne.s32.totalorder %s36, %s39
      %p45 = scmp.eq.s32.totalorder %s12, 0
      %p46 = por %p44, %p45
      %p47 = scmp.ne.s32.totalorder %s36, %s39
      %p48 = scmp.eq.s32.totalorder %s17, 7
      %p49 = por %p47, %p48
      %p50 = scmp.ne.s32.totalorder %s39, %s40
      %p51 = scmp.eq.s32.totalorder %s17, 0
      %p52 = por %p50, %p51
      %p53 = scmp.ne.s32.totalorder %s39, %s40
      %p54 = scmp.eq.s32.totalorder %s18, 7
      %p55 = por %p53, %p54
      %p57 = scmp.ne.s32.totalorder %s40, %s56
      %p58 = scmp.eq.s32.totalorder %s18, 0
      %p59 = por %p57, %p58
      %s60 = sadd.s32 %s20, 1
      %s61 = sadd.s32 %s27, 1
      %s62 = ssub.s32 %s19, %s31
      %s63 = ssub.s32 %s60, %s61
      %s64 = sor.u32 %s62, %s63
      %p65 = scmp.eq.s32.totalorder %s64, 0
      %s67 = sadd.s32 %s66, 1
      %s68 = scalar_select %p65, %s66, %s67
      %p71 = pneg %p65
      %p72 = scmp.eq.s32.totalorder %s12, 7
      %p73 = por %p71, %p72
      %p74 = scmp.ne.s32.totalorder %s66, %s69
      %p75 = scmp.eq.s32.totalorder %s12, 0
      %p76 = por %p74, %p75
      %p77 = scmp.ne.s32.totalorder %s66, %s69
      %p78 = scmp.eq.s32.totalorder %s17, 7
      %p79 = por %p77, %p78
      %p80 = scmp.ne.s32.totalorder %s69, %s70
      %p81 = scmp.eq.s32.totalorder %s17, 0
      %p82 = por %p80, %p81
      %p83 = scmp.ne.s32.totalorder %s69, %s70
      %p84 = scmp.eq.s32.totalorder %s18, 7
      %p85 = por %p83, %p84
      %p87 = scmp.ne.s32.totalorder %s70, %s86
      %p88 = scmp.eq.s32.totalorder %s18, 0
      %p89 = por %p87, %p88
      %s90 = sadd.s32 %s20, 2
      %s91 = sadd.s32 %s27, 2
      %s92 = ssub.s32 %s19, %s31
      %s93 = ssub.s32 %s90, %s91
      %s94 = sor.u32 %s92, %s93
      %p95 = scmp.eq.s32.totalorder %s94, 0
      %s97 = sadd.s32 %s96, 1
      %s98 = scalar_select %p95, %s96, %s97
      %p101 = pneg %p95
      %p102 = scmp.eq.s32.totalorder %s12, 7
      %p103 = por %p101, %p102
      %p104 = scmp.ne.s32.totalorder %s96, %s99
      %p105 = scmp.eq.s32.totalorder %s12, 0
      %p106 = por %p104, %p105
      %p107 = scmp.ne.s32.totalorder %s96, %s99
      %p108 = scmp.eq.s32.totalorder %s17, 7
      %p109 = por %p107, %p108
      %p110 = scmp.ne.s32.totalorder %s99, %s100
      %p111 = scmp.eq.s32.totalorder %s17, 0
      %p112 = por %p110, %p111
      %p113 = scmp.ne.s32.totalorder %s99, %s100
      %p114 = scmp.eq.s32.totalorder %s18, 7
      %p115 = por %p113, %p114
      %p117 = scmp.ne.s32.totalorder %s100, %s116
      %p118 = scmp.eq.s32.totalorder %s18, 0
      %p119 = por %p117, %p118
      %s121 = sadd.s32 %s120, 1
      %p124 = scmp.eq.s32.totalorder %s12, 7
      %p125 = scmp.ne.s32.totalorder %s120, %s122
      %p126 = scmp.eq.s32.totalorder %s12, 0
      %p127 = por %p125, %p126
      %p128 = scmp.ne.s32.totalorder %s120, %s122
      %p129 = scmp.eq.s32.totalorder %s17, 7
      %p130 = por %p128, %p129
      %p131 = scmp.ne.s32.totalorder %s122, %s123
      %p132 = scmp.eq.s32.totalorder %s17, 0
      %p133 = por %p131, %p132
      %p134 = scmp.ne.s32.totalorder %s122, %s123
      %p135 = scmp.eq.s32.totalorder %s18, 7
      %p136 = por %p134, %p135
      %p138 = scmp.ne.s32.totalorder %s123, %s137
      %p139 = scmp.eq.s32.totalorder %s18, 0
      %p140 = por %p138, %p139
      %s142 = sadd.s32 %s141, 1
      %p145 = scmp.eq.s32.totalorder %s12, 7
      %p146 = scmp.ne.s32.totalorder %s141, %s143
      %p147 = scmp.eq.s32.totalorder %s12, 0
      %p148 = por %p146, %p147
      %p149 = scmp.ne.s32.totalorder %s141, %s143
      %p150 = scmp.eq.s32.totalorder %s17, 7
      %p151 = por %p149, %p150
      %p152 = scmp.ne.s32.totalorder %s143, %s144
      %p153 = scmp.eq.s32.totalorder %s17, 0
      %p154 = por %p152, %p153
      %p155 = scmp.ne.s32.totalorder %s143, %s144
      %p156 = scmp.eq.s32.totalorder %s18, 7
      %p157 = por %p155, %p156
      %p159 = scmp.ne.s32.totalorder %s144, %s158
      %p160 = scmp.eq.s32.totalorder %s18, 0
      %p161 = por %p159, %p160
      %s162 = ssub.s32 %s19, %s31
      %s163 = ssub.s32 %s20, %s27
      %s164 = sor.u32 %s162, %s163
      %p165 = scmp.eq.s32.totalorder %s164, 0
      %s167 = sadd.s32 %s166, 1
      %s168 = scalar_select %p165, %s166, %s167
      %p171 = pneg %p165
      %p172 = scmp.eq.s32.totalorder %s12, 7
      %p173 = por %p171, %p172
      %p174 = scmp.ne.s32.totalorder %s166, %s169
      %p175 = scmp.eq.s32.totalorder %s12, 0
      %p176 = por %p174, %p175
      %p177 = scmp.ne.s32.totalorder %s166, %s169
      %p178 = scmp.eq.s32.totalorder %s17, 7
      %p179 = por %p177, %p178
      %p180 = scmp.ne.s32.totalorder %s169, %s170
      %p181 = scmp.eq.s32.totalorder %s17, 0
      %p182 = por %p180, %p181
      %p183 = scmp.ne.s32.totalorder %s169, %s170
      %p184 = scmp.eq.s32.totalorder %s18, 7
      %p185 = por %p183, %p184
      %p187 = scmp.ne.s32.totalorder %s170, %s186
      %p188 = scmp.eq.s32.totalorder %s18, 0
      %p189 = por %p187, %p188
      %p190 = scmp.le.s32.totalorder 1, %s12
      %p191 = scmp.lt.s32.totalorder %s12, 9
      %p192 = pnand %p190, %p191
      %p193 = pneg %p192
      // Predicated region
      $region9: #{de_conv_block_3d_pallas.3} parent=5 // pred_check
        _
      $region10: #{de_conv_block_3d_pallas.3} parent=5 // pred_check_branch
        %195 = sbr.rel (%p192) target = $region12
      $region11: #{de_conv_block_3d_pallas.3} parent=5 // pred_region
        %s196 = ssub.s32 %s12, 1
        // Predicated region
        $region13: #{de_conv_block_3d_pallas.3} parent=11 // pred_check
          %p197 = pneg %p133
        $region14: #{de_conv_block_3d_pallas.3} parent=11 // pred_check_branch
          %199 = sbr.rel (%p197) target = $region16
        $region15: #{de_conv_block_3d_pallas.3} parent=11 // pred_region
          _
        $region16: #{de_conv_block_3d_pallas.3} parent=11 // pred_fallthru
          _
        // Predicated region
        $region17: #{de_conv_block_3d_pallas.3} parent=11 // pred_check
          %p200 = pneg %p154
        $region18: #{de_conv_block_3d_pallas.3} parent=11 // pred_check_branch
          %202 = sbr.rel (%p200) target = $region20
        $region19: #{de_conv_block_3d_pallas.3} parent=11 // pred_region
          %s204 = ssub.s32 16, 16
          %205 = vsyncadd [#allocation3], %s204
          %s207 = sshll.u32 [#allocation2], 4
          %s208 = int_to_ptr.vmem [resolvable:$true] %s207
          %210 = dma.hbm_to_vmem [thread:$0]  %s4, 16, %s208, [#allocation3]
        $region20: #{de_conv_block_3d_pallas.3} parent=11 // pred_fallthru
          _
      $region12: #{de_conv_block_3d_pallas.3} parent=5 // pred_fallthru
        _
      %p211 = scmp.lt.s32.totalorder %s12, 8
      // Predicated region
      $region21: #{de_conv_block_3d_pallas.3} parent=5 // pred_check
        %p212 = pneg %p211
      $region22: #{de_conv_block_3d_pallas.3} parent=5 // pred_check_branch
        %214 = sbr.rel (%p212) target = $region24
      $region23: #{de_conv_block_3d_pallas.3} parent=5 // pred_region
        // Predicated region
        $region25: #{de_conv_block_3d_pallas.3} parent=23 // pred_check
          %p215 = pneg %p46
        $region26: #{de_conv_block_3d_pallas.3} parent=23 // pred_check_branch
          %217 = sbr.rel (%p215) target = $region28
        $region27: #{de_conv_block_3d_pallas.3} parent=23 // pred_region
          %p218 = scmp.lt.s32.totalorder %s19, 1
          %s219 = scalar_select %p218, %s19, 1
          %p220 = scmp.lt.s32.totalorder %s20, 5
          %s221 = scalar_select %p220, %s20, 5
          %s222 = smul.addr %s221, 20
          %s223 = smul.addr %s219, 120
          %s224 = sadd.s32 %s222, %s223
          %s225 = smul.addr %s224, 8
          %s226 = scalar_lea.vmem %s0, %s225
        $region28: #{de_conv_block_3d_pallas.3} parent=23 // pred_fallthru
          _
        // Predicated region
        $region29: #{de_conv_block_3d_pallas.3} parent=23 // pred_check
          %p227 = pneg %p76
        $region30: #{de_conv_block_3d_pallas.3} parent=23 // pred_check_branch
          %229 = sbr.rel (%p227) target = $region32
        $region31: #{de_conv_block_3d_pallas.3} parent=23 // pred_region
          %s230 = sadd.s32 %s20, 1
          %p231 = scmp.lt.s32.totalorder %s19, 1
          %s232 = scalar_select %p231, %s19, 1
          %p233 = scmp.lt.s32.totalorder %s230, 5
          %s234 = scalar_select %p233, %s230, 5
          %s235 = smul.addr %s234, 20
          %s236 = smul.addr %s232, 120
          %s237 = sadd.s32 %s235, %s236
          %s238 = smul.addr %s237, 8
          %s239 = scalar_lea.vmem %s1, %s238
          %s240 = sadd.s32 %s20, 1
        $region32: #{de_conv_block_3d_pallas.3} parent=23 // pred_fallthru
          _
        // Predicated region
        $region33: #{de_conv_block_3d_pallas.3} parent=23 // pred_check
          %p241 = pneg %p106
        $region34: #{de_conv_block_3d_pallas.3} parent=23 // pred_check_branch
          %243 = sbr.rel (%p241) target = $region36
        $region35: #{de_conv_block_3d_pallas.3} parent=23 // pred_region
          %s244 = sadd.s32 %s20, 2
          %p245 = scmp.lt.s32.totalorder %s19, 1
          %s246 = scalar_select %p245, %s19, 1
          %p247 = scmp.lt.s32.totalorder %s244, 5
          %s248 = scalar_select %p247, %s244, 5
          %s249 = smul.addr %s248, 20
          %s250 = smul.addr %s246, 120
          %s251 = sadd.s32 %s249, %s250
          %s252 = smul.addr %s251, 8
          %s253 = scalar_lea.vmem %s2, %s252
          %s254 = sadd.s32 %s20, 2
        $region36: #{de_conv_block_3d_pallas.3} parent=23 // pred_fallthru
          _
      $region24: #{de_conv_block_3d_pallas.3} parent=5 // pred_fallthru
        _
      %p255 = scmp.le.s32.totalorder 1, %s12
      %p256 = scmp.lt.s32.totalorder %s12, 9
      %p257 = pnand %p255, %p256
      %p258 = pneg %p257
      // Predicated region
      $region37: #{de_conv_block_3d_pallas.3} parent=5 // pred_check
        _
      $region38: #{de_conv_block_3d_pallas.3} parent=5 // pred_check_branch
        %260 = sbr.rel (%p257) target = $region40
      $region39: #{de_conv_block_3d_pallas.3} parent=5 // pred_region
        %s261 = ssub.s32 %s12, 1
        // Predicated region
        $region41: #{de_conv_block_3d_pallas.3} parent=39 // pred_check
          %p262 = pneg %p154
        $region42: #{de_conv_block_3d_pallas.3} parent=39 // pred_check_branch
          %264 = sbr.rel (%p262) target = $region44
        $region43: #{de_conv_block_3d_pallas.3} parent=39 // pred_region
          %265 = dma.done [#allocation3], 16
        $region44: #{de_conv_block_3d_pallas.3} parent=39 // pred_fallthru
          _
        %p266 = scmp.lt.s32.totalorder %s21, 1
        %s267 = scalar_select %p266, %s21, 1
        %p268 = scmp.lt.s32.totalorder %s22, 5
        %s269 = scalar_select %p268, %s22, 5
        %s270 = smul.addr %s269, 20
        %s271 = smul.addr %s267, 120
        %s272 = sadd.s32 %s270, %s271
        %s273 = smul.addr %s272, 8
        %s274 = scalar_lea.vmem %s0, %s273
        %p275 = pneg %p52
        %p276 = pneg %p49
        %s277 = sadd.s32 %s22, 1
        %p278 = scmp.lt.s32.totalorder %s21, 1
        %s279 = scalar_select %p278, %s21, 1
        %p280 = scmp.lt.s32.totalorder %s277, 5
        %s281 = scalar_select %p280, %s277, 5
        %s282 = smul.addr %s281, 20
        %s283 = smul.addr %s279, 120
        %s284 = sadd.s32 %s282, %s283
        %s285 = smul.addr %s284, 8
        %s286 = scalar_lea.vmem %s1, %s285
        %p287 = pneg %p82
        %p288 = pneg %p79
        %s289 = sadd.s32 %s22, 2
        %p290 = scmp.lt.s32.totalorder %s21, 1
        %s291 = scalar_select %p290, %s21, 1
        %p292 = scmp.lt.s32.totalorder %s289, 5
        %s293 = scalar_select %p292, %s289, 5
        %s294 = smul.addr %s293, 20
        %s295 = smul.addr %s291, 120
        %s296 = sadd.s32 %s294, %s295
        %s297 = smul.addr %s296, 8
        %s298 = scalar_lea.vmem %s2, %s297
        %p299 = pneg %p112
        %p300 = pneg %p109
        %p301 = pneg %p133
        %p302 = pneg %p130
        %p303 = pneg %p154
        %p304 = pneg %p151
        %p305 = pneg %p182
        %p306 = pneg %p179
        %p307 = scmp.lt.s32.totalorder %s21, 1
        %s308 = scalar_select %p307, %s21, 1
        %p309 = scmp.lt.s32.totalorder %s22, 3
        %s310 = scalar_select %p309, %s22, 3
        %s311 = smul.addr %s310, 8
        %s312 = smul.addr %s308, 32
        %s313 = sadd.s32 %s311, %s312
        %s314 = smul.addr %s313, 8
        %s315 = scalar_lea.vmem %s5, %s314
        %p316 = scmp.lt.s32.totalorder %s21, 1
        %s317 = scalar_select %p316, %s21, 1
        %p318 = scmp.lt.s32.totalorder %s22, 5
        %s319 = scalar_select %p318, %s22, 5
        %s320 = smul.addr %s319, 20
        %s321 = smul.addr %s317, 120
        %s322 = sadd.s32 %s320, %s321
        %s323 = smul.addr %s322, 8
        %s324 = scalar_lea.vmem %s0, %s323
        %s325 = sadd.s32 %s22, 1
        %p326 = scmp.lt.s32.totalorder %s21, 1
        %s327 = scalar_select %p326, %s21, 1
        %p328 = scmp.lt.s32.totalorder %s325, 5
        %s329 = scalar_select %p328, %s325, 5
        %s330 = smul.addr %s329, 20
        %s331 = smul.addr %s327, 120
        %s332 = sadd.s32 %s330, %s331
        %s333 = smul.addr %s332, 8
        %s334 = scalar_lea.vmem %s1, %s333
        %s335 = sadd.s32 %s22, 1
        %s336 = sadd.s32 %s22, 2
        %p337 = scmp.lt.s32.totalorder %s21, 1
        %s338 = scalar_select %p337, %s21, 1
        %p339 = scmp.lt.s32.totalorder %s336, 5
        %s340 = scalar_select %p339, %s336, 5
        %s341 = smul.addr %s340, 20
        %s342 = smul.addr %s338, 120
        %s343 = sadd.s32 %s341, %s342
        %s344 = smul.addr %s343, 8
        %s345 = scalar_lea.vmem %s2, %s344
        %s346 = sadd.s32 %s22, 2
        %p347 = scmp.lt.s32.totalorder %s21, 1
        %s348 = scalar_select %p347, %s21, 1
        %p349 = scmp.lt.s32.totalorder %s22, 3
        %s350 = scalar_select %p349, %s22, 3
        %s351 = smul.addr %s350, 8
        %s352 = smul.addr %s348, 32
        %s353 = sadd.s32 %s351, %s352
        %s354 = smul.addr %s353, 8
        %s355 = scalar_lea.vmem %s5, %s354
        %v356 = vld [vmem:[%s324] sm:$0xff]
        %v357 = vld [vmem:[%s324 + $0x8] sm:$0x3]
        %v358 = vld [vmem:[%s324 + $0x10] sm:$0xff]
        %v359 = vld [vmem:[%s324 + $0x18] sm:$0x3]
        %v360 = vld [vmem:[%s324 + $0x20] sm:$0xff]
        %v361 = vld [vmem:[%s324 + $0x28] sm:$0x3]
        %v362 = vld [vmem:[%s324 + $0x30] sm:$0xff]
        %v363 = vld [vmem:[%s324 + $0x38] sm:$0x3]
        %v364 = vld [vmem:[%s324 + $0x40] sm:$0xff]
        %v365 = vld [vmem:[%s324 + $0x48] sm:$0x3]
        %v366 = vld [vmem:[%s324 + $0x50] sm:$0xff]
        %v367 = vld [vmem:[%s324 + $0x58] sm:$0x3]
        %v368 = vld [vmem:[%s324 + $0x60] sm:$0xff]
        %v369 = vld [vmem:[%s324 + $0x68] sm:$0x3]
        %v370 = vld [vmem:[%s324 + $0x70] sm:$0xff]
        %v371 = vld [vmem:[%s324 + $0x78] sm:$0x3]
        %v372 = vld [vmem:[%s324 + $0x80] sm:$0xff]
        %v373 = vld [vmem:[%s324 + $0x88] sm:$0x3]
        %v374 = vld [vmem:[%s324 + $0x90] sm:$0xff]
        %v375 = vld [vmem:[%s324 + $0x98] sm:$0x3]
        %v376 = vld [vmem:[%s334] sm:$0xff]
        %v377 = vld [vmem:[%s334 + $0x8] sm:$0x3]
        %v378 = vld [vmem:[%s334 + $0x10] sm:$0xff]
        %v379 = vld [vmem:[%s334 + $0x18] sm:$0x3]
        %v380 = vld [vmem:[%s334 + $0x20] sm:$0xff]
        %v381 = vld [vmem:[%s334 + $0x28] sm:$0x3]
        %v382 = vld [vmem:[%s334 + $0x30] sm:$0xff]
        %v383 = vld [vmem:[%s334 + $0x38] sm:$0x3]
        %v384 = vld [vmem:[%s334 + $0x40] sm:$0xff]
        %v385 = vld [vmem:[%s334 + $0x48] sm:$0x3]
        %v386 = vld [vmem:[%s334 + $0x50] sm:$0xff]
        %v387 = vld [vmem:[%s334 + $0x58] sm:$0x3]
        %v388 = vld [vmem:[%s334 + $0x60] sm:$0xff]
        %v389 = vld [vmem:[%s334 + $0x68] sm:$0x3]
        %v390 = vld [vmem:[%s334 + $0x70] sm:$0xff]
        %v391 = vld [vmem:[%s334 + $0x78] sm:$0x3]
        %v392 = vld [vmem:[%s334 + $0x80] sm:$0xff]
        %v393 = vld [vmem:[%s334 + $0x88] sm:$0x3]
        %v394 = vld [vmem:[%s334 + $0x90] sm:$0xff]
        %v395 = vld [vmem:[%s334 + $0x98] sm:$0x3]
        %v396 = vld [vmem:[%s345] sm:$0xff]
        %v397 = vld [vmem:[%s345 + $0x8] sm:$0x3]
        %v398 = vld [vmem:[%s345 + $0x10] sm:$0xff]
        %v399 = vld [vmem:[%s345 + $0x18] sm:$0x3]
        %v400 = vld [vmem:[%s345 + $0x20] sm:$0xff]
        %v401 = vld [vmem:[%s345 + $0x28] sm:$0x3]
        %v402 = vld [vmem:[%s345 + $0x30] sm:$0xff]
        %v403 = vld [vmem:[%s345 + $0x38] sm:$0x3]
        %v404 = vld [vmem:[%s345 + $0x40] sm:$0xff]
        %v405 = vld [vmem:[%s345 + $0x48] sm:$0x3]
        %v406 = vld [vmem:[%s345 + $0x50] sm:$0xff]
        %v407 = vld [vmem:[%s345 + $0x58] sm:$0x3]
        %v408 = vld [vmem:[%s345 + $0x60] sm:$0xff]
        %v409 = vld [vmem:[%s345 + $0x68] sm:$0x3]
        %v410 = vld [vmem:[%s345 + $0x70] sm:$0xff]
        %v411 = vld [vmem:[%s345 + $0x78] sm:$0x3]
        %v412 = vld [vmem:[%s345 + $0x80] sm:$0xff]
        %v413 = vld [vmem:[%s345 + $0x88] sm:$0x3]
        %v414 = vld [vmem:[%s345 + $0x90] sm:$0xff]
        %v415 = vld [vmem:[%s345 + $0x98] sm:$0x3]
        %vm432 = vcmask 1046528
        %v433 = vrot.slane %v356, 1
        %v434 = vrot.slane %v357, 1
        %v435 = vsel %vm432, %v433, %v434
        %v436 = vrot.slane %v358, 1
        %v437 = vrot.slane %v359, 1
        %v438 = vsel %vm432, %v436, %v437
        %v439 = vrot.slane %v360, 1
        %v440 = vrot.slane %v361, 1
        %v441 = vsel %vm432, %v439, %v440
        %v442 = vrot.slane %v362, 1
        %v443 = vrot.slane %v363, 1
        %v444 = vsel %vm432, %v442, %v443
        %v445 = vrot.slane %v364, 1
        %v446 = vrot.slane %v365, 1
        %v447 = vsel %vm432, %v445, %v446
        %v448 = vrot.slane %v366, 1
        %v449 = vrot.slane %v367, 1
        %v450 = vsel %vm432, %v448, %v449
        %v451 = vrot.slane %v368, 1
        %v452 = vrot.slane %v369, 1
        %v453 = vsel %vm432, %v451, %v452
        %v454 = vrot.slane %v370, 1
        %v455 = vrot.slane %v371, 1
        %v456 = vsel %vm432, %v454, %v455
        %457 = vrot.lane.b32.xlu0 %v435, 4
        %v458 = vpop.permute.xlu0 %457
        %459 = vrot.lane.b32.xlu0 %v438, 4
        %v460 = vpop.permute.xlu0 %459
        %461 = vrot.lane.b32.xlu0 %v441, 4
        %v462 = vpop.permute.xlu0 %461
        %463 = vrot.lane.b32.xlu0 %v444, 4
        %v464 = vpop.permute.xlu0 %463
        %465 = vrot.lane.b32.xlu0 %v447, 4
        %v466 = vpop.permute.xlu0 %465
        %467 = vrot.lane.b32.xlu0 %v450, 4
        %v468 = vpop.permute.xlu0 %467
        %469 = vrot.lane.b32.xlu0 %v453, 4
        %v470 = vpop.permute.xlu0 %469
        %471 = vrot.lane.b32.xlu0 %v456, 4
        %v472 = vpop.permute.xlu0 %471
        %vm481 = vcmask 1045504
        %v482 = vrot.slane %v356, 2
        %v483 = vrot.slane %v357, 2
        %v484 = vsel %vm481, %v482, %v483
        %v485 = vrot.slane %v358, 2
        %v486 = vrot.slane %v359, 2
        %v487 = vsel %vm481, %v485, %v486
        %v488 = vrot.slane %v360, 2
        %v489 = vrot.slane %v361, 2
        %v490 = vsel %vm481, %v488, %v489
        %v491 = vrot.slane %v362, 2
        %v492 = vrot.slane %v363, 2
        %v493 = vsel %vm481, %v491, %v492
        %v494 = vrot.slane %v364, 2
        %v495 = vrot.slane %v365, 2
        %v496 = vsel %vm481, %v494, %v495
        %v497 = vrot.slane %v366, 2
        %v498 = vrot.slane %v367, 2
        %v499 = vsel %vm481, %v497, %v498
        %v500 = vrot.slane %v368, 2
        %v501 = vrot.slane %v369, 2
        %v502 = vsel %vm481, %v500, %v501
        %v503 = vrot.slane %v370, 2
        %v504 = vrot.slane %v371, 2
        %v505 = vsel %vm481, %v503, %v504
        %506 = vrot.lane.b32.xlu0 %v484, 8
        %v507 = vpop.permute.xlu0 %506
        %508 = vrot.lane.b32.xlu0 %v487, 8
        %v509 = vpop.permute.xlu0 %508
        %510 = vrot.lane.b32.xlu0 %v490, 8
        %v511 = vpop.permute.xlu0 %510
        %512 = vrot.lane.b32.xlu0 %v493, 8
        %v513 = vpop.permute.xlu0 %512
        %514 = vrot.lane.b32.xlu0 %v496, 8
        %v515 = vpop.permute.xlu0 %514
        %516 = vrot.lane.b32.xlu0 %v499, 8
        %v517 = vpop.permute.xlu0 %516
        %518 = vrot.lane.b32.xlu0 %v502, 8
        %v519 = vpop.permute.xlu0 %518
        %520 = vrot.lane.b32.xlu0 %v505, 8
        %v521 = vpop.permute.xlu0 %520
        %531 = vrot.lane.b32.xlu0 %v358, 12
        %v532 = vpop.permute.xlu0 %531
        %533 = vrot.lane.b32.xlu0 %v360, 12
        %v534 = vpop.permute.xlu0 %533
        %535 = vrot.lane.b32.xlu0 %v362, 12
        %v536 = vpop.permute.xlu0 %535
        %537 = vrot.lane.b32.xlu0 %v364, 12
        %v538 = vpop.permute.xlu0 %537
        %539 = vrot.lane.b32.xlu0 %v366, 12
        %v540 = vpop.permute.xlu0 %539
        %541 = vrot.lane.b32.xlu0 %v368, 12
        %v542 = vpop.permute.xlu0 %541
        %543 = vrot.lane.b32.xlu0 %v370, 12
        %v544 = vpop.permute.xlu0 %543
        %545 = vrot.lane.b32.xlu0 %v372, 12
        %v546 = vpop.permute.xlu0 %545
        %v556 = vrot.slane %v372, 1
        %v557 = vrot.slane %v373, 1
        %v558 = vsel %vm432, %v556, %v557
        %559 = vrot.lane.b32.xlu0 %v438, 16
        %v560 = vpop.permute.xlu0 %559
        %561 = vrot.lane.b32.xlu0 %v441, 16
        %v562 = vpop.permute.xlu0 %561
        %563 = vrot.lane.b32.xlu0 %v444, 16
        %v564 = vpop.permute.xlu0 %563
        %565 = vrot.lane.b32.xlu0 %v447, 16
        %v566 = vpop.permute.xlu0 %565
        %567 = vrot.lane.b32.xlu0 %v450, 16
        %v568 = vpop.permute.xlu0 %567
        %569 = vrot.lane.b32.xlu0 %v453, 16
        %v570 = vpop.permute.xlu0 %569
        %571 = vrot.lane.b32.xlu0 %v456, 16
        %v572 = vpop.permute.xlu0 %571
        %573 = vrot.lane.b32.xlu0 %v558, 16
        %v574 = vpop.permute.xlu0 %573
        %v583 = vrot.slane %v372, 2
        %v584 = vrot.slane %v373, 2
        %v585 = vsel %vm481, %v583, %v584
        %586 = vrot.lane.b32.xlu0 %v487, 20
        %v587 = vpop.permute.xlu0 %586
        %588 = vrot.lane.b32.xlu0 %v490, 20
        %v589 = vpop.permute.xlu0 %588
        %590 = vrot.lane.b32.xlu0 %v493, 20
        %v591 = vpop.permute.xlu0 %590
        %592 = vrot.lane.b32.xlu0 %v496, 20
        %v593 = vpop.permute.xlu0 %592
        %594 = vrot.lane.b32.xlu0 %v499, 20
        %v595 = vpop.permute.xlu0 %594
        %596 = vrot.lane.b32.xlu0 %v502, 20
        %v597 = vpop.permute.xlu0 %596
        %598 = vrot.lane.b32.xlu0 %v505, 20
        %v599 = vpop.permute.xlu0 %598
        %600 = vrot.lane.b32.xlu0 %v585, 20
        %v601 = vpop.permute.xlu0 %600
        %611 = vrot.lane.b32.xlu0 %v360, 24
        %v612 = vpop.permute.xlu0 %611
        %613 = vrot.lane.b32.xlu0 %v362, 24
        %v614 = vpop.permute.xlu0 %613
        %615 = vrot.lane.b32.xlu0 %v364, 24
        %v616 = vpop.permute.xlu0 %615
        %617 = vrot.lane.b32.xlu0 %v366, 24
        %v618 = vpop.permute.xlu0 %617
        %619 = vrot.lane.b32.xlu0 %v368, 24
        %v620 = vpop.permute.xlu0 %619
        %621 = vrot.lane.b32.xlu0 %v370, 24
        %v622 = vpop.permute.xlu0 %621
        %623 = vrot.lane.b32.xlu0 %v372, 24
        %v624 = vpop.permute.xlu0 %623
        %625 = vrot.lane.b32.xlu0 %v374, 24
        %v626 = vpop.permute.xlu0 %625
        %v636 = vrot.slane %v374, 1
        %v637 = vrot.slane %v375, 1
        %v638 = vsel %vm432, %v636, %v637
        %639 = vrot.lane.b32.xlu0 %v441, 28
        %v640 = vpop.permute.xlu0 %639
        %641 = vrot.lane.b32.xlu0 %v444, 28
        %v642 = vpop.permute.xlu0 %641
        %643 = vrot.lane.b32.xlu0 %v447, 28
        %v644 = vpop.permute.xlu0 %643
        %645 = vrot.lane.b32.xlu0 %v450, 28
        %v646 = vpop.permute.xlu0 %645
        %647 = vrot.lane.b32.xlu0 %v453, 28
        %v648 = vpop.permute.xlu0 %647
        %649 = vrot.lane.b32.xlu0 %v456, 28
        %v650 = vpop.permute.xlu0 %649
        %651 = vrot.lane.b32.xlu0 %v558, 28
        %v652 = vpop.permute.xlu0 %651
        %653 = vrot.lane.b32.xlu0 %v638, 28
        %v654 = vpop.permute.xlu0 %653
        %v663 = vrot.slane %v374, 2
        %v664 = vrot.slane %v375, 2
        %v665 = vsel %vm481, %v663, %v664
        %666 = vrot.lane.b32.xlu0 %v490, 32
        %v667 = vpop.permute.xlu0 %666
        %668 = vrot.lane.b32.xlu0 %v493, 32
        %v669 = vpop.permute.xlu0 %668
        %670 = vrot.lane.b32.xlu0 %v496, 32
        %v671 = vpop.permute.xlu0 %670
        %672 = vrot.lane.b32.xlu0 %v499, 32
        %v673 = vpop.permute.xlu0 %672
        %674 = vrot.lane.b32.xlu0 %v502, 32
        %v675 = vpop.permute.xlu0 %674
        %676 = vrot.lane.b32.xlu0 %v505, 32
        %v677 = vpop.permute.xlu0 %676
        %678 = vrot.lane.b32.xlu0 %v585, 32
        %v679 = vpop.permute.xlu0 %678
        %680 = vrot.lane.b32.xlu0 %v665, 32
        %v681 = vpop.permute.xlu0 %680
        %698 = vrot.lane.b32.xlu0 %v376, 36
        %v699 = vpop.permute.xlu0 %698
        %700 = vrot.lane.b32.xlu0 %v378, 36
        %v701 = vpop.permute.xlu0 %700
        %702 = vrot.lane.b32.xlu0 %v380, 36
        %v703 = vpop.permute.xlu0 %702
        %704 = vrot.lane.b32.xlu0 %v382, 36
        %v705 = vpop.permute.xlu0 %704
        %706 = vrot.lane.b32.xlu0 %v384, 36
        %v707 = vpop.permute.xlu0 %706
        %708 = vrot.lane.b32.xlu0 %v386, 36
        %v709 = vpop.permute.xlu0 %708
        %710 = vrot.lane.b32.xlu0 %v388, 36
        %v711 = vpop.permute.xlu0 %710
        %712 = vrot.lane.b32.xlu0 %v390, 36
        %v713 = vpop.permute.xlu0 %712
        %v730 = vrot.slane %v376, 1
        %v731 = vrot.slane %v377, 1
        %v732 = vsel %vm432, %v730, %v731
        %v733 = vrot.slane %v378, 1
        %v734 = vrot.slane %v379, 1
        %v735 = vsel %vm432, %v733, %v734
        %v736 = vrot.slane %v380, 1
        %v737 = vrot.slane %v381, 1
        %v738 = vsel %vm432, %v736, %v737
        %v739 = vrot.slane %v382, 1
        %v740 = vrot.slane %v383, 1
        %v741 = vsel %vm432, %v739, %v740
        %v742 = vrot.slane %v384, 1
        %v743 = vrot.slane %v385, 1
        %v744 = vsel %vm432, %v742, %v743
        %v745 = vrot.slane %v386, 1
        %v746 = vrot.slane %v387, 1
        %v747 = vsel %vm432, %v745, %v746
        %v748 = vrot.slane %v388, 1
        %v749 = vrot.slane %v389, 1
        %v750 = vsel %vm432, %v748, %v749
        %v751 = vrot.slane %v390, 1
        %v752 = vrot.slane %v391, 1
        %v753 = vsel %vm432, %v751, %v752
        %754 = vrot.lane.b32.xlu0 %v732, 40
        %v755 = vpop.permute.xlu0 %754
        %756 = vrot.lane.b32.xlu0 %v735, 40
        %v757 = vpop.permute.xlu0 %756
        %758 = vrot.lane.b32.xlu0 %v738, 40
        %v759 = vpop.permute.xlu0 %758
        %760 = vrot.lane.b32.xlu0 %v741, 40
        %v761 = vpop.permute.xlu0 %760
        %762 = vrot.lane.b32.xlu0 %v744, 40
        %v763 = vpop.permute.xlu0 %762
        %764 = vrot.lane.b32.xlu0 %v747, 40
        %v765 = vpop.permute.xlu0 %764
        %766 = vrot.lane.b32.xlu0 %v750, 40
        %v767 = vpop.permute.xlu0 %766
        %768 = vrot.lane.b32.xlu0 %v753, 40
        %v769 = vpop.permute.xlu0 %768
        %v778 = vrot.slane %v376, 2
        %v779 = vrot.slane %v377, 2
        %v780 = vsel %vm481, %v778, %v779
        %v781 = vrot.slane %v378, 2
        %v782 = vrot.slane %v379, 2
        %v783 = vsel %vm481, %v781, %v782
        %v784 = vrot.slane %v380, 2
        %v785 = vrot.slane %v381, 2
        %v786 = vsel %vm481, %v784, %v785
        %v787 = vrot.slane %v382, 2
        %v788 = vrot.slane %v383, 2
        %v789 = vsel %vm481, %v787, %v788
        %v790 = vrot.slane %v384, 2
        %v791 = vrot.slane %v385, 2
        %v792 = vsel %vm481, %v790, %v791
        %v793 = vrot.slane %v386, 2
        %v794 = vrot.slane %v387, 2
        %v795 = vsel %vm481, %v793, %v794
        %v796 = vrot.slane %v388, 2
        %v797 = vrot.slane %v389, 2
        %v798 = vsel %vm481, %v796, %v797
        %v799 = vrot.slane %v390, 2
        %v800 = vrot.slane %v391, 2
        %v801 = vsel %vm481, %v799, %v800
        %802 = vrot.lane.b32.xlu0 %v780, 44
        %v803 = vpop.permute.xlu0 %802
        %804 = vrot.lane.b32.xlu0 %v783, 44
        %v805 = vpop.permute.xlu0 %804
        %806 = vrot.lane.b32.xlu0 %v786, 44
        %v807 = vpop.permute.xlu0 %806
        %808 = vrot.lane.b32.xlu0 %v789, 44
        %v809 = vpop.permute.xlu0 %808
        %810 = vrot.lane.b32.xlu0 %v792, 44
        %v811 = vpop.permute.xlu0 %810
        %812 = vrot.lane.b32.xlu0 %v795, 44
        %v813 = vpop.permute.xlu0 %812
        %814 = vrot.lane.b32.xlu0 %v798, 44
        %v815 = vpop.permute.xlu0 %814
        %816 = vrot.lane.b32.xlu0 %v801, 44
        %v817 = vpop.permute.xlu0 %816
        %827 = vrot.lane.b32.xlu0 %v378, 48
        %v828 = vpop.permute.xlu0 %827
        %829 = vrot.lane.b32.xlu0 %v380, 48
        %v830 = vpop.permute.xlu0 %829
        %831 = vrot.lane.b32.xlu0 %v382, 48
        %v832 = vpop.permute.xlu0 %831
        %833 = vrot.lane.b32.xlu0 %v384, 48
        %v834 = vpop.permute.xlu0 %833
        %835 = vrot.lane.b32.xlu0 %v386, 48
        %v836 = vpop.permute.xlu0 %835
        %837 = vrot.lane.b32.xlu0 %v388, 48
        %v838 = vpop.permute.xlu0 %837
        %839 = vrot.lane.b32.xlu0 %v390, 48
        %v840 = vpop.permute.xlu0 %839
        %841 = vrot.lane.b32.xlu0 %v392, 48
        %v842 = vpop.permute.xlu0 %841
        %v852 = vrot.slane %v392, 1
        %v853 = vrot.slane %v393, 1
        %v854 = vsel %vm432, %v852, %v853
        %855 = vrot.lane.b32.xlu0 %v735, 52
        %v856 = vpop.permute.xlu0 %855
        %857 = vrot.lane.b32.xlu0 %v738, 52
        %v858 = vpop.permute.xlu0 %857
        %859 = vrot.lane.b32.xlu0 %v741, 52
        %v860 = vpop.permute.xlu0 %859
        %861 = vrot.lane.b32.xlu0 %v744, 52
        %v862 = vpop.permute.xlu0 %861
        %863 = vrot.lane.b32.xlu0 %v747, 52
        %v864 = vpop.permute.xlu0 %863
        %865 = vrot.lane.b32.xlu0 %v750, 52
        %v866 = vpop.permute.xlu0 %865
        %867 = vrot.lane.b32.xlu0 %v753, 52
        %v868 = vpop.permute.xlu0 %867
        %869 = vrot.lane.b32.xlu0 %v854, 52
        %v870 = vpop.permute.xlu0 %869
        %v879 = vrot.slane %v392, 2
        %v880 = vrot.slane %v393, 2
        %v881 = vsel %vm481, %v879, %v880
        %882 = vrot.lane.b32.xlu0 %v783, 56
        %v883 = vpop.permute.xlu0 %882
        %884 = vrot.lane.b32.xlu0 %v786, 56
        %v885 = vpop.permute.xlu0 %884
        %886 = vrot.lane.b32.xlu0 %v789, 56
        %v887 = vpop.permute.xlu0 %886
        %888 = vrot.lane.b32.xlu0 %v792, 56
        %v889 = vpop.permute.xlu0 %888
        %890 = vrot.lane.b32.xlu0 %v795, 56
        %v891 = vpop.permute.xlu0 %890
        %892 = vrot.lane.b32.xlu0 %v798, 56
        %v893 = vpop.permute.xlu0 %892
        %894 = vrot.lane.b32.xlu0 %v801, 56
        %v895 = vpop.permute.xlu0 %894
        %896 = vrot.lane.b32.xlu0 %v881, 56
        %v897 = vpop.permute.xlu0 %896
        %907 = vrot.lane.b32.xlu0 %v380, 60
        %v908 = vpop.permute.xlu0 %907
        %909 = vrot.lane.b32.xlu0 %v382, 60
        %v910 = vpop.permute.xlu0 %909
        %911 = vrot.lane.b32.xlu0 %v384, 60
        %v912 = vpop.permute.xlu0 %911
        %913 = vrot.lane.b32.xlu0 %v386, 60
        %v914 = vpop.permute.xlu0 %913
        %915 = vrot.lane.b32.xlu0 %v388, 60
        %v916 = vpop.permute.xlu0 %915
        %917 = vrot.lane.b32.xlu0 %v390, 60
        %v918 = vpop.permute.xlu0 %917
        %919 = vrot.lane.b32.xlu0 %v392, 60
        %v920 = vpop.permute.xlu0 %919
        %921 = vrot.lane.b32.xlu0 %v394, 60
        %v922 = vpop.permute.xlu0 %921
        %vm931 = vcmask 31744
        %v932 = vsel %vm931, %v356, %v458
        %v933 = vsel %vm931, %v358, %v460
        %v934 = vsel %vm931, %v360, %v462
        %v935 = vsel %vm931, %v362, %v464
        %v936 = vsel %vm931, %v364, %v466
        %v937 = vsel %vm931, %v366, %v468
        %v938 = vsel %vm931, %v368, %v470
        %v939 = vsel %vm931, %v370, %v472
        %vm940 = vcmask 64512
        %v941 = vsel %vm940, %v932, %v507
        %v942 = vsel %vm940, %v933, %v509
        %v943 = vsel %vm940, %v934, %v511
        %v944 = vsel %vm940, %v935, %v513
        %v945 = vsel %vm940, %v936, %v515
        %v946 = vsel %vm940, %v937, %v517
        %v947 = vsel %vm940, %v938, %v519
        %v948 = vsel %vm940, %v939, %v521
        %vm949 = vcmask 97280
        %v950 = vsel %vm949, %v941, %v532
        %v951 = vsel %vm949, %v942, %v534
        %v952 = vsel %vm949, %v943, %v536
        %v953 = vsel %vm949, %v944, %v538
        %v954 = vsel %vm949, %v945, %v540
        %v955 = vsel %vm949, %v946, %v542
        %v956 = vsel %vm949, %v947, %v544
        %v957 = vsel %vm949, %v948, %v546
        %vm958 = vcmask 130048
        %v959 = vsel %vm958, %v950, %v560
        %v960 = vsel %vm958, %v951, %v562
        %v961 = vsel %vm958, %v952, %v564
        %v962 = vsel %vm958, %v953, %v566
        %v963 = vsel %vm958, %v954, %v568
        %v964 = vsel %vm958, %v955, %v570
        %v965 = vsel %vm958, %v956, %v572
        %v966 = vsel %vm958, %v957, %v574
        %vm967 = vcmask 162816
        %v968 = vsel %vm967, %v959, %v587
        %v969 = vsel %vm967, %v960, %v589
        %v970 = vsel %vm967, %v961, %v591
        %v971 = vsel %vm967, %v962, %v593
        %v972 = vsel %vm967, %v963, %v595
        %v973 = vsel %vm967, %v964, %v597
        %v974 = vsel %vm967, %v965, %v599
        %v975 = vsel %vm967, %v966, %v601
        %vm976 = vcmask 195584
        %v977 = vsel %vm976, %v968, %v612
        %v978 = vsel %vm976, %v969, %v614
        %v979 = vsel %vm976, %v970, %v616
        %v980 = vsel %vm976, %v971, %v618
        %v981 = vsel %vm976, %v972, %v620
        %v982 = vsel %vm976, %v973, %v622
        %v983 = vsel %vm976, %v974, %v624
        %v984 = vsel %vm976, %v975, %v626
        %vm985 = vcmask 228352
        %v986 = vsel %vm985, %v977, %v640
        %v987 = vsel %vm985, %v978, %v642
        %v988 = vsel %vm985, %v979, %v644
        %v989 = vsel %vm985, %v980, %v646
        %v990 = vsel %vm985, %v981, %v648
        %v991 = vsel %vm985, %v982, %v650
        %v992 = vsel %vm985, %v983, %v652
        %v993 = vsel %vm985, %v984, %v654
        %vm994 = vcmask 261120
        %v995 = vsel %vm994, %v986, %v667
        %v996 = vsel %vm994, %v987, %v669
        %v997 = vsel %vm994, %v988, %v671
        %v998 = vsel %vm994, %v989, %v673
        %v999 = vsel %vm994, %v990, %v675
        %v1000 = vsel %vm994, %v991, %v677
        %v1001 = vsel %vm994, %v992, %v679
        %v1002 = vsel %vm994, %v993, %v681
        %vm1003 = vcmask 293888
        %v1004 = vsel %vm1003, %v995, %v699
        %v1005 = vsel %vm1003, %v996, %v701
        %v1006 = vsel %vm1003, %v997, %v703
        %v1007 = vsel %vm1003, %v998, %v705
        %v1008 = vsel %vm1003, %v999, %v707
        %v1009 = vsel %vm1003, %v1000, %v709
        %v1010 = vsel %vm1003, %v1001, %v711
        %v1011 = vsel %vm1003, %v1002, %v713
        %vm1012 = vcmask 326656
        %v1013 = vsel %vm1012, %v1004, %v755
        %v1014 = vsel %vm1012, %v1005, %v757
        %v1015 = vsel %vm1012, %v1006, %v759
        %v1016 = vsel %vm1012, %v1007, %v761
        %v1017 = vsel %vm1012, %v1008, %v763
        %v1018 = vsel %vm1012, %v1009, %v765
        %v1019 = vsel %vm1012, %v1010, %v767
        %v1020 = vsel %vm1012, %v1011, %v769
        %vm1021 = vcmask 359424
        %v1022 = vsel %vm1021, %v1013, %v803
        %v1023 = vsel %vm1021, %v1014, %v805
        %v1024 = vsel %vm1021, %v1015, %v807
        %v1025 = vsel %vm1021, %v1016, %v809
        %v1026 = vsel %vm1021, %v1017, %v811
        %v1027 = vsel %vm1021, %v1018, %v813
        %v1028 = vsel %vm1021, %v1019, %v815
        %v1029 = vsel %vm1021, %v1020, %v817
        %vm1030 = vcmask 392192
        %v1031 = vsel %vm1030, %v1022, %v828
        %v1032 = vsel %vm1030, %v1023, %v830
        %v1033 = vsel %vm1030, %v1024, %v832
        %v1034 = vsel %vm1030, %v1025, %v834
        %v1035 = vsel %vm1030, %v1026, %v836
        %v1036 = vsel %vm1030, %v1027, %v838
        %v1037 = vsel %vm1030, %v1028, %v840
        %v1038 = vsel %vm1030, %v1029, %v842
        %vm1039 = vcmask 424960
        %v1040 = vsel %vm1039, %v1031, %v856
        %v1041 = vsel %vm1039, %v1032, %v858
        %v1042 = vsel %vm1039, %v1033, %v860
        %v1043 = vsel %vm1039, %v1034, %v862
        %v1044 = vsel %vm1039, %v1035, %v864
        %v1045 = vsel %vm1039, %v1036, %v866
        %v1046 = vsel %vm1039, %v1037, %v868
        %v1047 = vsel %vm1039, %v1038, %v870
        %vm1048 = vcmask 457728
        %v1049 = vsel %vm1048, %v1040, %v883
        %v1050 = vsel %vm1048, %v1041, %v885
        %v1051 = vsel %vm1048, %v1042, %v887
        %v1052 = vsel %vm1048, %v1043, %v889
        %v1053 = vsel %vm1048, %v1044, %v891
        %v1054 = vsel %vm1048, %v1045, %v893
        %v1055 = vsel %vm1048, %v1046, %v895
        %v1056 = vsel %vm1048, %v1047, %v897
        %vm1057 = vcmask 490496
        %v1058 = vsel %vm1057, %v1049, %v908
        %v1059 = vsel %vm1057, %v1050, %v910
        %v1060 = vsel %vm1057, %v1051, %v912
        %v1061 = vsel %vm1057, %v1052, %v914
        %v1062 = vsel %vm1057, %v1053, %v916
        %v1063 = vsel %vm1057, %v1054, %v918
        %v1064 = vsel %vm1057, %v1055, %v920
        %v1065 = vsel %vm1057, %v1056, %v922
        %v1067 = vrot.slane %v394, 1
        %v1068 = vrot.slane %v395, 1
        %v1069 = vsel %vm432, %v1067, %v1068
        %1070 = vrot.lane.b32.xlu0 %v738, 4
        %v1071 = vpop.permute.xlu0 %1070
        %1072 = vrot.lane.b32.xlu0 %v737, 4
        %v1073 = vpop.permute.xlu0 %1072
        %1074 = vrot.lane.b32.xlu0 %v741, 4
        %v1075 = vpop.permute.xlu0 %1074
        %1076 = vrot.lane.b32.xlu0 %v740, 4
        %v1077 = vpop.permute.xlu0 %1076
        %1078 = vrot.lane.b32.xlu0 %v744, 4
        %v1079 = vpop.permute.xlu0 %1078
        %1080 = vrot.lane.b32.xlu0 %v743, 4
        %v1081 = vpop.permute.xlu0 %1080
        %1082 = vrot.lane.b32.xlu0 %v747, 4
        %v1083 = vpop.permute.xlu0 %1082
        %1084 = vrot.lane.b32.xlu0 %v746, 4
        %v1085 = vpop.permute.xlu0 %1084
        %1086 = vrot.lane.b32.xlu0 %v750, 4
        %v1087 = vpop.permute.xlu0 %1086
        %1088 = vrot.lane.b32.xlu0 %v749, 4
        %v1089 = vpop.permute.xlu0 %1088
        %1090 = vrot.lane.b32.xlu0 %v753, 4
        %v1091 = vpop.permute.xlu0 %1090
        %1092 = vrot.lane.b32.xlu0 %v752, 4
        %v1093 = vpop.permute.xlu0 %1092
        %1094 = vrot.lane.b32.xlu0 %v854, 4
        %v1095 = vpop.permute.xlu0 %1094
        %1096 = vrot.lane.b32.xlu0 %v853, 4
        %v1097 = vpop.permute.xlu0 %1096
        %1098 = vrot.lane.b32.xlu0 %v1069, 4
        %v1099 = vpop.permute.xlu0 %1098
        %1100 = vrot.lane.b32.xlu0 %v1068, 4
        %v1101 = vpop.permute.xlu0 %1100
        %v1126 = vrot.slane %v396, 7
        %v1127 = vrot.slane %v398, 7
        %v1128 = vrot.slane %v400, 7
        %v1129 = vrot.slane %v402, 7
        %v1130 = vrot.slane %v404, 7
        %v1131 = vrot.slane %v406, 7
        %v1132 = vrot.slane %v408, 7
        %v1133 = vrot.slane %v410, 7
        %1134 = vrot.lane.b32.xlu0 %v1126, 8
        %v1135 = vpop.permute.xlu0 %1134
        %1136 = vrot.lane.b32.xlu0 %v1127, 8
        %v1137 = vpop.permute.xlu0 %1136
        %1138 = vrot.lane.b32.xlu0 %v1128, 8
        %v1139 = vpop.permute.xlu0 %1138
        %1140 = vrot.lane.b32.xlu0 %v1129, 8
        %v1141 = vpop.permute.xlu0 %1140
        %1142 = vrot.lane.b32.xlu0 %v1130, 8
        %v1143 = vpop.permute.xlu0 %1142
        %1144 = vrot.lane.b32.xlu0 %v1131, 8
        %v1145 = vpop.permute.xlu0 %1144
        %1146 = vrot.lane.b32.xlu0 %v1132, 8
        %v1147 = vpop.permute.xlu0 %1146
        %1148 = vrot.lane.b32.xlu0 %v1133, 8
        %v1149 = vpop.permute.xlu0 %1148
        %1166 = vrot.lane.b32.xlu0 %v396, 12
        %v1167 = vpop.permute.xlu0 %1166
        %1168 = vrot.lane.b32.xlu0 %v397, 12
        %v1169 = vpop.permute.xlu0 %1168
        %1170 = vrot.lane.b32.xlu0 %v398, 12
        %v1171 = vpop.permute.xlu0 %1170
        %1172 = vrot.lane.b32.xlu0 %v399, 12
        %v1173 = vpop.permute.xlu0 %1172
        %1174 = vrot.lane.b32.xlu0 %v400, 12
        %v1175 = vpop.permute.xlu0 %1174
        %1176 = vrot.lane.b32.xlu0 %v401, 12
        %v1177 = vpop.permute.xlu0 %1176
        %1178 = vrot.lane.b32.xlu0 %v402, 12
        %v1179 = vpop.permute.xlu0 %1178
        %1180 = vrot.lane.b32.xlu0 %v403, 12
        %v1181 = vpop.permute.xlu0 %1180
        %1182 = vrot.lane.b32.xlu0 %v404, 12
        %v1183 = vpop.permute.xlu0 %1182
        %1184 = vrot.lane.b32.xlu0 %v405, 12
        %v1185 = vpop.permute.xlu0 %1184
        %1186 = vrot.lane.b32.xlu0 %v406, 12
        %v1187 = vpop.permute.xlu0 %1186
        %1188 = vrot.lane.b32.xlu0 %v407, 12
        %v1189 = vpop.permute.xlu0 %1188
        %1190 = vrot.lane.b32.xlu0 %v408, 12
        %v1191 = vpop.permute.xlu0 %1190
        %1192 = vrot.lane.b32.xlu0 %v409, 12
        %v1193 = vpop.permute.xlu0 %1192
        %1194 = vrot.lane.b32.xlu0 %v410, 12
        %v1195 = vpop.permute.xlu0 %1194
        %1196 = vrot.lane.b32.xlu0 %v411, 12
        %v1197 = vpop.permute.xlu0 %1196
        %v1214 = vrot.slane %v396, 1
        %v1215 = vrot.slane %v397, 1
        %v1216 = vsel %vm432, %v1214, %v1215
        %v1217 = vrot.slane %v398, 1
        %v1218 = vrot.slane %v399, 1
        %v1219 = vsel %vm432, %v1217, %v1218
        %v1220 = vrot.slane %v400, 1
        %v1221 = vrot.slane %v401, 1
        %v1222 = vsel %vm432, %v1220, %v1221
        %v1223 = vrot.slane %v402, 1
        %v1224 = vrot.slane %v403, 1
        %v1225 = vsel %vm432, %v1223, %v1224
        %v1226 = vrot.slane %v404, 1
        %v1227 = vrot.slane %v405, 1
        %v1228 = vsel %vm432, %v1226, %v1227
        %v1229 = vrot.slane %v406, 1
        %v1230 = vrot.slane %v407, 1
        %v1231 = vsel %vm432, %v1229, %v1230
        %v1232 = vrot.slane %v408, 1
        %v1233 = vrot.slane %v409, 1
        %v1234 = vsel %vm432, %v1232, %v1233
        %v1235 = vrot.slane %v410, 1
        %v1236 = vrot.slane %v411, 1
        %v1237 = vsel %vm432, %v1235, %v1236
        %1238 = vrot.lane.b32.xlu0 %v1216, 16
        %v1239 = vpop.permute.xlu0 %1238
        %1240 = vrot.lane.b32.xlu0 %v1215, 16
        %v1241 = vpop.permute.xlu0 %1240
        %1242 = vrot.lane.b32.xlu0 %v1219, 16
        %v1243 = vpop.permute.xlu0 %1242
        %1244 = vrot.lane.b32.xlu0 %v1218, 16
        %v1245 = vpop.permute.xlu0 %1244
        %1246 = vrot.lane.b32.xlu0 %v1222, 16
        %v1247 = vpop.permute.xlu0 %1246
        %1248 = vrot.lane.b32.xlu0 %v1221, 16
        %v1249 = vpop.permute.xlu0 %1248
        %1250 = vrot.lane.b32.xlu0 %v1225, 16
        %v1251 = vpop.permute.xlu0 %1250
        %1252 = vrot.lane.b32.xlu0 %v1224, 16
        %v1253 = vpop.permute.xlu0 %1252
        %1254 = vrot.lane.b32.xlu0 %v1228, 16
        %v1255 = vpop.permute.xlu0 %1254
        %1256 = vrot.lane.b32.xlu0 %v1227, 16
        %v1257 = vpop.permute.xlu0 %1256
        %1258 = vrot.lane.b32.xlu0 %v1231, 16
        %v1259 = vpop.permute.xlu0 %1258
        %1260 = vrot.lane.b32.xlu0 %v1230, 16
        %v1261 = vpop.permute.xlu0 %1260
        %1262 = vrot.lane.b32.xlu0 %v1234, 16
        %v1263 = vpop.permute.xlu0 %1262
        %1264 = vrot.lane.b32.xlu0 %v1233, 16
        %v1265 = vpop.permute.xlu0 %1264
        %1266 = vrot.lane.b32.xlu0 %v1237, 16
        %v1267 = vpop.permute.xlu0 %1266
        %1268 = vrot.lane.b32.xlu0 %v1236, 16
        %v1269 = vpop.permute.xlu0 %1268
        %v1287 = vrot.slane %v412, 7
        %1288 = vrot.lane.b32.xlu0 %v1127, 20
        %v1289 = vpop.permute.xlu0 %1288
        %1290 = vrot.lane.b32.xlu0 %v1128, 20
        %v1291 = vpop.permute.xlu0 %1290
        %1292 = vrot.lane.b32.xlu0 %v1129, 20
        %v1293 = vpop.permute.xlu0 %1292
        %1294 = vrot.lane.b32.xlu0 %v1130, 20
        %v1295 = vpop.permute.xlu0 %1294
        %1296 = vrot.lane.b32.xlu0 %v1131, 20
        %v1297 = vpop.permute.xlu0 %1296
        %1298 = vrot.lane.b32.xlu0 %v1132, 20
        %v1299 = vpop.permute.xlu0 %1298
        %1300 = vrot.lane.b32.xlu0 %v1133, 20
        %v1301 = vpop.permute.xlu0 %1300
        %1302 = vrot.lane.b32.xlu0 %v1287, 20
        %v1303 = vpop.permute.xlu0 %1302
        %1313 = vrot.lane.b32.xlu0 %v398, 24
        %v1314 = vpop.permute.xlu0 %1313
        %1315 = vrot.lane.b32.xlu0 %v399, 24
        %v1316 = vpop.permute.xlu0 %1315
        %1317 = vrot.lane.b32.xlu0 %v400, 24
        %v1318 = vpop.permute.xlu0 %1317
        %1319 = vrot.lane.b32.xlu0 %v401, 24
        %v1320 = vpop.permute.xlu0 %1319
        %1321 = vrot.lane.b32.xlu0 %v402, 24
        %v1322 = vpop.permute.xlu0 %1321
        %1323 = vrot.lane.b32.xlu0 %v403, 24
        %v1324 = vpop.permute.xlu0 %1323
        %1325 = vrot.lane.b32.xlu0 %v404, 24
        %v1326 = vpop.permute.xlu0 %1325
        %1327 = vrot.lane.b32.xlu0 %v405, 24
        %v1328 = vpop.permute.xlu0 %1327
        %1329 = vrot.lane.b32.xlu0 %v406, 24
        %v1330 = vpop.permute.xlu0 %1329
        %1331 = vrot.lane.b32.xlu0 %v407, 24
        %v1332 = vpop.permute.xlu0 %1331
        %1333 = vrot.lane.b32.xlu0 %v408, 24
        %v1334 = vpop.permute.xlu0 %1333
        %1335 = vrot.lane.b32.xlu0 %v409, 24
        %v1336 = vpop.permute.xlu0 %1335
        %1337 = vrot.lane.b32.xlu0 %v410, 24
        %v1338 = vpop.permute.xlu0 %1337
        %1339 = vrot.lane.b32.xlu0 %v411, 24
        %v1340 = vpop.permute.xlu0 %1339
        %1341 = vrot.lane.b32.xlu0 %v412, 24
        %v1342 = vpop.permute.xlu0 %1341
        %1343 = vrot.lane.b32.xlu0 %v413, 24
        %v1344 = vpop.permute.xlu0 %1343
        %v1361 = vrot.slane %v412, 1
        %v1362 = vrot.slane %v413, 1
        %v1363 = vsel %vm432, %v1361, %v1362
        %1364 = vrot.lane.b32.xlu0 %v1219, 28
        %v1365 = vpop.permute.xlu0 %1364
        %1366 = vrot.lane.b32.xlu0 %v1218, 28
        %v1367 = vpop.permute.xlu0 %1366
        %1368 = vrot.lane.b32.xlu0 %v1222, 28
        %v1369 = vpop.permute.xlu0 %1368
        %1370 = vrot.lane.b32.xlu0 %v1221, 28
        %v1371 = vpop.permute.xlu0 %1370
        %1372 = vrot.lane.b32.xlu0 %v1225, 28
        %v1373 = vpop.permute.xlu0 %1372
        %1374 = vrot.lane.b32.xlu0 %v1224, 28
        %v1375 = vpop.permute.xlu0 %1374
        %1376 = vrot.lane.b32.xlu0 %v1228, 28
        %v1377 = vpop.permute.xlu0 %1376
        %1378 = vrot.lane.b32.xlu0 %v1227, 28
        %v1379 = vpop.permute.xlu0 %1378
        %1380 = vrot.lane.b32.xlu0 %v1231, 28
        %v1381 = vpop.permute.xlu0 %1380
        %1382 = vrot.lane.b32.xlu0 %v1230, 28
        %v1383 = vpop.permute.xlu0 %1382
        %1384 = vrot.lane.b32.xlu0 %v1234, 28
        %v1385 = vpop.permute.xlu0 %1384
        %1386 = vrot.lane.b32.xlu0 %v1233, 28
        %v1387 = vpop.permute.xlu0 %1386
        %1388 = vrot.lane.b32.xlu0 %v1237, 28
        %v1389 = vpop.permute.xlu0 %1388
        %1390 = vrot.lane.b32.xlu0 %v1236, 28
        %v1391 = vpop.permute.xlu0 %1390
        %1392 = vrot.lane.b32.xlu0 %v1363, 28
        %v1393 = vpop.permute.xlu0 %1392
        %1394 = vrot.lane.b32.xlu0 %v1362, 28
        %v1395 = vpop.permute.xlu0 %1394
        %v1413 = vrot.slane %v414, 7
        %1414 = vrot.lane.b32.xlu0 %v1128, 32
        %v1415 = vpop.permute.xlu0 %1414
        %1416 = vrot.lane.b32.xlu0 %v1129, 32
        %v1417 = vpop.permute.xlu0 %1416
        %1418 = vrot.lane.b32.xlu0 %v1130, 32
        %v1419 = vpop.permute.xlu0 %1418
        %1420 = vrot.lane.b32.xlu0 %v1131, 32
        %v1421 = vpop.permute.xlu0 %1420
        %1422 = vrot.lane.b32.xlu0 %v1132, 32
        %v1423 = vpop.permute.xlu0 %1422
        %1424 = vrot.lane.b32.xlu0 %v1133, 32
        %v1425 = vpop.permute.xlu0 %1424
        %1426 = vrot.lane.b32.xlu0 %v1287, 32
        %v1427 = vpop.permute.xlu0 %1426
        %1428 = vrot.lane.b32.xlu0 %v1413, 32
        %v1429 = vpop.permute.xlu0 %1428
        %1439 = vrot.lane.b32.xlu0 %v400, 36
        %v1440 = vpop.permute.xlu0 %1439
        %1441 = vrot.lane.b32.xlu0 %v401, 36
        %v1442 = vpop.permute.xlu0 %1441
        %1443 = vrot.lane.b32.xlu0 %v402, 36
        %v1444 = vpop.permute.xlu0 %1443
        %1445 = vrot.lane.b32.xlu0 %v403, 36
        %v1446 = vpop.permute.xlu0 %1445
        %1447 = vrot.lane.b32.xlu0 %v404, 36
        %v1448 = vpop.permute.xlu0 %1447
        %1449 = vrot.lane.b32.xlu0 %v405, 36
        %v1450 = vpop.permute.xlu0 %1449
        %1451 = vrot.lane.b32.xlu0 %v406, 36
        %v1452 = vpop.permute.xlu0 %1451
        %1453 = vrot.lane.b32.xlu0 %v407, 36
        %v1454 = vpop.permute.xlu0 %1453
        %1455 = vrot.lane.b32.xlu0 %v408, 36
        %v1456 = vpop.permute.xlu0 %1455
        %1457 = vrot.lane.b32.xlu0 %v409, 36
        %v1458 = vpop.permute.xlu0 %1457
        %1459 = vrot.lane.b32.xlu0 %v410, 36
        %v1460 = vpop.permute.xlu0 %1459
        %1461 = vrot.lane.b32.xlu0 %v411, 36
        %v1462 = vpop.permute.xlu0 %1461
        %1463 = vrot.lane.b32.xlu0 %v412, 36
        %v1464 = vpop.permute.xlu0 %1463
        %1465 = vrot.lane.b32.xlu0 %v413, 36
        %v1466 = vpop.permute.xlu0 %1465
        %1467 = vrot.lane.b32.xlu0 %v414, 36
        %v1468 = vpop.permute.xlu0 %1467
        %1469 = vrot.lane.b32.xlu0 %v415, 36
        %v1470 = vpop.permute.xlu0 %1469
        %v1487 = vrot.slane %v414, 1
        %v1488 = vrot.slane %v415, 1
        %v1489 = vsel %vm432, %v1487, %v1488
        %1490 = vrot.lane.b32.xlu0 %v1222, 40
        %v1491 = vpop.permute.xlu0 %1490
        %1492 = vrot.lane.b32.xlu0 %v1221, 40
        %v1493 = vpop.permute.xlu0 %1492
        %1494 = vrot.lane.b32.xlu0 %v1225, 40
        %v1495 = vpop.permute.xlu0 %1494
        %1496 = vrot.lane.b32.xlu0 %v1224, 40
        %v1497 = vpop.permute.xlu0 %1496
        %1498 = vrot.lane.b32.xlu0 %v1228, 40
        %v1499 = vpop.permute.xlu0 %1498
        %1500 = vrot.lane.b32.xlu0 %v1227, 40
        %v1501 = vpop.permute.xlu0 %1500
        %1502 = vrot.lane.b32.xlu0 %v1231, 40
        %v1503 = vpop.permute.xlu0 %1502
        %1504 = vrot.lane.b32.xlu0 %v1230, 40
        %v1505 = vpop.permute.xlu0 %1504
        %1506 = vrot.lane.b32.xlu0 %v1234, 40
        %v1507 = vpop.permute.xlu0 %1506
        %1508 = vrot.lane.b32.xlu0 %v1233, 40
        %v1509 = vpop.permute.xlu0 %1508
        %1510 = vrot.lane.b32.xlu0 %v1237, 40
        %v1511 = vpop.permute.xlu0 %1510
        %1512 = vrot.lane.b32.xlu0 %v1236, 40
        %v1513 = vpop.permute.xlu0 %1512
        %1514 = vrot.lane.b32.xlu0 %v1363, 40
        %v1515 = vpop.permute.xlu0 %1514
        %1516 = vrot.lane.b32.xlu0 %v1362, 40
        %v1517 = vpop.permute.xlu0 %1516
        %1518 = vrot.lane.b32.xlu0 %v1489, 40
        %v1519 = vpop.permute.xlu0 %1518
        %1520 = vrot.lane.b32.xlu0 %v1488, 40
        %v1521 = vpop.permute.xlu0 %1520
        %v1538 = vsel %vm931, %v380, %v1071
        %v1539 = vsel %vm931, %v381, %v1073
        %v1540 = vsel %vm931, %v382, %v1075
        %v1541 = vsel %vm931, %v383, %v1077
        %v1542 = vsel %vm931, %v384, %v1079
        %v1543 = vsel %vm931, %v385, %v1081
        %v1544 = vsel %vm931, %v386, %v1083
        %v1545 = vsel %vm931, %v387, %v1085
        %v1546 = vsel %vm931, %v388, %v1087
        %v1547 = vsel %vm931, %v389, %v1089
        %v1548 = vsel %vm931, %v390, %v1091
        %v1549 = vsel %vm931, %v391, %v1093
        %v1550 = vsel %vm931, %v392, %v1095
        %v1551 = vsel %vm931, %v393, %v1097
        %v1552 = vsel %vm931, %v394, %v1099
        %v1553 = vsel %vm931, %v395, %v1101
        %v1554 = vsel %vm940, %v1538, %v1135
        %v1555 = vsel %vm940, %v1539, %v1135
        %v1556 = vsel %vm940, %v1540, %v1137
        %v1557 = vsel %vm940, %v1541, %v1137
        %v1558 = vsel %vm940, %v1542, %v1139
        %v1559 = vsel %vm940, %v1543, %v1139
        %v1560 = vsel %vm940, %v1544, %v1141
        %v1561 = vsel %vm940, %v1545, %v1141
        %v1562 = vsel %vm940, %v1546, %v1143
        %v1563 = vsel %vm940, %v1547, %v1143
        %v1564 = vsel %vm940, %v1548, %v1145
        %v1565 = vsel %vm940, %v1549, %v1145
        %v1566 = vsel %vm940, %v1550, %v1147
        %v1567 = vsel %vm940, %v1551, %v1147
        %v1568 = vsel %vm940, %v1552, %v1149
        %v1569 = vsel %vm940, %v1553, %v1149
        %v1570 = vsel %vm949, %v1554, %v1167
        %v1571 = vsel %vm949, %v1555, %v1169
        %v1572 = vsel %vm949, %v1556, %v1171
        %v1573 = vsel %vm949, %v1557, %v1173
        %v1574 = vsel %vm949, %v1558, %v1175
        %v1575 = vsel %vm949, %v1559, %v1177
        %v1576 = vsel %vm949, %v1560, %v1179
        %v1577 = vsel %vm949, %v1561, %v1181
        %v1578 = vsel %vm949, %v1562, %v1183
        %v1579 = vsel %vm949, %v1563, %v1185
        %v1580 = vsel %vm949, %v1564, %v1187
        %v1581 = vsel %vm949, %v1565, %v1189
        %v1582 = vsel %vm949, %v1566, %v1191
        %v1583 = vsel %vm949, %v1567, %v1193
        %v1584 = vsel %vm949, %v1568, %v1195
        %v1585 = vsel %vm949, %v1569, %v1197
        %v1586 = vsel %vm958, %v1570, %v1239
        %v1587 = vsel %vm958, %v1571, %v1241
        %v1588 = vsel %vm958, %v1572, %v1243
        %v1589 = vsel %vm958, %v1573, %v1245
        %v1590 = vsel %vm958, %v1574, %v1247
        %v1591 = vsel %vm958, %v1575, %v1249
        %v1592 = vsel %vm958, %v1576, %v1251
        %v1593 = vsel %vm958, %v1577, %v1253
        %v1594 = vsel %vm958, %v1578, %v1255
        %v1595 = vsel %vm958, %v1579, %v1257
        %v1596 = vsel %vm958, %v1580, %v1259
        %v1597 = vsel %vm958, %v1581, %v1261
        %v1598 = vsel %vm958, %v1582, %v1263
        %v1599 = vsel %vm958, %v1583, %v1265
        %v1600 = vsel %vm958, %v1584, %v1267
        %v1601 = vsel %vm958, %v1585, %v1269
        %v1602 = vsel %vm967, %v1586, %v1289
        %v1603 = vsel %vm967, %v1587, %v1289
        %v1604 = vsel %vm967, %v1588, %v1291
        %v1605 = vsel %vm967, %v1589, %v1291
        %v1606 = vsel %vm967, %v1590, %v1293
        %v1607 = vsel %vm967, %v1591, %v1293
        %v1608 = vsel %vm967, %v1592, %v1295
        %v1609 = vsel %vm967, %v1593, %v1295
        %v1610 = vsel %vm967, %v1594, %v1297
        %v1611 = vsel %vm967, %v1595, %v1297
        %v1612 = vsel %vm967, %v1596, %v1299
        %v1613 = vsel %vm967, %v1597, %v1299
        %v1614 = vsel %vm967, %v1598, %v1301
        %v1615 = vsel %vm967, %v1599, %v1301
        %v1616 = vsel %vm967, %v1600, %v1303
        %v1617 = vsel %vm967, %v1601, %v1303
        %v1618 = vsel %vm976, %v1602, %v1314
        %v1619 = vsel %vm976, %v1603, %v1316
        %v1620 = vsel %vm976, %v1604, %v1318
        %v1621 = vsel %vm976, %v1605, %v1320
        %v1622 = vsel %vm976, %v1606, %v1322
        %v1623 = vsel %vm976, %v1607, %v1324
        %v1624 = vsel %vm976, %v1608, %v1326
        %v1625 = vsel %vm976, %v1609, %v1328
        %v1626 = vsel %vm976, %v1610, %v1330
        %v1627 = vsel %vm976, %v1611, %v1332
        %v1628 = vsel %vm976, %v1612, %v1334
        %v1629 = vsel %vm976, %v1613, %v1336
        %v1630 = vsel %vm976, %v1614, %v1338
        %v1631 = vsel %vm976, %v1615, %v1340
        %v1632 = vsel %vm976, %v1616, %v1342
        %v1633 = vsel %vm976, %v1617, %v1344
        %v1634 = vsel %vm985, %v1618, %v1365
        %v1635 = vsel %vm985, %v1619, %v1367
        %v1636 = vsel %vm985, %v1620, %v1369
        %v1637 = vsel %vm985, %v1621, %v1371
        %v1638 = vsel %vm985, %v1622, %v1373
        %v1639 = vsel %vm985, %v1623, %v1375
        %v1640 = vsel %vm985, %v1624, %v1377
        %v1641 = vsel %vm985, %v1625, %v1379
        %v1642 = vsel %vm985, %v1626, %v1381
        %v1643 = vsel %vm985, %v1627, %v1383
        %v1644 = vsel %vm985, %v1628, %v1385
        %v1645 = vsel %vm985, %v1629, %v1387
        %v1646 = vsel %vm985, %v1630, %v1389
        %v1647 = vsel %vm985, %v1631, %v1391
        %v1648 = vsel %vm985, %v1632, %v1393
        %v1649 = vsel %vm985, %v1633, %v1395
        %v1650 = vsel %vm994, %v1634, %v1415
        %v1651 = vsel %vm994, %v1635, %v1415
        %v1652 = vsel %vm994, %v1636, %v1417
        %v1653 = vsel %vm994, %v1637, %v1417
        %v1654 = vsel %vm994, %v1638, %v1419
        %v1655 = vsel %vm994, %v1639, %v1419
        %v1656 = vsel %vm994, %v1640, %v1421
        %v1657 = vsel %vm994, %v1641, %v1421
        %v1658 = vsel %vm994, %v1642, %v1423
        %v1659 = vsel %vm994, %v1643, %v1423
        %v1660 = vsel %vm994, %v1644, %v1425
        %v1661 = vsel %vm994, %v1645, %v1425
        %v1662 = vsel %vm994, %v1646, %v1427
        %v1663 = vsel %vm994, %v1647, %v1427
        %v1664 = vsel %vm994, %v1648, %v1429
        %v1665 = vsel %vm994, %v1649, %v1429
        %v1666 = vsel %vm1003, %v1650, %v1440
        %v1667 = vsel %vm1003, %v1651, %v1442
        %v1668 = vsel %vm1003, %v1652, %v1444
        %v1669 = vsel %vm1003, %v1653, %v1446
        %v1670 = vsel %vm1003, %v1654, %v1448
        %v1671 = vsel %vm1003, %v1655, %v1450
        %v1672 = vsel %vm1003, %v1656, %v1452
        %v1673 = vsel %vm1003, %v1657, %v1454
        %v1674 = vsel %vm1003, %v1658, %v1456
        %v1675 = vsel %vm1003, %v1659, %v1458
        %v1676 = vsel %vm1003, %v1660, %v1460
        %v1677 = vsel %vm1003, %v1661, %v1462
        %v1678 = vsel %vm1003, %v1662, %v1464
        %v1679 = vsel %vm1003, %v1663, %v1466
        %v1680 = vsel %vm1003, %v1664, %v1468
        %v1681 = vsel %vm1003, %v1665, %v1470
        %v1682 = vsel %vm1012, %v1666, %v1491
        %v1683 = vsel %vm1012, %v1667, %v1493
        %v1684 = vsel %vm1012, %v1668, %v1495
        %v1685 = vsel %vm1012, %v1669, %v1497
        %v1686 = vsel %vm1012, %v1670, %v1499
        %v1687 = vsel %vm1012, %v1671, %v1501
        %v1688 = vsel %vm1012, %v1672, %v1503
        %v1689 = vsel %vm1012, %v1673, %v1505
        %v1690 = vsel %vm1012, %v1674, %v1507
        %v1691 = vsel %vm1012, %v1675, %v1509
        %v1692 = vsel %vm1012, %v1676, %v1511
        %v1693 = vsel %vm1012, %v1677, %v1513
        %v1694 = vsel %vm1012, %v1678, %v1515
        %v1695 = vsel %vm1012, %v1679, %v1517
        %v1696 = vsel %vm1012, %v1680, %v1519
        %v1697 = vsel %vm1012, %v1681, %v1521
        %v1714 = vrot.slane %v1682, 1
        %v1715 = vrot.slane %v1683, 1
        %v1716 = vsel %vm432, %v1714, %v1715
        %v1717 = vrot.slane %v1684, 1
        %v1718 = vrot.slane %v1685, 1
        %v1719 = vsel %vm432, %v1717, %v1718
        %v1720 = vrot.slane %v1686, 1
        %v1721 = vrot.slane %v1687, 1
        %v1722 = vsel %vm432, %v1720, %v1721
        %v1723 = vrot.slane %v1688, 1
        %v1724 = vrot.slane %v1689, 1
        %v1725 = vsel %vm432, %v1723, %v1724
        %v1726 = vrot.slane %v1690, 1
        %v1727 = vrot.slane %v1691, 1
        %v1728 = vsel %vm432, %v1726, %v1727
        %v1729 = vrot.slane %v1692, 1
        %v1730 = vrot.slane %v1693, 1
        %v1731 = vsel %vm432, %v1729, %v1730
        %v1732 = vrot.slane %v1694, 1
        %v1733 = vrot.slane %v1695, 1
        %v1734 = vsel %vm432, %v1732, %v1733
        %v1735 = vrot.slane %v1696, 1
        %v1736 = vrot.slane %v1697, 1
        %v1737 = vsel %vm432, %v1735, %v1736
        %1738 = vrot.lane.b32.xlu0 %v1716, 64
        %v1739 = vpop.permute.xlu0 %1738
        %1740 = vrot.lane.b32.xlu0 %v1719, 64
        %v1741 = vpop.permute.xlu0 %1740
        %1742 = vrot.lane.b32.xlu0 %v1722, 64
        %v1743 = vpop.permute.xlu0 %1742
        %1744 = vrot.lane.b32.xlu0 %v1725, 64
        %v1745 = vpop.permute.xlu0 %1744
        %1746 = vrot.lane.b32.xlu0 %v1728, 64
        %v1747 = vpop.permute.xlu0 %1746
        %1748 = vrot.lane.b32.xlu0 %v1731, 64
        %v1749 = vpop.permute.xlu0 %1748
        %1750 = vrot.lane.b32.xlu0 %v1734, 64
        %v1751 = vpop.permute.xlu0 %1750
        %1752 = vrot.lane.b32.xlu0 %v1737, 64
        %v1753 = vpop.permute.xlu0 %1752
        %vm1762 = vcmask 523264
        %v1763 = vsel %vm1762, %v1058, %v1739
        %v1764 = vsel %vm1762, %v1059, %v1741
        %v1765 = vsel %vm1762, %v1060, %v1743
        %v1766 = vsel %vm1762, %v1061, %v1745
        %v1767 = vsel %vm1762, %v1062, %v1747
        %v1768 = vsel %vm1762, %v1063, %v1749
        %v1769 = vsel %vm1762, %v1064, %v1751
        %v1770 = vsel %vm1762, %v1065, %v1753
        %v1771 = vld [vmem:[%s3] sm:$0xff]
        %v1772 = vld [vmem:[%s3 + $0x8] sm:$0xff]
        %v1773 = vld [vmem:[%s3 + $0x10] sm:$0xff]
        %v1774 = vld [vmem:[%s3 + $0x18] sm:$0xff]
        %v1775 = vld [vmem:[%s3 + $0x20] sm:$0xff]
        %v1776 = vld [vmem:[%s3 + $0x28] sm:$0xff]
        %v1777 = vld [vmem:[%s3 + $0x30] sm:$0xff]
        %v1778 = vld [vmem:[%s3 + $0x38] sm:$0xff]
        %v1779 = vld [vmem:[%s3 + $0x40] sm:$0xff]
        %v1780 = vld [vmem:[%s3 + $0x48] sm:$0xff]
        %v1781 = vld [vmem:[%s3 + $0x50] sm:$0xff]
        %v1782 = vld [vmem:[%s3 + $0x58] sm:$0xff]
        %v1783 = vld [vmem:[%s3 + $0x60] sm:$0xff]
        %v1784 = vld [vmem:[%s3 + $0x68] sm:$0xf]
        %v1785 = vld [vmem:[#allocation2] sm:$0x1]
        %v1787 = vlaneseq
        %v1788 = vshrl.u32 %v1787, 7
        %v1789 = vsub.s32 0, %v1788
        %v1790 = vrot.slane %v1785, %v1789
        %vm1792 = vcmask 883712
        %v1794 = vsel %vm1792, %v1763, 0
        %v1797 = vsel %vm1792, %v1764, 0
        %v1800 = vsel %vm1792, %v1765, 0
        %v1803 = vsel %vm1792, %v1766, 0
        %v1806 = vsel %vm1792, %v1767, 0
        %v1809 = vsel %vm1792, %v1768, 0
        %v1812 = vsel %vm1792, %v1769, 0
        %v1815 = vsel %vm1792, %v1770, 0
        %vm1817 = vcmask 1043456
        %v1819 = vsel %vm1817, %v1784, 0
        %1821 = vmatprep.subr.mxu0 0.0
        %1822 = vmatpush1.msra.mxu0 0.0
        %1823 = vmatprep.subr.mxu0 0.0
        %1824 = vmatpush1.msra.mxu0 0.0
        %1825 = vmatprep.subr.mxu0 0.0
        %1826 = vmatpush1.msra.mxu0 %v1819
        %1827 = vmatprep.subr.mxu0 0.0
        %1828 = vmatpush1.msra.mxu0 %v1783
        %1829 = vmatprep.subr.mxu0 0.0
        %1830 = vmatpush1.msra.mxu0 %v1782
        %1831 = vmatprep.subr.mxu0 0.0
        %1832 = vmatpush1.msra.mxu0 %v1781
        %1833 = vmatprep.subr.mxu0 0.0
        %1834 = vmatpush1.msra.mxu0 %v1780
        %1835 = vmatprep.subr.mxu0 0.0
        %1836 = vmatpush1.msra.mxu0 %v1779
        %1837 = vmatprep.subr.mxu0 0.0
        %1838 = vmatpush1.msra.mxu0 %v1778
        %1839 = vmatprep.subr.mxu0 0.0
        %1840 = vmatpush1.msra.mxu0 %v1777
        %1841 = vmatprep.subr.mxu0 0.0
        %1842 = vmatpush1.msra.mxu0 %v1776
        %1843 = vmatprep.subr.mxu0 0.0
        %1844 = vmatpush1.msra.mxu0 %v1775
        %1845 = vmatprep.subr.mxu0 0.0
        %1846 = vmatpush1.msra.mxu0 %v1774
        %1847 = vmatprep.subr.mxu0 0.0
        %1848 = vmatpush1.msra.mxu0 %v1773
        %1849 = vmatprep.subr.mxu0 0.0
        %1850 = vmatpush1.msra.mxu0 %v1772
        %1851 = vmatprep.subr.mxu0 0.0
        %1852 = vmatpush1.msra.mxu0 %v1771
        %1853 = vmatprep.subr.mxu0 0.0
        %1854 = vmatpush2.msra.mxu0 0.0
        %1855 = vmatprep.subr.mxu0 0.0
        %1856 = vmatpush2.msra.mxu0 0.0
        %1857 = vmatprep.subr.mxu0 0.0
        %1858 = vmatpush2.msra.mxu0 0.0
        %1859 = vmatprep.subr.mxu0 0.0
        %1860 = vmatpush2.msra.mxu0 0.0
        %1861 = vmatprep.subr.mxu0 0.0
        %1862 = vmatpush2.msra.mxu0 0.0
        %1863 = vmatprep.subr.mxu0 0.0
        %1864 = vmatpush2.msra.mxu0 0.0
        %1865 = vmatprep.subr.mxu0 0.0
        %1866 = vmatpush2.msra.mxu0 0.0
        %1867 = vmatprep.subr.mxu0 0.0
        %1868 = vmatpush2.msra.mxu0 0.0
        %1869 = vmatprep.subr.mxu0 0.0
        %1870 = vmatpush2.msra.mxu0 0.0
        %1871 = vmatprep.subr.mxu0 0.0
        %1872 = vmatpush2.msra.mxu0 0.0
        %1873 = vmatprep.subr.mxu0 0.0
        %1874 = vmatpush2.msra.mxu0 0.0
        %1875 = vmatprep.subr.mxu0 0.0
        %1876 = vmatpush2.msra.mxu0 0.0
        %1877 = vmatprep.subr.mxu0 0.0
        %1878 = vmatpush2.msra.mxu0 0.0
        %1879 = vmatprep.subr.mxu0 0.0
        %1880 = vmatpush2.msra.mxu0 0.0
        %1881 = vmatprep.subr.mxu0 0.0
        %1882 = vmatpush2.msra.mxu0 0.0
        %1883 = vmatprep.subr.mxu0 0.0
        %1884 = vmatpush2.msra.mxu0 0.0
        %1885 = vmatprep.mubr.f32.mxu0 0.0
        %1886 = vmatmul.mubr.f32.gmra.mxu0 %v1794
        %v1887 = vpop.f32.mrf.mxu0
        %v1888 = vadd.f32 %v1790, %v1887
        %v1889 = vpop.f32.mrf.mxu0
        %1890 = vmatprep.mubr.f32.mxu0 0.0
        %1891 = vmatmul.mubr.f32.gmra.mxu0 %v1797
        %v1892 = vpop.f32.mrf.mxu0
        %v1893 = vadd.f32 %v1790, %v1892
        %v1894 = vpop.f32.mrf.mxu0
        %1895 = vmatprep.mubr.f32.mxu0 0.0
        %1896 = vmatmul.mubr.f32.gmra.mxu0 %v1800
        %v1897 = vpop.f32.mrf.mxu0
        %v1898 = vadd.f32 %v1790, %v1897
        %v1899 = vpop.f32.mrf.mxu0
        %1900 = vmatprep.mubr.f32.mxu0 0.0
        %1901 = vmatmul.mubr.f32.gmra.mxu0 %v1803
        %v1902 = vpop.f32.mrf.mxu0
        %v1903 = vadd.f32 %v1790, %v1902
        %v1904 = vpop.f32.mrf.mxu0
        %1905 = vmatprep.mubr.f32.mxu0 0.0
        %1906 = vmatmul.mubr.f32.gmra.mxu0 %v1806
        %v1907 = vpop.f32.mrf.mxu0
        %v1908 = vadd.f32 %v1790, %v1907
        %v1909 = vpop.f32.mrf.mxu0
        %1910 = vmatprep.mubr.f32.mxu0 0.0
        %1911 = vmatmul.mubr.f32.gmra.mxu0 %v1809
        %v1912 = vpop.f32.mrf.mxu0
        %v1913 = vadd.f32 %v1790, %v1912
        %v1914 = vpop.f32.mrf.mxu0
        %1915 = vmatprep.mubr.f32.mxu0 0.0
        %1916 = vmatmul.mubr.f32.gmra.mxu0 %v1812
        %v1917 = vpop.f32.mrf.mxu0
        %v1918 = vadd.f32 %v1790, %v1917
        %v1919 = vpop.f32.mrf.mxu0
        %1920 = vmatprep.mubr.f32.mxu0 0.0
        %1921 = vmatmul.mubr.f32.gmra.mxu0 %v1815
        %v1922 = vpop.f32.mrf.mxu0
        %v1923 = vadd.f32 %v1790, %v1922
        %v1924 = vpop.f32.mrf.mxu0
        %1925 = vdwg.mxu0
        %vm1926 = vcmp.ge.f32.partialorder %v1888, 0.0
        %vm1927 = vcmp.ge.f32.partialorder %v1893, 0.0
        %vm1928 = vcmp.ge.f32.partialorder %v1898, 0.0
        %vm1929 = vcmp.ge.f32.partialorder %v1903, 0.0
        %vm1930 = vcmp.ge.f32.partialorder %v1908, 0.0
        %vm1931 = vcmp.ge.f32.partialorder %v1913, 0.0
        %vm1932 = vcmp.ge.f32.partialorder %v1918, 0.0
        %vm1933 = vcmp.ge.f32.partialorder %v1923, 0.0
        %v1934 = vmul.f32 %v1888, 0.01
        %v1935 = vmul.f32 %v1893, 0.01
        %v1936 = vmul.f32 %v1898, 0.01
        %v1937 = vmul.f32 %v1903, 0.01
        %v1938 = vmul.f32 %v1908, 0.01
        %v1939 = vmul.f32 %v1913, 0.01
        %v1940 = vmul.f32 %v1918, 0.01
        %v1941 = vmul.f32 %v1923, 0.01
        %v1942 = vsel %vm1926, %v1888, %v1934
        %v1943 = vsel %vm1927, %v1893, %v1935
        %v1944 = vsel %vm1928, %v1898, %v1936
        %v1945 = vsel %vm1929, %v1903, %v1937
        %v1946 = vsel %vm1930, %v1908, %v1938
        %v1947 = vsel %vm1931, %v1913, %v1939
        %v1948 = vsel %vm1932, %v1918, %v1940
        %v1949 = vsel %vm1933, %v1923, %v1941
        %1950 = vst.msk [vmem:[%s355] sm:$0xff] %vm940, %v1942
        %1951 = vst.msk [vmem:[%s355 + $0x8] sm:$0xff] %vm940, %v1943
        %1952 = vst.msk [vmem:[%s355 + $0x10] sm:$0xff] %vm940, %v1944
        %1953 = vst.msk [vmem:[%s355 + $0x18] sm:$0xff] %vm940, %v1945
        %1954 = vst.msk [vmem:[%s355 + $0x20] sm:$0xff] %vm940, %v1946
        %1955 = vst.msk [vmem:[%s355 + $0x28] sm:$0xff] %vm940, %v1947
        %1956 = vst.msk [vmem:[%s355 + $0x30] sm:$0xff] %vm940, %v1948
        %1957 = vst.msk [vmem:[%s355 + $0x38] sm:$0xff] %vm940, %v1949
        %p1958 = scmp.lt.s32.totalorder %s21, 1
        %s1959 = scalar_select %p1958, %s21, 1
        %p1960 = scmp.lt.s32.totalorder %s22, 3
        %s1961 = scalar_select %p1960, %s22, 3
        %s1962 = smul.addr %s1961, 8
        %s1963 = smul.addr %s1959, 32
        %s1964 = sadd.s32 %s1962, %s1963
        %s1965 = smul.addr %s1964, 8
        %s1966 = scalar_lea.vmem %s5, %s1965
        // Predicated region
        $region45: #{de_conv_block_3d_pallas.3} parent=39 // pred_check
          %p1967 = pneg %p179
        $region46: #{de_conv_block_3d_pallas.3} parent=39 // pred_check_branch
          %1969 = sbr.rel (%p1967) target = $region48
        $region47: #{de_conv_block_3d_pallas.3} parent=39 // pred_region
          _
        $region48: #{de_conv_block_3d_pallas.3} parent=39 // pred_fallthru
          _
      $region40: #{de_conv_block_3d_pallas.3} parent=5 // pred_fallthru
        _
      %p1970 = scmp.le.s32.totalorder 2, %s12
      // Predicated region
      $region49: #{de_conv_block_3d_pallas.3} parent=5 // pred_check
        %p1971 = pneg %p1970
      $region50: #{de_conv_block_3d_pallas.3} parent=5 // pred_check_branch
        %1973 = sbr.rel (%p1971) target = $region52
      $region51: #{de_conv_block_3d_pallas.3} parent=5 // pred_region
        %s1974 = ssub.s32 %s12, 2
        // Predicated region
        $region53: #{de_conv_block_3d_pallas.3} parent=51 // pred_check
          %p1975 = pneg %p185
        $region54: #{de_conv_block_3d_pallas.3} parent=51 // pred_check_branch
          %1977 = sbr.rel (%p1975) target = $region56
        $region55: #{de_conv_block_3d_pallas.3} parent=51 // pred_region
          %p1978 = scmp.lt.s32.totalorder %s23, 1
          %s1979 = scalar_select %p1978, %s23, 1
          %p1980 = scmp.lt.s32.totalorder %s24, 3
          %s1981 = scalar_select %p1980, %s24, 3
          %s1982 = smul.addr %s1981, 8
          %s1983 = smul.addr %s1979, 32
          %s1984 = sadd.s32 %s1982, %s1983
          %s1985 = smul.addr %s1984, 8
          %s1986 = scalar_lea.vmem %s5, %s1985
        $region56: #{de_conv_block_3d_pallas.3} parent=51 // pred_fallthru
          _
      $region52: #{de_conv_block_3d_pallas.3} parent=5 // pred_fallthru
        _
    $region6: #{de_conv_block_3d_pallas.3} parent=1 // loop_footer
      %s16 = sadd.s32 1, %s12
    $region7: #{de_conv_block_3d_pallas.3} parent=1 // loop_footer_branch
      %11 = sbr.rel target = $region3
    $region8: #{de_conv_block_3d_pallas.3} parent=1 // loop_exit
      _
    %1987 = vsyncpa [#allocation3], 1
    %s1988 = scalar_lea.sflag [#allocation3], 1
    %1989 = vsyncpa %s1988, 1

// kernel: de_conv_block_3d_pallas.4
$region0: #{de_conv_block_3d_pallas.4}
  #allocation0 [shape = 'u32[]', space=smem, size = 0x4, offset = 0x4, fixed_abs, tag = 'smem constant byte address 0x4 - core index']
  #allocation1 [shape = 'u32[144,128]{1,0:T(1,128)}', space=vmem, size = 0x12000, scoped, tag = 'internal scratch']
  %s0 = inlined_call_operand.vmem [shape: f32[2,6,10,10,8], index: 0, kind: input, shape index: {}, may-alias: {0,1,2}]
  %s1 = inlined_call_operand.vmem [shape: f32[2,6,10,10,8], index: 1, kind: input, shape index: {}, may-alias: {0,1,2}]
  %s2 = inlined_call_operand.vmem [shape: f32[2,6,10,10,8], index: 2, kind: input, shape index: {}, may-alias: {0,1,2}]
  %s3 = inlined_call_operand.vmem [shape: f32[216,54], index: 3, kind: input, shape index: {}]
  %s4 = inlined_call_operand.hbm [shape: f32[1,54], index: 4, kind: input, shape index: {}]
  %s5 = inlined_call_operand.vmem [shape: f32[2,4,8,8,54], index: 5, kind: output, shape index: {}]
  %s6 = sld [smem:[#allocation0]]
  $region57: #{de_conv_block_3d_pallas.4} parent=0
    _
  %s8 = ssub.s32 1, %s6
  %s9 = scalar_select 0, %s8, %s6
  $region1: #{de_conv_block_3d_pallas.4} parent=0
    #allocation2 [shape = 'u8[512]{0}', space=vmem, size = 0x400, scoped, tag = 'input window, operand 4, single buffered']
    #allocation3 [shape = 's32[2]{0}', space=sflag, size = 0x8, scoped, tag = 'scoped memory for de_conv_block_3d_pallas.4']
    %10 = vsyncpa [#allocation3], 0
    loop: start=0, step=1, limit=10
    $region2: #{de_conv_block_3d_pallas.4} parent=1 // loop_pre_header
      _
    $region3: #{de_conv_block_3d_pallas.4} parent=1 // loop_header
      %s12 = sphi 0, %s16
      %p13 = scmp.ge.s32.totalorder %s12, 10
      %s19 = sphi 0, %s31
      %s20 = sphi 0, %s27
      %s21 = sphi 0, %s19
      %s22 = sphi 0, %s20
      %s23 = sphi 0, %s21
      %s24 = sphi 0, %s22
      %s36 = sphi 0, %s38
      %s39 = sphi 0, %s36
      %s40 = sphi 0, %s39
      %s56 = sphi 0, %s40
      %s66 = sphi 0, %s68
      %s69 = sphi 0, %s66
      %s70 = sphi 0, %s69
      %s86 = sphi 0, %s70
      %s96 = sphi 0, %s98
      %s99 = sphi 0, %s96
      %s100 = sphi 0, %s99
      %s116 = sphi 0, %s100
      %s120 = sphi 0, %s120
      %s122 = sphi 0, %s120
      %s123 = sphi 0, %s122
      %s137 = sphi 0, %s123
      %s141 = sphi 0, %s141
      %s143 = sphi 0, %s141
      %s144 = sphi 0, %s143
      %s158 = sphi 0, %s144
      %s166 = sphi 0, %s168
      %s169 = sphi 0, %s166
      %s170 = sphi 0, %s169
      %s186 = sphi 0, %s170
    $region4: #{de_conv_block_3d_pallas.4} parent=1 // loop_header_branch
      %15 = sbr.rel (%p13) target = $region8
    $region5: #{de_conv_block_3d_pallas.4} parent=1 // loop_body
      %s17 = ssub.s32 %s12, 1
      %s18 = ssub.s32 %s12, 2
      %s25 = sadd.s32 1, %s20
      %p26 = scmp.ge.s32.totalorder %s25, 4
      %s27 = scalar_select %p26, 0, %s25
      %s28 = sadd.s32 1, %s19
      %s29 = scalar_select %p26, %s28, %s19
      %p30 = scmp.ge.s32.totalorder %s29, 2
      %s31 = scalar_select %p30, 0, %s29
      %s32 = ssub.s32 %s19, %s31
      %s33 = ssub.s32 %s20, %s27
      %s34 = sor.u32 %s32, %s33
      %p35 = scmp.eq.s32.totalorder %s34, 0
      %s37 = sadd.s32 %s36, 1
      %s38 = scalar_select %p35, %s36, %s37
      %p41 = pneg %p35
      %p42 = scmp.eq.s32.totalorder %s12, 7
      %p43 = por %p41, %p42
      %p44 = scmp.ne.s32.totalorder %s36, %s39
      %p45 = scmp.eq.s32.totalorder %s12, 0
      %p46 = por %p44, %p45
      %p47 = scmp.ne.s32.totalorder %s36, %s39
      %p48 = scmp.eq.s32.totalorder %s17, 7
      %p49 = por %p47, %p48
      %p50 = scmp.ne.s32.totalorder %s39, %s40
      %p51 = scmp.eq.s32.totalorder %s17, 0
      %p52 = por %p50, %p51
      %p53 = scmp.ne.s32.totalorder %s39, %s40
      %p54 = scmp.eq.s32.totalorder %s18, 7
      %p55 = por %p53, %p54
      %p57 = scmp.ne.s32.totalorder %s40, %s56
      %p58 = scmp.eq.s32.totalorder %s18, 0
      %p59 = por %p57, %p58
      %s60 = sadd.s32 %s20, 1
      %s61 = sadd.s32 %s27, 1
      %s62 = ssub.s32 %s19, %s31
      %s63 = ssub.s32 %s60, %s61
      %s64 = sor.u32 %s62, %s63
      %p65 = scmp.eq.s32.totalorder %s64, 0
      %s67 = sadd.s32 %s66, 1
      %s68 = scalar_select %p65, %s66, %s67
      %p71 = pneg %p65
      %p72 = scmp.eq.s32.totalorder %s12, 7
      %p73 = por %p71, %p72
      %p74 = scmp.ne.s32.totalorder %s66, %s69
      %p75 = scmp.eq.s32.totalorder %s12, 0
      %p76 = por %p74, %p75
      %p77 = scmp.ne.s32.totalorder %s66, %s69
      %p78 = scmp.eq.s32.totalorder %s17, 7
      %p79 = por %p77, %p78
      %p80 = scmp.ne.s32.totalorder %s69, %s70
      %p81 = scmp.eq.s32.totalorder %s17, 0
      %p82 = por %p80, %p81
      %p83 = scmp.ne.s32.totalorder %s69, %s70
      %p84 = scmp.eq.s32.totalorder %s18, 7
      %p85 = por %p83, %p84
      %p87 = scmp.ne.s32.totalorder %s70, %s86
      %p88 = scmp.eq.s32.totalorder %s18, 0
      %p89 = por %p87, %p88
      %s90 = sadd.s32 %s20, 2
      %s91 = sadd.s32 %s27, 2
      %s92 = ssub.s32 %s19, %s31
      %s93 = ssub.s32 %s90, %s91
      %s94 = sor.u32 %s92, %s93
      %p95 = scmp.eq.s32.totalorder %s94, 0
      %s97 = sadd.s32 %s96, 1
      %s98 = scalar_select %p95, %s96, %s97
      %p101 = pneg %p95
      %p102 = scmp.eq.s32.totalorder %s12, 7
      %p103 = por %p101, %p102
      %p104 = scmp.ne.s32.totalorder %s96, %s99
      %p105 = scmp.eq.s32.totalorder %s12, 0
      %p106 = por %p104, %p105
      %p107 = scmp.ne.s32.totalorder %s96, %s99
      %p108 = scmp.eq.s32.totalorder %s17, 7
      %p109 = por %p107, %p108
      %p110 = scmp.ne.s32.totalorder %s99, %s100
      %p111 = scmp.eq.s32.totalorder %s17, 0
      %p112 = por %p110, %p111
      %p113 = scmp.ne.s32.totalorder %s99, %s100
      %p114 = scmp.eq.s32.totalorder %s18, 7
      %p115 = por %p113, %p114
      %p117 = scmp.ne.s32.totalorder %s100, %s116
      %p118 = scmp.eq.s32.totalorder %s18, 0
      %p119 = por %p117, %p118
      %s121 = sadd.s32 %s120, 1
      %p124 = scmp.eq.s32.totalorder %s12, 7
      %p125 = scmp.ne.s32.totalorder %s120, %s122
      %p126 = scmp.eq.s32.totalorder %s12, 0
      %p127 = por %p125, %p126
      %p128 = scmp.ne.s32.totalorder %s120, %s122
      %p129 = scmp.eq.s32.totalorder %s17, 7
      %p130 = por %p128, %p129
      %p131 = scmp.ne.s32.totalorder %s122, %s123
      %p132 = scmp.eq.s32.totalorder %s17, 0
      %p133 = por %p131, %p132
      %p134 = scmp.ne.s32.totalorder %s122, %s123
      %p135 = scmp.eq.s32.totalorder %s18, 7
      %p136 = por %p134, %p135
      %p138 = scmp.ne.s32.totalorder %s123, %s137
      %p139 = scmp.eq.s32.totalorder %s18, 0
      %p140 = por %p138, %p139
      %s142 = sadd.s32 %s141, 1
      %p145 = scmp.eq.s32.totalorder %s12, 7
      %p146 = scmp.ne.s32.totalorder %s141, %s143
      %p147 = scmp.eq.s32.totalorder %s12, 0
      %p148 = por %p146, %p147
      %p149 = scmp.ne.s32.totalorder %s141, %s143
      %p150 = scmp.eq.s32.totalorder %s17, 7
      %p151 = por %p149, %p150
      %p152 = scmp.ne.s32.totalorder %s143, %s144
      %p153 = scmp.eq.s32.totalorder %s17, 0
      %p154 = por %p152, %p153
      %p155 = scmp.ne.s32.totalorder %s143, %s144
      %p156 = scmp.eq.s32.totalorder %s18, 7
      %p157 = por %p155, %p156
      %p159 = scmp.ne.s32.totalorder %s144, %s158
      %p160 = scmp.eq.s32.totalorder %s18, 0
      %p161 = por %p159, %p160
      %s162 = ssub.s32 %s19, %s31
      %s163 = ssub.s32 %s20, %s27
      %s164 = sor.u32 %s162, %s163
      %p165 = scmp.eq.s32.totalorder %s164, 0
      %s167 = sadd.s32 %s166, 1
      %s168 = scalar_select %p165, %s166, %s167
      %p171 = pneg %p165
      %p172 = scmp.eq.s32.totalorder %s12, 7
      %p173 = por %p171, %p172
      %p174 = scmp.ne.s32.totalorder %s166, %s169
      %p175 = scmp.eq.s32.totalorder %s12, 0
      %p176 = por %p174, %p175
      %p177 = scmp.ne.s32.totalorder %s166, %s169
      %p178 = scmp.eq.s32.totalorder %s17, 7
      %p179 = por %p177, %p178
      %p180 = scmp.ne.s32.totalorder %s169, %s170
      %p181 = scmp.eq.s32.totalorder %s17, 0
      %p182 = por %p180, %p181
      %p183 = scmp.ne.s32.totalorder %s169, %s170
      %p184 = scmp.eq.s32.totalorder %s18, 7
      %p185 = por %p183, %p184
      %p187 = scmp.ne.s32.totalorder %s170, %s186
      %p188 = scmp.eq.s32.totalorder %s18, 0
      %p189 = por %p187, %p188
      %p190 = scmp.le.s32.totalorder 1, %s12
      %p191 = scmp.lt.s32.totalorder %s12, 9
      %p192 = pnand %p190, %p191
      %p193 = pneg %p192
      // Predicated region
      $region9: #{de_conv_block_3d_pallas.4} parent=5 // pred_check
        _
      $region10: #{de_conv_block_3d_pallas.4} parent=5 // pred_check_branch
        %195 = sbr.rel (%p192) target = $region12
      $region11: #{de_conv_block_3d_pallas.4} parent=5 // pred_region
        %s196 = ssub.s32 %s12, 1
        // Predicated region
        $region13: #{de_conv_block_3d_pallas.4} parent=11 // pred_check
          %p197 = pneg %p133
        $region14: #{de_conv_block_3d_pallas.4} parent=11 // pred_check_branch
          %199 = sbr.rel (%p197) target = $region16
        $region15: #{de_conv_block_3d_pallas.4} parent=11 // pred_region
          _
        $region16: #{de_conv_block_3d_pallas.4} parent=11 // pred_fallthru
          _
        // Predicated region
        $region17: #{de_conv_block_3d_pallas.4} parent=11 // pred_check
          %p200 = pneg %p154
        $region18: #{de_conv_block_3d_pallas.4} parent=11 // pred_check_branch
          %202 = sbr.rel (%p200) target = $region20
        $region19: #{de_conv_block_3d_pallas.4} parent=11 // pred_region
          %s204 = ssub.s32 16, 16
          %205 = vsyncadd [#allocation3], %s204
          %s207 = sshll.u32 [#allocation2], 4
          %s208 = int_to_ptr.vmem [resolvable:$true] %s207
          %210 = dma.hbm_to_vmem [thread:$0]  %s4, 16, %s208, [#allocation3]
        $region20: #{de_conv_block_3d_pallas.4} parent=11 // pred_fallthru
          _
      $region12: #{de_conv_block_3d_pallas.4} parent=5 // pred_fallthru
        _
      %p211 = scmp.lt.s32.totalorder %s12, 8
      // Predicated region
      $region21: #{de_conv_block_3d_pallas.4} parent=5 // pred_check
        %p212 = pneg %p211
      $region22: #{de_conv_block_3d_pallas.4} parent=5 // pred_check_branch
        %214 = sbr.rel (%p212) target = $region24
      $region23: #{de_conv_block_3d_pallas.4} parent=5 // pred_region
        // Predicated region
        $region25: #{de_conv_block_3d_pallas.4} parent=23 // pred_check
          %p215 = pneg %p46
        $region26: #{de_conv_block_3d_pallas.4} parent=23 // pred_check_branch
          %217 = sbr.rel (%p215) target = $region28
        $region27: #{de_conv_block_3d_pallas.4} parent=23 // pred_region
          %p218 = scmp.lt.s32.totalorder %s19, 1
          %s219 = scalar_select %p218, %s19, 1
          %p220 = scmp.lt.s32.totalorder %s20, 5
          %s221 = scalar_select %p220, %s20, 5
          %s222 = smul.addr %s221, 20
          %s223 = smul.addr %s219, 120
          %s224 = sadd.s32 %s222, %s223
          %s225 = smul.addr %s224, 8
          %s226 = scalar_lea.vmem %s0, %s225
        $region28: #{de_conv_block_3d_pallas.4} parent=23 // pred_fallthru
          _
        // Predicated region
        $region29: #{de_conv_block_3d_pallas.4} parent=23 // pred_check
          %p227 = pneg %p76
        $region30: #{de_conv_block_3d_pallas.4} parent=23 // pred_check_branch
          %229 = sbr.rel (%p227) target = $region32
        $region31: #{de_conv_block_3d_pallas.4} parent=23 // pred_region
          %s230 = sadd.s32 %s20, 1
          %p231 = scmp.lt.s32.totalorder %s19, 1
          %s232 = scalar_select %p231, %s19, 1
          %p233 = scmp.lt.s32.totalorder %s230, 5
          %s234 = scalar_select %p233, %s230, 5
          %s235 = smul.addr %s234, 20
          %s236 = smul.addr %s232, 120
          %s237 = sadd.s32 %s235, %s236
          %s238 = smul.addr %s237, 8
          %s239 = scalar_lea.vmem %s1, %s238
          %s240 = sadd.s32 %s20, 1
        $region32: #{de_conv_block_3d_pallas.4} parent=23 // pred_fallthru
          _
        // Predicated region
        $region33: #{de_conv_block_3d_pallas.4} parent=23 // pred_check
          %p241 = pneg %p106
        $region34: #{de_conv_block_3d_pallas.4} parent=23 // pred_check_branch
          %243 = sbr.rel (%p241) target = $region36
        $region35: #{de_conv_block_3d_pallas.4} parent=23 // pred_region
          %s244 = sadd.s32 %s20, 2
          %p245 = scmp.lt.s32.totalorder %s19, 1
          %s246 = scalar_select %p245, %s19, 1
          %p247 = scmp.lt.s32.totalorder %s244, 5
          %s248 = scalar_select %p247, %s244, 5
          %s249 = smul.addr %s248, 20
          %s250 = smul.addr %s246, 120
          %s251 = sadd.s32 %s249, %s250
          %s252 = smul.addr %s251, 8
          %s253 = scalar_lea.vmem %s2, %s252
          %s254 = sadd.s32 %s20, 2
        $region36: #{de_conv_block_3d_pallas.4} parent=23 // pred_fallthru
          _
      $region24: #{de_conv_block_3d_pallas.4} parent=5 // pred_fallthru
        _
      %p255 = scmp.le.s32.totalorder 1, %s12
      %p256 = scmp.lt.s32.totalorder %s12, 9
      %p257 = pnand %p255, %p256
      %p258 = pneg %p257
      // Predicated region
      $region37: #{de_conv_block_3d_pallas.4} parent=5 // pred_check
        _
      $region38: #{de_conv_block_3d_pallas.4} parent=5 // pred_check_branch
        %260 = sbr.rel (%p257) target = $region40
      $region39: #{de_conv_block_3d_pallas.4} parent=5 // pred_region
        %s261 = ssub.s32 %s12, 1
        // Predicated region
        $region41: #{de_conv_block_3d_pallas.4} parent=39 // pred_check
          %p262 = pneg %p154
        $region42: #{de_conv_block_3d_pallas.4} parent=39 // pred_check_branch
          %264 = sbr.rel (%p262) target = $region44
        $region43: #{de_conv_block_3d_pallas.4} parent=39 // pred_region
          %265 = dma.done [#allocation3], 16
        $region44: #{de_conv_block_3d_pallas.4} parent=39 // pred_fallthru
          _
        %p266 = scmp.lt.s32.totalorder %s21, 1
        %s267 = scalar_select %p266, %s21, 1
        %p268 = scmp.lt.s32.totalorder %s22, 5
        %s269 = scalar_select %p268, %s22, 5
        %s270 = smul.addr %s269, 20
        %s271 = smul.addr %s267, 120
        %s272 = sadd.s32 %s270, %s271
        %s273 = smul.addr %s272, 8
        %s274 = scalar_lea.vmem %s0, %s273
        %p275 = pneg %p52
        %p276 = pneg %p49
        %s277 = sadd.s32 %s22, 1
        %p278 = scmp.lt.s32.totalorder %s21, 1
        %s279 = scalar_select %p278, %s21, 1
        %p280 = scmp.lt.s32.totalorder %s277, 5
        %s281 = scalar_select %p280, %s277, 5
        %s282 = smul.addr %s281, 20
        %s283 = smul.addr %s279, 120
        %s284 = sadd.s32 %s282, %s283
        %s285 = smul.addr %s284, 8
        %s286 = scalar_lea.vmem %s1, %s285
        %p287 = pneg %p82
        %p288 = pneg %p79
        %s289 = sadd.s32 %s22, 2
        %p290 = scmp.lt.s32.totalorder %s21, 1
        %s291 = scalar_select %p290, %s21, 1
        %p292 = scmp.lt.s32.totalorder %s289, 5
        %s293 = scalar_select %p292, %s289, 5
        %s294 = smul.addr %s293, 20
        %s295 = smul.addr %s291, 120
        %s296 = sadd.s32 %s294, %s295
        %s297 = smul.addr %s296, 8
        %s298 = scalar_lea.vmem %s2, %s297
        %p299 = pneg %p112
        %p300 = pneg %p109
        %p301 = pneg %p133
        %p302 = pneg %p130
        %p303 = pneg %p154
        %p304 = pneg %p151
        %p305 = pneg %p182
        %p306 = pneg %p179
        %p307 = scmp.lt.s32.totalorder %s21, 1
        %s308 = scalar_select %p307, %s21, 1
        %p309 = scmp.lt.s32.totalorder %s22, 3
        %s310 = scalar_select %p309, %s22, 3
        %s311 = smul.addr %s310, 8
        %s312 = smul.addr %s308, 32
        %s313 = sadd.s32 %s311, %s312
        %s314 = smul.addr %s313, 8
        %s315 = scalar_lea.vmem %s5, %s314
        %p316 = scmp.lt.s32.totalorder %s21, 1
        %s317 = scalar_select %p316, %s21, 1
        %p318 = scmp.lt.s32.totalorder %s22, 5
        %s319 = scalar_select %p318, %s22, 5
        %s320 = smul.addr %s319, 20
        %s321 = smul.addr %s317, 120
        %s322 = sadd.s32 %s320, %s321
        %s323 = smul.addr %s322, 8
        %s324 = scalar_lea.vmem %s0, %s323
        %s325 = sadd.s32 %s22, 1
        %p326 = scmp.lt.s32.totalorder %s21, 1
        %s327 = scalar_select %p326, %s21, 1
        %p328 = scmp.lt.s32.totalorder %s325, 5
        %s329 = scalar_select %p328, %s325, 5
        %s330 = smul.addr %s329, 20
        %s331 = smul.addr %s327, 120
        %s332 = sadd.s32 %s330, %s331
        %s333 = smul.addr %s332, 8
        %s334 = scalar_lea.vmem %s1, %s333
        %s335 = sadd.s32 %s22, 1
        %s336 = sadd.s32 %s22, 2
        %p337 = scmp.lt.s32.totalorder %s21, 1
        %s338 = scalar_select %p337, %s21, 1
        %p339 = scmp.lt.s32.totalorder %s336, 5
        %s340 = scalar_select %p339, %s336, 5
        %s341 = smul.addr %s340, 20
        %s342 = smul.addr %s338, 120
        %s343 = sadd.s32 %s341, %s342
        %s344 = smul.addr %s343, 8
        %s345 = scalar_lea.vmem %s2, %s344
        %s346 = sadd.s32 %s22, 2
        %p347 = scmp.lt.s32.totalorder %s21, 1
        %s348 = scalar_select %p347, %s21, 1
        %p349 = scmp.lt.s32.totalorder %s22, 3
        %s350 = scalar_select %p349, %s22, 3
        %s351 = smul.addr %s350, 8
        %s352 = smul.addr %s348, 32
        %s353 = sadd.s32 %s351, %s352
        %s354 = smul.addr %s353, 8
        %s355 = scalar_lea.vmem %s5, %s354
        %v356 = vld [vmem:[%s324] sm:$0xff]
        %v357 = vld [vmem:[%s324 + $0x8] sm:$0x3]
        %v358 = vld [vmem:[%s324 + $0x10] sm:$0xff]
        %v359 = vld [vmem:[%s324 + $0x18] sm:$0x3]
        %v360 = vld [vmem:[%s324 + $0x20] sm:$0xff]
        %v361 = vld [vmem:[%s324 + $0x28] sm:$0x3]
        %v362 = vld [vmem:[%s324 + $0x30] sm:$0xff]
        %v363 = vld [vmem:[%s324 + $0x38] sm:$0x3]
        %v364 = vld [vmem:[%s324 + $0x40] sm:$0xff]
        %v365 = vld [vmem:[%s324 + $0x48] sm:$0x3]
        %v366 = vld [vmem:[%s324 + $0x50] sm:$0xff]
        %v367 = vld [vmem:[%s324 + $0x58] sm:$0x3]
        %v368 = vld [vmem:[%s324 + $0x60] sm:$0xff]
        %v369 = vld [vmem:[%s324 + $0x68] sm:$0x3]
        %v370 = vld [vmem:[%s324 + $0x70] sm:$0xff]
        %v371 = vld [vmem:[%s324 + $0x78] sm:$0x3]
        %v372 = vld [vmem:[%s324 + $0x80] sm:$0xff]
        %v373 = vld [vmem:[%s324 + $0x88] sm:$0x3]
        %v374 = vld [vmem:[%s324 + $0x90] sm:$0xff]
        %v375 = vld [vmem:[%s324 + $0x98] sm:$0x3]
        %v376 = vld [vmem:[%s334] sm:$0xff]
        %v377 = vld [vmem:[%s334 + $0x8] sm:$0x3]
        %v378 = vld [vmem:[%s334 + $0x10] sm:$0xff]
        %v379 = vld [vmem:[%s334 + $0x18] sm:$0x3]
        %v380 = vld [vmem:[%s334 + $0x20] sm:$0xff]
        %v381 = vld [vmem:[%s334 + $0x28] sm:$0x3]
        %v382 = vld [vmem:[%s334 + $0x30] sm:$0xff]
        %v383 = vld [vmem:[%s334 + $0x38] sm:$0x3]
        %v384 = vld [vmem:[%s334 + $0x40] sm:$0xff]
        %v385 = vld [vmem:[%s334 + $0x48] sm:$0x3]
        %v386 = vld [vmem:[%s334 + $0x50] sm:$0xff]
        %v387 = vld [vmem:[%s334 + $0x58] sm:$0x3]
        %v388 = vld [vmem:[%s334 + $0x60] sm:$0xff]
        %v389 = vld [vmem:[%s334 + $0x68] sm:$0x3]
        %v390 = vld [vmem:[%s334 + $0x70] sm:$0xff]
        %v391 = vld [vmem:[%s334 + $0x78] sm:$0x3]
        %v392 = vld [vmem:[%s334 + $0x80] sm:$0xff]
        %v393 = vld [vmem:[%s334 + $0x88] sm:$0x3]
        %v394 = vld [vmem:[%s334 + $0x90] sm:$0xff]
        %v395 = vld [vmem:[%s334 + $0x98] sm:$0x3]
        %v396 = vld [vmem:[%s345] sm:$0xff]
        %v397 = vld [vmem:[%s345 + $0x8] sm:$0x3]
        %v398 = vld [vmem:[%s345 + $0x10] sm:$0xff]
        %v399 = vld [vmem:[%s345 + $0x18] sm:$0x3]
        %v400 = vld [vmem:[%s345 + $0x20] sm:$0xff]
        %v401 = vld [vmem:[%s345 + $0x28] sm:$0x3]
        %v402 = vld [vmem:[%s345 + $0x30] sm:$0xff]
        %v403 = vld [vmem:[%s345 + $0x38] sm:$0x3]
        %v404 = vld [vmem:[%s345 + $0x40] sm:$0xff]
        %v405 = vld [vmem:[%s345 + $0x48] sm:$0x3]
        %v406 = vld [vmem:[%s345 + $0x50] sm:$0xff]
        %v407 = vld [vmem:[%s345 + $0x58] sm:$0x3]
        %v408 = vld [vmem:[%s345 + $0x60] sm:$0xff]
        %v409 = vld [vmem:[%s345 + $0x68] sm:$0x3]
        %v410 = vld [vmem:[%s345 + $0x70] sm:$0xff]
        %v411 = vld [vmem:[%s345 + $0x78] sm:$0x3]
        %v412 = vld [vmem:[%s345 + $0x80] sm:$0xff]
        %v413 = vld [vmem:[%s345 + $0x88] sm:$0x3]
        %v414 = vld [vmem:[%s345 + $0x90] sm:$0xff]
        %v415 = vld [vmem:[%s345 + $0x98] sm:$0x3]
        %vm432 = vcmask 1046528
        %v433 = vrot.slane %v356, 1
        %v434 = vrot.slane %v357, 1
        %v435 = vsel %vm432, %v433, %v434
        %v436 = vrot.slane %v358, 1
        %v437 = vrot.slane %v359, 1
        %v438 = vsel %vm432, %v436, %v437
        %v439 = vrot.slane %v360, 1
        %v440 = vrot.slane %v361, 1
        %v441 = vsel %vm432, %v439, %v440
        %v442 = vrot.slane %v362, 1
        %v443 = vrot.slane %v363, 1
        %v444 = vsel %vm432, %v442, %v443
        %v445 = vrot.slane %v364, 1
        %v446 = vrot.slane %v365, 1
        %v447 = vsel %vm432, %v445, %v446
        %v448 = vrot.slane %v366, 1
        %v449 = vrot.slane %v367, 1
        %v450 = vsel %vm432, %v448, %v449
        %v451 = vrot.slane %v368, 1
        %v452 = vrot.slane %v369, 1
        %v453 = vsel %vm432, %v451, %v452
        %v454 = vrot.slane %v370, 1
        %v455 = vrot.slane %v371, 1
        %v456 = vsel %vm432, %v454, %v455
        %457 = vrot.lane.b32.xlu0 %v435, 8
        %v458 = vpop.permute.xlu0 %457
        %459 = vrot.lane.b32.xlu0 %v438, 8
        %v460 = vpop.permute.xlu0 %459
        %461 = vrot.lane.b32.xlu0 %v441, 8
        %v462 = vpop.permute.xlu0 %461
        %463 = vrot.lane.b32.xlu0 %v444, 8
        %v464 = vpop.permute.xlu0 %463
        %465 = vrot.lane.b32.xlu0 %v447, 8
        %v466 = vpop.permute.xlu0 %465
        %467 = vrot.lane.b32.xlu0 %v450, 8
        %v468 = vpop.permute.xlu0 %467
        %469 = vrot.lane.b32.xlu0 %v453, 8
        %v470 = vpop.permute.xlu0 %469
        %471 = vrot.lane.b32.xlu0 %v456, 8
        %v472 = vpop.permute.xlu0 %471
        %vm481 = vcmask 1045504
        %v482 = vrot.slane %v356, 2
        %v483 = vrot.slane %v357, 2
        %v484 = vsel %vm481, %v482, %v483
        %v485 = vrot.slane %v358, 2
        %v486 = vrot.slane %v359, 2
        %v487 = vsel %vm481, %v485, %v486
        %v488 = vrot.slane %v360, 2
        %v489 = vrot.slane %v361, 2
        %v490 = vsel %vm481, %v488, %v489
        %v491 = vrot.slane %v362, 2
        %v492 = vrot.slane %v363, 2
        %v493 = vsel %vm481, %v491, %v492
        %v494 = vrot.slane %v364, 2
        %v495 = vrot.slane %v365, 2
        %v496 = vsel %vm481, %v494, %v495
        %v497 = vrot.slane %v366, 2
        %v498 = vrot.slane %v367, 2
        %v499 = vsel %vm481, %v497, %v498
        %v500 = vrot.slane %v368, 2
        %v501 = vrot.slane %v369, 2
        %v502 = vsel %vm481, %v500, %v501
        %v503 = vrot.slane %v370, 2
        %v504 = vrot.slane %v371, 2
        %v505 = vsel %vm481, %v503, %v504
        %506 = vrot.lane.b32.xlu0 %v484, 16
        %v507 = vpop.permute.xlu0 %506
        %508 = vrot.lane.b32.xlu0 %v487, 16
        %v509 = vpop.permute.xlu0 %508
        %510 = vrot.lane.b32.xlu0 %v490, 16
        %v511 = vpop.permute.xlu0 %510
        %512 = vrot.lane.b32.xlu0 %v493, 16
        %v513 = vpop.permute.xlu0 %512
        %514 = vrot.lane.b32.xlu0 %v496, 16
        %v515 = vpop.permute.xlu0 %514
        %516 = vrot.lane.b32.xlu0 %v499, 16
        %v517 = vpop.permute.xlu0 %516
        %518 = vrot.lane.b32.xlu0 %v502, 16
        %v519 = vpop.permute.xlu0 %518
        %520 = vrot.lane.b32.xlu0 %v505, 16
        %v521 = vpop.permute.xlu0 %520
        %531 = vrot.lane.b32.xlu0 %v358, 24
        %v532 = vpop.permute.xlu0 %531
        %533 = vrot.lane.b32.xlu0 %v360, 24
        %v534 = vpop.permute.xlu0 %533
        %535 = vrot.lane.b32.xlu0 %v362, 24
        %v536 = vpop.permute.xlu0 %535
        %537 = vrot.lane.b32.xlu0 %v364, 24
        %v538 = vpop.permute.xlu0 %537
        %539 = vrot.lane.b32.xlu0 %v366, 24
        %v540 = vpop.permute.xlu0 %539
        %541 = vrot.lane.b32.xlu0 %v368, 24
        %v542 = vpop.permute.xlu0 %541
        %543 = vrot.lane.b32.xlu0 %v370, 24
        %v544 = vpop.permute.xlu0 %543
        %545 = vrot.lane.b32.xlu0 %v372, 24
        %v546 = vpop.permute.xlu0 %545
        %v556 = vrot.slane %v372, 1
        %v557 = vrot.slane %v373, 1
        %v558 = vsel %vm432, %v556, %v557
        %559 = vrot.lane.b32.xlu0 %v438, 32
        %v560 = vpop.permute.xlu0 %559
        %561 = vrot.lane.b32.xlu0 %v441, 32
        %v562 = vpop.permute.xlu0 %561
        %563 = vrot.lane.b32.xlu0 %v444, 32
        %v564 = vpop.permute.xlu0 %563
        %565 = vrot.lane.b32.xlu0 %v447, 32
        %v566 = vpop.permute.xlu0 %565
        %567 = vrot.lane.b32.xlu0 %v450, 32
        %v568 = vpop.permute.xlu0 %567
        %569 = vrot.lane.b32.xlu0 %v453, 32
        %v570 = vpop.permute.xlu0 %569
        %571 = vrot.lane.b32.xlu0 %v456, 32
        %v572 = vpop.permute.xlu0 %571
        %573 = vrot.lane.b32.xlu0 %v558, 32
        %v574 = vpop.permute.xlu0 %573
        %v583 = vrot.slane %v372, 2
        %v584 = vrot.slane %v373, 2
        %v585 = vsel %vm481, %v583, %v584
        %586 = vrot.lane.b32.xlu0 %v487, 40
        %v587 = vpop.permute.xlu0 %586
        %588 = vrot.lane.b32.xlu0 %v490, 40
        %v589 = vpop.permute.xlu0 %588
        %590 = vrot.lane.b32.xlu0 %v493, 40
        %v591 = vpop.permute.xlu0 %590
        %592 = vrot.lane.b32.xlu0 %v496, 40
        %v593 = vpop.permute.xlu0 %592
        %594 = vrot.lane.b32.xlu0 %v499, 40
        %v595 = vpop.permute.xlu0 %594
        %596 = vrot.lane.b32.xlu0 %v502, 40
        %v597 = vpop.permute.xlu0 %596
        %598 = vrot.lane.b32.xlu0 %v505, 40
        %v599 = vpop.permute.xlu0 %598
        %600 = vrot.lane.b32.xlu0 %v585, 40
        %v601 = vpop.permute.xlu0 %600
        %611 = vrot.lane.b32.xlu0 %v360, 48
        %v612 = vpop.permute.xlu0 %611
        %613 = vrot.lane.b32.xlu0 %v362, 48
        %v614 = vpop.permute.xlu0 %613
        %615 = vrot.lane.b32.xlu0 %v364, 48
        %v616 = vpop.permute.xlu0 %615
        %617 = vrot.lane.b32.xlu0 %v366, 48
        %v618 = vpop.permute.xlu0 %617
        %619 = vrot.lane.b32.xlu0 %v368, 48
        %v620 = vpop.permute.xlu0 %619
        %621 = vrot.lane.b32.xlu0 %v370, 48
        %v622 = vpop.permute.xlu0 %621
        %623 = vrot.lane.b32.xlu0 %v372, 48
        %v624 = vpop.permute.xlu0 %623
        %625 = vrot.lane.b32.xlu0 %v374, 48
        %v626 = vpop.permute.xlu0 %625
        %v636 = vrot.slane %v374, 1
        %v637 = vrot.slane %v375, 1
        %v638 = vsel %vm432, %v636, %v637
        %639 = vrot.lane.b32.xlu0 %v441, 56
        %v640 = vpop.permute.xlu0 %639
        %641 = vrot.lane.b32.xlu0 %v444, 56
        %v642 = vpop.permute.xlu0 %641
        %643 = vrot.lane.b32.xlu0 %v447, 56
        %v644 = vpop.permute.xlu0 %643
        %645 = vrot.lane.b32.xlu0 %v450, 56
        %v646 = vpop.permute.xlu0 %645
        %647 = vrot.lane.b32.xlu0 %v453, 56
        %v648 = vpop.permute.xlu0 %647
        %649 = vrot.lane.b32.xlu0 %v456, 56
        %v650 = vpop.permute.xlu0 %649
        %651 = vrot.lane.b32.xlu0 %v558, 56
        %v652 = vpop.permute.xlu0 %651
        %653 = vrot.lane.b32.xlu0 %v638, 56
        %v654 = vpop.permute.xlu0 %653
        %v663 = vrot.slane %v374, 2
        %v664 = vrot.slane %v375, 2
        %v665 = vsel %vm481, %v663, %v664
        %666 = vrot.lane.b32.xlu0 %v490, 64
        %v667 = vpop.permute.xlu0 %666
        %668 = vrot.lane.b32.xlu0 %v493, 64
        %v669 = vpop.permute.xlu0 %668
        %670 = vrot.lane.b32.xlu0 %v496, 64
        %v671 = vpop.permute.xlu0 %670
        %672 = vrot.lane.b32.xlu0 %v499, 64
        %v673 = vpop.permute.xlu0 %672
        %674 = vrot.lane.b32.xlu0 %v502, 64
        %v675 = vpop.permute.xlu0 %674
        %676 = vrot.lane.b32.xlu0 %v505, 64
        %v677 = vpop.permute.xlu0 %676
        %678 = vrot.lane.b32.xlu0 %v585, 64
        %v679 = vpop.permute.xlu0 %678
        %680 = vrot.lane.b32.xlu0 %v665, 64
        %v681 = vpop.permute.xlu0 %680
        %698 = vrot.lane.b32.xlu0 %v376, 72
        %v699 = vpop.permute.xlu0 %698
        %700 = vrot.lane.b32.xlu0 %v378, 72
        %v701 = vpop.permute.xlu0 %700
        %702 = vrot.lane.b32.xlu0 %v380, 72
        %v703 = vpop.permute.xlu0 %702
        %704 = vrot.lane.b32.xlu0 %v382, 72
        %v705 = vpop.permute.xlu0 %704
        %706 = vrot.lane.b32.xlu0 %v384, 72
        %v707 = vpop.permute.xlu0 %706
        %708 = vrot.lane.b32.xlu0 %v386, 72
        %v709 = vpop.permute.xlu0 %708
        %710 = vrot.lane.b32.xlu0 %v388, 72
        %v711 = vpop.permute.xlu0 %710
        %712 = vrot.lane.b32.xlu0 %v390, 72
        %v713 = vpop.permute.xlu0 %712
        %v730 = vrot.slane %v376, 1
        %v731 = vrot.slane %v377, 1
        %v732 = vsel %vm432, %v730, %v731
        %v733 = vrot.slane %v378, 1
        %v734 = vrot.slane %v379, 1
        %v735 = vsel %vm432, %v733, %v734
        %v736 = vrot.slane %v380, 1
        %v737 = vrot.slane %v381, 1
        %v738 = vsel %vm432, %v736, %v737
        %v739 = vrot.slane %v382, 1
        %v740 = vrot.slane %v383, 1
        %v741 = vsel %vm432, %v739, %v740
        %v742 = vrot.slane %v384, 1
        %v743 = vrot.slane %v385, 1
        %v744 = vsel %vm432, %v742, %v743
        %v745 = vrot.slane %v386, 1
        %v746 = vrot.slane %v387, 1
        %v747 = vsel %vm432, %v745, %v746
        %v748 = vrot.slane %v388, 1
        %v749 = vrot.slane %v389, 1
        %v750 = vsel %vm432, %v748, %v749
        %v751 = vrot.slane %v390, 1
        %v752 = vrot.slane %v391, 1
        %v753 = vsel %vm432, %v751, %v752
        %754 = vrot.lane.b32.xlu0 %v732, 80
        %v755 = vpop.permute.xlu0 %754
        %756 = vrot.lane.b32.xlu0 %v735, 80
        %v757 = vpop.permute.xlu0 %756
        %758 = vrot.lane.b32.xlu0 %v738, 80
        %v759 = vpop.permute.xlu0 %758
        %760 = vrot.lane.b32.xlu0 %v741, 80
        %v761 = vpop.permute.xlu0 %760
        %762 = vrot.lane.b32.xlu0 %v744, 80
        %v763 = vpop.permute.xlu0 %762
        %764 = vrot.lane.b32.xlu0 %v747, 80
        %v765 = vpop.permute.xlu0 %764
        %766 = vrot.lane.b32.xlu0 %v750, 80
        %v767 = vpop.permute.xlu0 %766
        %768 = vrot.lane.b32.xlu0 %v753, 80
        %v769 = vpop.permute.xlu0 %768
        %v778 = vrot.slane %v376, 2
        %v779 = vrot.slane %v377, 2
        %v780 = vsel %vm481, %v778, %v779
        %v781 = vrot.slane %v378, 2
        %v782 = vrot.slane %v379, 2
        %v783 = vsel %vm481, %v781, %v782
        %v784 = vrot.slane %v380, 2
        %v785 = vrot.slane %v381, 2
        %v786 = vsel %vm481, %v784, %v785
        %v787 = vrot.slane %v382, 2
        %v788 = vrot.slane %v383, 2
        %v789 = vsel %vm481, %v787, %v788
        %v790 = vrot.slane %v384, 2
        %v791 = vrot.slane %v385, 2
        %v792 = vsel %vm481, %v790, %v791
        %v793 = vrot.slane %v386, 2
        %v794 = vrot.slane %v387, 2
        %v795 = vsel %vm481, %v793, %v794
        %v796 = vrot.slane %v388, 2
        %v797 = vrot.slane %v389, 2
        %v798 = vsel %vm481, %v796, %v797
        %v799 = vrot.slane %v390, 2
        %v800 = vrot.slane %v391, 2
        %v801 = vsel %vm481, %v799, %v800
        %802 = vrot.lane.b32.xlu0 %v780, 88
        %v803 = vpop.permute.xlu0 %802
        %804 = vrot.lane.b32.xlu0 %v783, 88
        %v805 = vpop.permute.xlu0 %804
        %806 = vrot.lane.b32.xlu0 %v786, 88
        %v807 = vpop.permute.xlu0 %806
        %808 = vrot.lane.b32.xlu0 %v789, 88
        %v809 = vpop.permute.xlu0 %808
        %810 = vrot.lane.b32.xlu0 %v792, 88
        %v811 = vpop.permute.xlu0 %810
        %812 = vrot.lane.b32.xlu0 %v795, 88
        %v813 = vpop.permute.xlu0 %812
        %814 = vrot.lane.b32.xlu0 %v798, 88
        %v815 = vpop.permute.xlu0 %814
        %816 = vrot.lane.b32.xlu0 %v801, 88
        %v817 = vpop.permute.xlu0 %816
        %827 = vrot.lane.b32.xlu0 %v378, 96
        %v828 = vpop.permute.xlu0 %827
        %829 = vrot.lane.b32.xlu0 %v380, 96
        %v830 = vpop.permute.xlu0 %829
        %831 = vrot.lane.b32.xlu0 %v382, 96
        %v832 = vpop.permute.xlu0 %831
        %833 = vrot.lane.b32.xlu0 %v384, 96
        %v834 = vpop.permute.xlu0 %833
        %835 = vrot.lane.b32.xlu0 %v386, 96
        %v836 = vpop.permute.xlu0 %835
        %837 = vrot.lane.b32.xlu0 %v388, 96
        %v838 = vpop.permute.xlu0 %837
        %839 = vrot.lane.b32.xlu0 %v390, 96
        %v840 = vpop.permute.xlu0 %839
        %841 = vrot.lane.b32.xlu0 %v392, 96
        %v842 = vpop.permute.xlu0 %841
        %v852 = vrot.slane %v392, 1
        %v853 = vrot.slane %v393, 1
        %v854 = vsel %vm432, %v852, %v853
        %855 = vrot.lane.b32.xlu0 %v735, 104
        %v856 = vpop.permute.xlu0 %855
        %857 = vrot.lane.b32.xlu0 %v738, 104
        %v858 = vpop.permute.xlu0 %857
        %859 = vrot.lane.b32.xlu0 %v741, 104
        %v860 = vpop.permute.xlu0 %859
        %861 = vrot.lane.b32.xlu0 %v744, 104
        %v862 = vpop.permute.xlu0 %861
        %863 = vrot.lane.b32.xlu0 %v747, 104
        %v864 = vpop.permute.xlu0 %863
        %865 = vrot.lane.b32.xlu0 %v750, 104
        %v866 = vpop.permute.xlu0 %865
        %867 = vrot.lane.b32.xlu0 %v753, 104
        %v868 = vpop.permute.xlu0 %867
        %869 = vrot.lane.b32.xlu0 %v854, 104
        %v870 = vpop.permute.xlu0 %869
        %v879 = vrot.slane %v392, 2
        %v880 = vrot.slane %v393, 2
        %v881 = vsel %vm481, %v879, %v880
        %882 = vrot.lane.b32.xlu0 %v783, 112
        %v883 = vpop.permute.xlu0 %882
        %884 = vrot.lane.b32.xlu0 %v786, 112
        %v885 = vpop.permute.xlu0 %884
        %886 = vrot.lane.b32.xlu0 %v789, 112
        %v887 = vpop.permute.xlu0 %886
        %888 = vrot.lane.b32.xlu0 %v792, 112
        %v889 = vpop.permute.xlu0 %888
        %890 = vrot.lane.b32.xlu0 %v795, 112
        %v891 = vpop.permute.xlu0 %890
        %892 = vrot.lane.b32.xlu0 %v798, 112
        %v893 = vpop.permute.xlu0 %892
        %894 = vrot.lane.b32.xlu0 %v801, 112
        %v895 = vpop.permute.xlu0 %894
        %896 = vrot.lane.b32.xlu0 %v881, 112
        %v897 = vpop.permute.xlu0 %896
        %907 = vrot.lane.b32.xlu0 %v380, 120
        %v908 = vpop.permute.xlu0 %907
        %909 = vrot.lane.b32.xlu0 %v382, 120
        %v910 = vpop.permute.xlu0 %909
        %911 = vrot.lane.b32.xlu0 %v384, 120
        %v912 = vpop.permute.xlu0 %911
        %913 = vrot.lane.b32.xlu0 %v386, 120
        %v914 = vpop.permute.xlu0 %913
        %915 = vrot.lane.b32.xlu0 %v388, 120
        %v916 = vpop.permute.xlu0 %915
        %917 = vrot.lane.b32.xlu0 %v390, 120
        %v918 = vpop.permute.xlu0 %917
        %919 = vrot.lane.b32.xlu0 %v392, 120
        %v920 = vpop.permute.xlu0 %919
        %921 = vrot.lane.b32.xlu0 %v394, 120
        %v922 = vpop.permute.xlu0 %921
        %vm931 = vcmask 64512
        %v932 = vsel %vm931, %v356, %v458
        %v933 = vsel %vm931, %v358, %v460
        %v934 = vsel %vm931, %v360, %v462
        %v935 = vsel %vm931, %v362, %v464
        %v936 = vsel %vm931, %v364, %v466
        %v937 = vsel %vm931, %v366, %v468
        %v938 = vsel %vm931, %v368, %v470
        %v939 = vsel %vm931, %v370, %v472
        %vm940 = vcmask 130048
        %v941 = vsel %vm940, %v932, %v507
        %v942 = vsel %vm940, %v933, %v509
        %v943 = vsel %vm940, %v934, %v511
        %v944 = vsel %vm940, %v935, %v513
        %v945 = vsel %vm940, %v936, %v515
        %v946 = vsel %vm940, %v937, %v517
        %v947 = vsel %vm940, %v938, %v519
        %v948 = vsel %vm940, %v939, %v521
        %vm949 = vcmask 195584
        %v950 = vsel %vm949, %v941, %v532
        %v951 = vsel %vm949, %v942, %v534
        %v952 = vsel %vm949, %v943, %v536
        %v953 = vsel %vm949, %v944, %v538
        %v954 = vsel %vm949, %v945, %v540
        %v955 = vsel %vm949, %v946, %v542
        %v956 = vsel %vm949, %v947, %v544
        %v957 = vsel %vm949, %v948, %v546
        %vm958 = vcmask 261120
        %v959 = vsel %vm958, %v950, %v560
        %v960 = vsel %vm958, %v951, %v562
        %v961 = vsel %vm958, %v952, %v564
        %v962 = vsel %vm958, %v953, %v566
        %v963 = vsel %vm958, %v954, %v568
        %v964 = vsel %vm958, %v955, %v570
        %v965 = vsel %vm958, %v956, %v572
        %v966 = vsel %vm958, %v957, %v574
        %vm967 = vcmask 326656
        %v968 = vsel %vm967, %v959, %v587
        %v969 = vsel %vm967, %v960, %v589
        %v970 = vsel %vm967, %v961, %v591
        %v971 = vsel %vm967, %v962, %v593
        %v972 = vsel %vm967, %v963, %v595
        %v973 = vsel %vm967, %v964, %v597
        %v974 = vsel %vm967, %v965, %v599
        %v975 = vsel %vm967, %v966, %v601
        %vm976 = vcmask 392192
        %v977 = vsel %vm976, %v968, %v612
        %v978 = vsel %vm976, %v969, %v614
        %v979 = vsel %vm976, %v970, %v616
        %v980 = vsel %vm976, %v971, %v618
        %v981 = vsel %vm976, %v972, %v620
        %v982 = vsel %vm976, %v973, %v622
        %v983 = vsel %vm976, %v974, %v624
        %v984 = vsel %vm976, %v975, %v626
        %vm985 = vcmask 457728
        %v986 = vsel %vm985, %v977, %v640
        %v987 = vsel %vm985, %v978, %v642
        %v988 = vsel %vm985, %v979, %v644
        %v989 = vsel %vm985, %v980, %v646
        %v990 = vsel %vm985, %v981, %v648
        %v991 = vsel %vm985, %v982, %v650
        %v992 = vsel %vm985, %v983, %v652
        %v993 = vsel %vm985, %v984, %v654
        %vm994 = vcmask 523264
        %v995 = vsel %vm994, %v986, %v667
        %v996 = vsel %vm994, %v987, %v669
        %v997 = vsel %vm994, %v988, %v671
        %v998 = vsel %vm994, %v989, %v673
        %v999 = vsel %vm994, %v990, %v675
        %v1000 = vsel %vm994, %v991, %v677
        %v1001 = vsel %vm994, %v992, %v679
        %v1002 = vsel %vm994, %v993, %v681
        %vm1003 = vcmask 588800
        %v1004 = vsel %vm1003, %v995, %v699
        %v1005 = vsel %vm1003, %v996, %v701
        %v1006 = vsel %vm1003, %v997, %v703
        %v1007 = vsel %vm1003, %v998, %v705
        %v1008 = vsel %vm1003, %v999, %v707
        %v1009 = vsel %vm1003, %v1000, %v709
        %v1010 = vsel %vm1003, %v1001, %v711
        %v1011 = vsel %vm1003, %v1002, %v713
        %vm1012 = vcmask 654336
        %v1013 = vsel %vm1012, %v1004, %v755
        %v1014 = vsel %vm1012, %v1005, %v757
        %v1015 = vsel %vm1012, %v1006, %v759
        %v1016 = vsel %vm1012, %v1007, %v761
        %v1017 = vsel %vm1012, %v1008, %v763
        %v1018 = vsel %vm1012, %v1009, %v765
        %v1019 = vsel %vm1012, %v1010, %v767
        %v1020 = vsel %vm1012, %v1011, %v769
        %vm1021 = vcmask 719872
        %v1022 = vsel %vm1021, %v1013, %v803
        %v1023 = vsel %vm1021, %v1014, %v805
        %v1024 = vsel %vm1021, %v1015, %v807
        %v1025 = vsel %vm1021, %v1016, %v809
        %v1026 = vsel %vm1021, %v1017, %v811
        %v1027 = vsel %vm1021, %v1018, %v813
        %v1028 = vsel %vm1021, %v1019, %v815
        %v1029 = vsel %vm1021, %v1020, %v817
        %vm1030 = vcmask 785408
        %v1031 = vsel %vm1030, %v1022, %v828
        %v1032 = vsel %vm1030, %v1023, %v830
        %v1033 = vsel %vm1030, %v1024, %v832
        %v1034 = vsel %vm1030, %v1025, %v834
        %v1035 = vsel %vm1030, %v1026, %v836
        %v1036 = vsel %vm1030, %v1027, %v838
        %v1037 = vsel %vm1030, %v1028, %v840
        %v1038 = vsel %vm1030, %v1029, %v842
        %vm1039 = vcmask 850944
        %v1040 = vsel %vm1039, %v1031, %v856
        %v1041 = vsel %vm1039, %v1032, %v858
        %v1042 = vsel %vm1039, %v1033, %v860
        %v1043 = vsel %vm1039, %v1034, %v862
        %v1044 = vsel %vm1039, %v1035, %v864
        %v1045 = vsel %vm1039, %v1036, %v866
        %v1046 = vsel %vm1039, %v1037, %v868
        %v1047 = vsel %vm1039, %v1038, %v870
        %vm1048 = vcmask 916480
        %v1049 = vsel %vm1048, %v1040, %v883
        %v1050 = vsel %vm1048, %v1041, %v885
        %v1051 = vsel %vm1048, %v1042, %v887
        %v1052 = vsel %vm1048, %v1043, %v889
        %v1053 = vsel %vm1048, %v1044, %v891
        %v1054 = vsel %vm1048, %v1045, %v893
        %v1055 = vsel %vm1048, %v1046, %v895
        %v1056 = vsel %vm1048, %v1047, %v897
        %vm1057 = vcmask 982016
        %v1058 = vsel %vm1057, %v1049, %v908
        %v1059 = vsel %vm1057, %v1050, %v910
        %v1060 = vsel %vm1057, %v1051, %v912
        %v1061 = vsel %vm1057, %v1052, %v914
        %v1062 = vsel %vm1057, %v1053, %v916
        %v1063 = vsel %vm1057, %v1054, %v918
        %v1064 = vsel %vm1057, %v1055, %v920
        %v1065 = vsel %vm1057, %v1056, %v922
        %v1067 = vrot.slane %v394, 1
        %v1068 = vrot.slane %v395, 1
        %v1069 = vsel %vm432, %v1067, %v1068
        %1070 = vrot.lane.b32.xlu0 %v738, 8
        %v1071 = vpop.permute.xlu0 %1070
        %1072 = vrot.lane.b32.xlu0 %v737, 8
        %v1073 = vpop.permute.xlu0 %1072
        %1074 = vrot.lane.b32.xlu0 %v741, 8
        %v1075 = vpop.permute.xlu0 %1074
        %1076 = vrot.lane.b32.xlu0 %v740, 8
        %v1077 = vpop.permute.xlu0 %1076
        %1078 = vrot.lane.b32.xlu0 %v744, 8
        %v1079 = vpop.permute.xlu0 %1078
        %1080 = vrot.lane.b32.xlu0 %v743, 8
        %v1081 = vpop.permute.xlu0 %1080
        %1082 = vrot.lane.b32.xlu0 %v747, 8
        %v1083 = vpop.permute.xlu0 %1082
        %1084 = vrot.lane.b32.xlu0 %v746, 8
        %v1085 = vpop.permute.xlu0 %1084
        %1086 = vrot.lane.b32.xlu0 %v750, 8
        %v1087 = vpop.permute.xlu0 %1086
        %1088 = vrot.lane.b32.xlu0 %v749, 8
        %v1089 = vpop.permute.xlu0 %1088
        %1090 = vrot.lane.b32.xlu0 %v753, 8
        %v1091 = vpop.permute.xlu0 %1090
        %1092 = vrot.lane.b32.xlu0 %v752, 8
        %v1093 = vpop.permute.xlu0 %1092
        %1094 = vrot.lane.b32.xlu0 %v854, 8
        %v1095 = vpop.permute.xlu0 %1094
        %1096 = vrot.lane.b32.xlu0 %v853, 8
        %v1097 = vpop.permute.xlu0 %1096
        %1098 = vrot.lane.b32.xlu0 %v1069, 8
        %v1099 = vpop.permute.xlu0 %1098
        %1100 = vrot.lane.b32.xlu0 %v1068, 8
        %v1101 = vpop.permute.xlu0 %1100
        %v1126 = vrot.slane %v396, 7
        %v1127 = vrot.slane %v398, 7
        %v1128 = vrot.slane %v400, 7
        %v1129 = vrot.slane %v402, 7
        %v1130 = vrot.slane %v404, 7
        %v1131 = vrot.slane %v406, 7
        %v1132 = vrot.slane %v408, 7
        %v1133 = vrot.slane %v410, 7
        %1134 = vrot.lane.b32.xlu0 %v1126, 16
        %v1135 = vpop.permute.xlu0 %1134
        %1136 = vrot.lane.b32.xlu0 %v1127, 16
        %v1137 = vpop.permute.xlu0 %1136
        %1138 = vrot.lane.b32.xlu0 %v1128, 16
        %v1139 = vpop.permute.xlu0 %1138
        %1140 = vrot.lane.b32.xlu0 %v1129, 16
        %v1141 = vpop.permute.xlu0 %1140
        %1142 = vrot.lane.b32.xlu0 %v1130, 16
        %v1143 = vpop.permute.xlu0 %1142
        %1144 = vrot.lane.b32.xlu0 %v1131, 16
        %v1145 = vpop.permute.xlu0 %1144
        %1146 = vrot.lane.b32.xlu0 %v1132, 16
        %v1147 = vpop.permute.xlu0 %1146
        %1148 = vrot.lane.b32.xlu0 %v1133, 16
        %v1149 = vpop.permute.xlu0 %1148
        %1166 = vrot.lane.b32.xlu0 %v396, 24
        %v1167 = vpop.permute.xlu0 %1166
        %1168 = vrot.lane.b32.xlu0 %v397, 24
        %v1169 = vpop.permute.xlu0 %1168
        %1170 = vrot.lane.b32.xlu0 %v398, 24
        %v1171 = vpop.permute.xlu0 %1170
        %1172 = vrot.lane.b32.xlu0 %v399, 24
        %v1173 = vpop.permute.xlu0 %1172
        %1174 = vrot.lane.b32.xlu0 %v400, 24
        %v1175 = vpop.permute.xlu0 %1174
        %1176 = vrot.lane.b32.xlu0 %v401, 24
        %v1177 = vpop.permute.xlu0 %1176
        %1178 = vrot.lane.b32.xlu0 %v402, 24
        %v1179 = vpop.permute.xlu0 %1178
        %1180 = vrot.lane.b32.xlu0 %v403, 24
        %v1181 = vpop.permute.xlu0 %1180
        %1182 = vrot.lane.b32.xlu0 %v404, 24
        %v1183 = vpop.permute.xlu0 %1182
        %1184 = vrot.lane.b32.xlu0 %v405, 24
        %v1185 = vpop.permute.xlu0 %1184
        %1186 = vrot.lane.b32.xlu0 %v406, 24
        %v1187 = vpop.permute.xlu0 %1186
        %1188 = vrot.lane.b32.xlu0 %v407, 24
        %v1189 = vpop.permute.xlu0 %1188
        %1190 = vrot.lane.b32.xlu0 %v408, 24
        %v1191 = vpop.permute.xlu0 %1190
        %1192 = vrot.lane.b32.xlu0 %v409, 24
        %v1193 = vpop.permute.xlu0 %1192
        %1194 = vrot.lane.b32.xlu0 %v410, 24
        %v1195 = vpop.permute.xlu0 %1194
        %1196 = vrot.lane.b32.xlu0 %v411, 24
        %v1197 = vpop.permute.xlu0 %1196
        %v1214 = vrot.slane %v396, 1
        %v1215 = vrot.slane %v397, 1
        %v1216 = vsel %vm432, %v1214, %v1215
        %v1217 = vrot.slane %v398, 1
        %v1218 = vrot.slane %v399, 1
        %v1219 = vsel %vm432, %v1217, %v1218
        %v1220 = vrot.slane %v400, 1
        %v1221 = vrot.slane %v401, 1
        %v1222 = vsel %vm432, %v1220, %v1221
        %v1223 = vrot.slane %v402, 1
        %v1224 = vrot.slane %v403, 1
        %v1225 = vsel %vm432, %v1223, %v1224
        %v1226 = vrot.slane %v404, 1
        %v1227 = vrot.slane %v405, 1
        %v1228 = vsel %vm432, %v1226, %v1227
        %v1229 = vrot.slane %v406, 1
        %v1230 = vrot.slane %v407, 1
        %v1231 = vsel %vm432, %v1229, %v1230
        %v1232 = vrot.slane %v408, 1
        %v1233 = vrot.slane %v409, 1
        %v1234 = vsel %vm432, %v1232, %v1233
        %v1235 = vrot.slane %v410, 1
        %v1236 = vrot.slane %v411, 1
        %v1237 = vsel %vm432, %v1235, %v1236
        %1238 = vrot.lane.b32.xlu0 %v1216, 32
        %v1239 = vpop.permute.xlu0 %1238
        %1240 = vrot.lane.b32.xlu0 %v1215, 32
        %v1241 = vpop.permute.xlu0 %1240
        %1242 = vrot.lane.b32.xlu0 %v1219, 32
        %v1243 = vpop.permute.xlu0 %1242
        %1244 = vrot.lane.b32.xlu0 %v1218, 32
        %v1245 = vpop.permute.xlu0 %1244
        %1246 = vrot.lane.b32.xlu0 %v1222, 32
        %v1247 = vpop.permute.xlu0 %1246
        %1248 = vrot.lane.b32.xlu0 %v1221, 32
        %v1249 = vpop.permute.xlu0 %1248
        %1250 = vrot.lane.b32.xlu0 %v1225, 32
        %v1251 = vpop.permute.xlu0 %1250
        %1252 = vrot.lane.b32.xlu0 %v1224, 32
        %v1253 = vpop.permute.xlu0 %1252
        %1254 = vrot.lane.b32.xlu0 %v1228, 32
        %v1255 = vpop.permute.xlu0 %1254
        %1256 = vrot.lane.b32.xlu0 %v1227, 32
        %v1257 = vpop.permute.xlu0 %1256
        %1258 = vrot.lane.b32.xlu0 %v1231, 32
        %v1259 = vpop.permute.xlu0 %1258
        %1260 = vrot.lane.b32.xlu0 %v1230, 32
        %v1261 = vpop.permute.xlu0 %1260
        %1262 = vrot.lane.b32.xlu0 %v1234, 32
        %v1263 = vpop.permute.xlu0 %1262
        %1264 = vrot.lane.b32.xlu0 %v1233, 32
        %v1265 = vpop.permute.xlu0 %1264
        %1266 = vrot.lane.b32.xlu0 %v1237, 32
        %v1267 = vpop.permute.xlu0 %1266
        %1268 = vrot.lane.b32.xlu0 %v1236, 32
        %v1269 = vpop.permute.xlu0 %1268
        %v1287 = vrot.slane %v412, 7
        %1288 = vrot.lane.b32.xlu0 %v1127, 40
        %v1289 = vpop.permute.xlu0 %1288
        %1290 = vrot.lane.b32.xlu0 %v1128, 40
        %v1291 = vpop.permute.xlu0 %1290
        %1292 = vrot.lane.b32.xlu0 %v1129, 40
        %v1293 = vpop.permute.xlu0 %1292
        %1294 = vrot.lane.b32.xlu0 %v1130, 40
        %v1295 = vpop.permute.xlu0 %1294
        %1296 = vrot.lane.b32.xlu0 %v1131, 40
        %v1297 = vpop.permute.xlu0 %1296
        %1298 = vrot.lane.b32.xlu0 %v1132, 40
        %v1299 = vpop.permute.xlu0 %1298
        %1300 = vrot.lane.b32.xlu0 %v1133, 40
        %v1301 = vpop.permute.xlu0 %1300
        %1302 = vrot.lane.b32.xlu0 %v1287, 40
        %v1303 = vpop.permute.xlu0 %1302
        %1313 = vrot.lane.b32.xlu0 %v398, 48
        %v1314 = vpop.permute.xlu0 %1313
        %1315 = vrot.lane.b32.xlu0 %v399, 48
        %v1316 = vpop.permute.xlu0 %1315
        %1317 = vrot.lane.b32.xlu0 %v400, 48
        %v1318 = vpop.permute.xlu0 %1317
        %1319 = vrot.lane.b32.xlu0 %v401, 48
        %v1320 = vpop.permute.xlu0 %1319
        %1321 = vrot.lane.b32.xlu0 %v402, 48
        %v1322 = vpop.permute.xlu0 %1321
        %1323 = vrot.lane.b32.xlu0 %v403, 48
        %v1324 = vpop.permute.xlu0 %1323
        %1325 = vrot.lane.b32.xlu0 %v404, 48
        %v1326 = vpop.permute.xlu0 %1325
        %1327 = vrot.lane.b32.xlu0 %v405, 48
        %v1328 = vpop.permute.xlu0 %1327
        %1329 = vrot.lane.b32.xlu0 %v406, 48
        %v1330 = vpop.permute.xlu0 %1329
        %1331 = vrot.lane.b32.xlu0 %v407, 48
        %v1332 = vpop.permute.xlu0 %1331
        %1333 = vrot.lane.b32.xlu0 %v408, 48
        %v1334 = vpop.permute.xlu0 %1333
        %1335 = vrot.lane.b32.xlu0 %v409, 48
        %v1336 = vpop.permute.xlu0 %1335
        %1337 = vrot.lane.b32.xlu0 %v410, 48
        %v1338 = vpop.permute.xlu0 %1337
        %1339 = vrot.lane.b32.xlu0 %v411, 48
        %v1340 = vpop.permute.xlu0 %1339
        %1341 = vrot.lane.b32.xlu0 %v412, 48
        %v1342 = vpop.permute.xlu0 %1341
        %1343 = vrot.lane.b32.xlu0 %v413, 48
        %v1344 = vpop.permute.xlu0 %1343
        %v1361 = vrot.slane %v412, 1
        %v1362 = vrot.slane %v413, 1
        %v1363 = vsel %vm432, %v1361, %v1362
        %1364 = vrot.lane.b32.xlu0 %v1219, 56
        %v1365 = vpop.permute.xlu0 %1364
        %1366 = vrot.lane.b32.xlu0 %v1218, 56
        %v1367 = vpop.permute.xlu0 %1366
        %1368 = vrot.lane.b32.xlu0 %v1222, 56
        %v1369 = vpop.permute.xlu0 %1368
        %1370 = vrot.lane.b32.xlu0 %v1221, 56
        %v1371 = vpop.permute.xlu0 %1370
        %1372 = vrot.lane.b32.xlu0 %v1225, 56
        %v1373 = vpop.permute.xlu0 %1372
        %1374 = vrot.lane.b32.xlu0 %v1224, 56
        %v1375 = vpop.permute.xlu0 %1374
        %1376 = vrot.lane.b32.xlu0 %v1228, 56
        %v1377 = vpop.permute.xlu0 %1376
        %1378 = vrot.lane.b32.xlu0 %v1227, 56
        %v1379 = vpop.permute.xlu0 %1378
        %1380 = vrot.lane.b32.xlu0 %v1231, 56
        %v1381 = vpop.permute.xlu0 %1380
        %1382 = vrot.lane.b32.xlu0 %v1230, 56
        %v1383 = vpop.permute.xlu0 %1382
        %1384 = vrot.lane.b32.xlu0 %v1234, 56
        %v1385 = vpop.permute.xlu0 %1384
        %1386 = vrot.lane.b32.xlu0 %v1233, 56
        %v1387 = vpop.permute.xlu0 %1386
        %1388 = vrot.lane.b32.xlu0 %v1237, 56
        %v1389 = vpop.permute.xlu0 %1388
        %1390 = vrot.lane.b32.xlu0 %v1236, 56
        %v1391 = vpop.permute.xlu0 %1390
        %1392 = vrot.lane.b32.xlu0 %v1363, 56
        %v1393 = vpop.permute.xlu0 %1392
        %1394 = vrot.lane.b32.xlu0 %v1362, 56
        %v1395 = vpop.permute.xlu0 %1394
        %v1413 = vrot.slane %v414, 7
        %1414 = vrot.lane.b32.xlu0 %v1128, 64
        %v1415 = vpop.permute.xlu0 %1414
        %1416 = vrot.lane.b32.xlu0 %v1129, 64
        %v1417 = vpop.permute.xlu0 %1416
        %1418 = vrot.lane.b32.xlu0 %v1130, 64
        %v1419 = vpop.permute.xlu0 %1418
        %1420 = vrot.lane.b32.xlu0 %v1131, 64
        %v1421 = vpop.permute.xlu0 %1420
        %1422 = vrot.lane.b32.xlu0 %v1132, 64
        %v1423 = vpop.permute.xlu0 %1422
        %1424 = vrot.lane.b32.xlu0 %v1133, 64
        %v1425 = vpop.permute.xlu0 %1424
        %1426 = vrot.lane.b32.xlu0 %v1287, 64
        %v1427 = vpop.permute.xlu0 %1426
        %1428 = vrot.lane.b32.xlu0 %v1413, 64
        %v1429 = vpop.permute.xlu0 %1428
        %1439 = vrot.lane.b32.xlu0 %v400, 72
        %v1440 = vpop.permute.xlu0 %1439
        %1441 = vrot.lane.b32.xlu0 %v401, 72
        %v1442 = vpop.permute.xlu0 %1441
        %1443 = vrot.lane.b32.xlu0 %v402, 72
        %v1444 = vpop.permute.xlu0 %1443
        %1445 = vrot.lane.b32.xlu0 %v403, 72
        %v1446 = vpop.permute.xlu0 %1445
        %1447 = vrot.lane.b32.xlu0 %v404, 72
        %v1448 = vpop.permute.xlu0 %1447
        %1449 = vrot.lane.b32.xlu0 %v405, 72
        %v1450 = vpop.permute.xlu0 %1449
        %1451 = vrot.lane.b32.xlu0 %v406, 72
        %v1452 = vpop.permute.xlu0 %1451
        %1453 = vrot.lane.b32.xlu0 %v407, 72
        %v1454 = vpop.permute.xlu0 %1453
        %1455 = vrot.lane.b32.xlu0 %v408, 72
        %v1456 = vpop.permute.xlu0 %1455
        %1457 = vrot.lane.b32.xlu0 %v409, 72
        %v1458 = vpop.permute.xlu0 %1457
        %1459 = vrot.lane.b32.xlu0 %v410, 72
        %v1460 = vpop.permute.xlu0 %1459
        %1461 = vrot.lane.b32.xlu0 %v411, 72
        %v1462 = vpop.permute.xlu0 %1461
        %1463 = vrot.lane.b32.xlu0 %v412, 72
        %v1464 = vpop.permute.xlu0 %1463
        %1465 = vrot.lane.b32.xlu0 %v413, 72
        %v1466 = vpop.permute.xlu0 %1465
        %1467 = vrot.lane.b32.xlu0 %v414, 72
        %v1468 = vpop.permute.xlu0 %1467
        %1469 = vrot.lane.b32.xlu0 %v415, 72
        %v1470 = vpop.permute.xlu0 %1469
        %v1487 = vrot.slane %v414, 1
        %v1488 = vrot.slane %v415, 1
        %v1489 = vsel %vm432, %v1487, %v1488
        %1490 = vrot.lane.b32.xlu0 %v1222, 80
        %v1491 = vpop.permute.xlu0 %1490
        %1492 = vrot.lane.b32.xlu0 %v1221, 80
        %v1493 = vpop.permute.xlu0 %1492
        %1494 = vrot.lane.b32.xlu0 %v1225, 80
        %v1495 = vpop.permute.xlu0 %1494
        %1496 = vrot.lane.b32.xlu0 %v1224, 80
        %v1497 = vpop.permute.xlu0 %1496
        %1498 = vrot.lane.b32.xlu0 %v1228, 80
        %v1499 = vpop.permute.xlu0 %1498
        %1500 = vrot.lane.b32.xlu0 %v1227, 80
        %v1501 = vpop.permute.xlu0 %1500
        %1502 = vrot.lane.b32.xlu0 %v1231, 80
        %v1503 = vpop.permute.xlu0 %1502
        %1504 = vrot.lane.b32.xlu0 %v1230, 80
        %v1505 = vpop.permute.xlu0 %1504
        %1506 = vrot.lane.b32.xlu0 %v1234, 80
        %v1507 = vpop.permute.xlu0 %1506
        %1508 = vrot.lane.b32.xlu0 %v1233, 80
        %v1509 = vpop.permute.xlu0 %1508
        %1510 = vrot.lane.b32.xlu0 %v1237, 80
        %v1511 = vpop.permute.xlu0 %1510
        %1512 = vrot.lane.b32.xlu0 %v1236, 80
        %v1513 = vpop.permute.xlu0 %1512
        %1514 = vrot.lane.b32.xlu0 %v1363, 80
        %v1515 = vpop.permute.xlu0 %1514
        %1516 = vrot.lane.b32.xlu0 %v1362, 80
        %v1517 = vpop.permute.xlu0 %1516
        %1518 = vrot.lane.b32.xlu0 %v1489, 80
        %v1519 = vpop.permute.xlu0 %1518
        %1520 = vrot.lane.b32.xlu0 %v1488, 80
        %v1521 = vpop.permute.xlu0 %1520
        %v1538 = vsel %vm931, %v380, %v1071
        %v1539 = vsel %vm931, %v381, %v1073
        %v1540 = vsel %vm931, %v382, %v1075
        %v1541 = vsel %vm931, %v383, %v1077
        %v1542 = vsel %vm931, %v384, %v1079
        %v1543 = vsel %vm931, %v385, %v1081
        %v1544 = vsel %vm931, %v386, %v1083
        %v1545 = vsel %vm931, %v387, %v1085
        %v1546 = vsel %vm931, %v388, %v1087
        %v1547 = vsel %vm931, %v389, %v1089
        %v1548 = vsel %vm931, %v390, %v1091
        %v1549 = vsel %vm931, %v391, %v1093
        %v1550 = vsel %vm931, %v392, %v1095
        %v1551 = vsel %vm931, %v393, %v1097
        %v1552 = vsel %vm931, %v394, %v1099
        %v1553 = vsel %vm931, %v395, %v1101
        %v1554 = vsel %vm940, %v1538, %v1135
        %v1555 = vsel %vm940, %v1539, %v1135
        %v1556 = vsel %vm940, %v1540, %v1137
        %v1557 = vsel %vm940, %v1541, %v1137
        %v1558 = vsel %vm940, %v1542, %v1139
        %v1559 = vsel %vm940, %v1543, %v1139
        %v1560 = vsel %vm940, %v1544, %v1141
        %v1561 = vsel %vm940, %v1545, %v1141
        %v1562 = vsel %vm940, %v1546, %v1143
        %v1563 = vsel %vm940, %v1547, %v1143
        %v1564 = vsel %vm940, %v1548, %v1145
        %v1565 = vsel %vm940, %v1549, %v1145
        %v1566 = vsel %vm940, %v1550, %v1147
        %v1567 = vsel %vm940, %v1551, %v1147
        %v1568 = vsel %vm940, %v1552, %v1149
        %v1569 = vsel %vm940, %v1553, %v1149
        %v1570 = vsel %vm949, %v1554, %v1167
        %v1571 = vsel %vm949, %v1555, %v1169
        %v1572 = vsel %vm949, %v1556, %v1171
        %v1573 = vsel %vm949, %v1557, %v1173
        %v1574 = vsel %vm949, %v1558, %v1175
        %v1575 = vsel %vm949, %v1559, %v1177
        %v1576 = vsel %vm949, %v1560, %v1179
        %v1577 = vsel %vm949, %v1561, %v1181
        %v1578 = vsel %vm949, %v1562, %v1183
        %v1579 = vsel %vm949, %v1563, %v1185
        %v1580 = vsel %vm949, %v1564, %v1187
        %v1581 = vsel %vm949, %v1565, %v1189
        %v1582 = vsel %vm949, %v1566, %v1191
        %v1583 = vsel %vm949, %v1567, %v1193
        %v1584 = vsel %vm949, %v1568, %v1195
        %v1585 = vsel %vm949, %v1569, %v1197
        %v1586 = vsel %vm958, %v1570, %v1239
        %v1587 = vsel %vm958, %v1571, %v1241
        %v1588 = vsel %vm958, %v1572, %v1243
        %v1589 = vsel %vm958, %v1573, %v1245
        %v1590 = vsel %vm958, %v1574, %v1247
        %v1591 = vsel %vm958, %v1575, %v1249
        %v1592 = vsel %vm958, %v1576, %v1251
        %v1593 = vsel %vm958, %v1577, %v1253
        %v1594 = vsel %vm958, %v1578, %v1255
        %v1595 = vsel %vm958, %v1579, %v1257
        %v1596 = vsel %vm958, %v1580, %v1259
        %v1597 = vsel %vm958, %v1581, %v1261
        %v1598 = vsel %vm958, %v1582, %v1263
        %v1599 = vsel %vm958, %v1583, %v1265
        %v1600 = vsel %vm958, %v1584, %v1267
        %v1601 = vsel %vm958, %v1585, %v1269
        %v1602 = vsel %vm967, %v1586, %v1289
        %v1603 = vsel %vm967, %v1587, %v1289
        %v1604 = vsel %vm967, %v1588, %v1291
        %v1605 = vsel %vm967, %v1589, %v1291
        %v1606 = vsel %vm967, %v1590, %v1293
        %v1607 = vsel %vm967, %v1591, %v1293
        %v1608 = vsel %vm967, %v1592, %v1295
        %v1609 = vsel %vm967, %v1593, %v1295
        %v1610 = vsel %vm967, %v1594, %v1297
        %v1611 = vsel %vm967, %v1595, %v1297
        %v1612 = vsel %vm967, %v1596, %v1299
        %v1613 = vsel %vm967, %v1597, %v1299
        %v1614 = vsel %vm967, %v1598, %v1301
        %v1615 = vsel %vm967, %v1599, %v1301
        %v1616 = vsel %vm967, %v1600, %v1303
        %v1617 = vsel %vm967, %v1601, %v1303
        %v1618 = vsel %vm976, %v1602, %v1314
        %v1619 = vsel %vm976, %v1603, %v1316
        %v1620 = vsel %vm976, %v1604, %v1318
        %v1621 = vsel %vm976, %v1605, %v1320
        %v1622 = vsel %vm976, %v1606, %v1322
        %v1623 = vsel %vm976, %v1607, %v1324
        %v1624 = vsel %vm976, %v1608, %v1326
        %v1625 = vsel %vm976, %v1609, %v1328
        %v1626 = vsel %vm976, %v1610, %v1330
        %v1627 = vsel %vm976, %v1611, %v1332
        %v1628 = vsel %vm976, %v1612, %v1334
        %v1629 = vsel %vm976, %v1613, %v1336
        %v1630 = vsel %vm976, %v1614, %v1338
        %v1631 = vsel %vm976, %v1615, %v1340
        %v1632 = vsel %vm976, %v1616, %v1342
        %v1633 = vsel %vm976, %v1617, %v1344
        %v1634 = vsel %vm985, %v1618, %v1365
        %v1635 = vsel %vm985, %v1619, %v1367
        %v1636 = vsel %vm985, %v1620, %v1369
        %v1637 = vsel %vm985, %v1621, %v1371
        %v1638 = vsel %vm985, %v1622, %v1373
        %v1639 = vsel %vm985, %v1623, %v1375
        %v1640 = vsel %vm985, %v1624, %v1377
        %v1641 = vsel %vm985, %v1625, %v1379
        %v1642 = vsel %vm985, %v1626, %v1381
        %v1643 = vsel %vm985, %v1627, %v1383
        %v1644 = vsel %vm985, %v1628, %v1385
        %v1645 = vsel %vm985, %v1629, %v1387
        %v1646 = vsel %vm985, %v1630, %v1389
        %v1647 = vsel %vm985, %v1631, %v1391
        %v1648 = vsel %vm985, %v1632, %v1393
        %v1649 = vsel %vm985, %v1633, %v1395
        %v1650 = vsel %vm994, %v1634, %v1415
        %v1651 = vsel %vm994, %v1635, %v1415
        %v1652 = vsel %vm994, %v1636, %v1417
        %v1653 = vsel %vm994, %v1637, %v1417
        %v1654 = vsel %vm994, %v1638, %v1419
        %v1655 = vsel %vm994, %v1639, %v1419
        %v1656 = vsel %vm994, %v1640, %v1421
        %v1657 = vsel %vm994, %v1641, %v1421
        %v1658 = vsel %vm994, %v1642, %v1423
        %v1659 = vsel %vm994, %v1643, %v1423
        %v1660 = vsel %vm994, %v1644, %v1425
        %v1661 = vsel %vm994, %v1645, %v1425
        %v1662 = vsel %vm994, %v1646, %v1427
        %v1663 = vsel %vm994, %v1647, %v1427
        %v1664 = vsel %vm994, %v1648, %v1429
        %v1665 = vsel %vm994, %v1649, %v1429
        %v1666 = vsel %vm1003, %v1650, %v1440
        %v1667 = vsel %vm1003, %v1651, %v1442
        %v1668 = vsel %vm1003, %v1652, %v1444
        %v1669 = vsel %vm1003, %v1653, %v1446
        %v1670 = vsel %vm1003, %v1654, %v1448
        %v1671 = vsel %vm1003, %v1655, %v1450
        %v1672 = vsel %vm1003, %v1656, %v1452
        %v1673 = vsel %vm1003, %v1657, %v1454
        %v1674 = vsel %vm1003, %v1658, %v1456
        %v1675 = vsel %vm1003, %v1659, %v1458
        %v1676 = vsel %vm1003, %v1660, %v1460
        %v1677 = vsel %vm1003, %v1661, %v1462
        %v1678 = vsel %vm1003, %v1662, %v1464
        %v1679 = vsel %vm1003, %v1663, %v1466
        %v1680 = vsel %vm1003, %v1664, %v1468
        %v1681 = vsel %vm1003, %v1665, %v1470
        %v1682 = vsel %vm1012, %v1666, %v1491
        %v1683 = vsel %vm1012, %v1667, %v1493
        %v1684 = vsel %vm1012, %v1668, %v1495
        %v1685 = vsel %vm1012, %v1669, %v1497
        %v1686 = vsel %vm1012, %v1670, %v1499
        %v1687 = vsel %vm1012, %v1671, %v1501
        %v1688 = vsel %vm1012, %v1672, %v1503
        %v1689 = vsel %vm1012, %v1673, %v1505
        %v1690 = vsel %vm1012, %v1674, %v1507
        %v1691 = vsel %vm1012, %v1675, %v1509
        %v1692 = vsel %vm1012, %v1676, %v1511
        %v1693 = vsel %vm1012, %v1677, %v1513
        %v1694 = vsel %vm1012, %v1678, %v1515
        %v1695 = vsel %vm1012, %v1679, %v1517
        %v1696 = vsel %vm1012, %v1680, %v1519
        %v1697 = vsel %vm1012, %v1681, %v1521
        %v1714 = vrot.slane %v1682, 1
        %v1715 = vrot.slane %v1683, 1
        %v1716 = vsel %vm432, %v1714, %v1715
        %v1717 = vrot.slane %v1684, 1
        %v1718 = vrot.slane %v1685, 1
        %v1719 = vsel %vm432, %v1717, %v1718
        %v1720 = vrot.slane %v1686, 1
        %v1721 = vrot.slane %v1687, 1
        %v1722 = vsel %vm432, %v1720, %v1721
        %v1723 = vrot.slane %v1688, 1
        %v1724 = vrot.slane %v1689, 1
        %v1725 = vsel %vm432, %v1723, %v1724
        %v1726 = vrot.slane %v1690, 1
        %v1727 = vrot.slane %v1691, 1
        %v1728 = vsel %vm432, %v1726, %v1727
        %v1729 = vrot.slane %v1692, 1
        %v1730 = vrot.slane %v1693, 1
        %v1731 = vsel %vm432, %v1729, %v1730
        %v1732 = vrot.slane %v1694, 1
        %v1733 = vrot.slane %v1695, 1
        %v1734 = vsel %vm432, %v1732, %v1733
        %v1735 = vrot.slane %v1696, 1
        %v1736 = vrot.slane %v1697, 1
        %v1737 = vsel %vm432, %v1735, %v1736
        %v1738 = vld [vmem:[%s3] sm:$0xff]
        %v1739 = vld [vmem:[%s3 + $0x8] sm:$0xff]
        %v1740 = vld [vmem:[%s3 + $0x10] sm:$0xff]
        %v1741 = vld [vmem:[%s3 + $0x18] sm:$0xff]
        %v1742 = vld [vmem:[%s3 + $0x20] sm:$0xff]
        %v1743 = vld [vmem:[%s3 + $0x28] sm:$0xff]
        %v1744 = vld [vmem:[%s3 + $0x30] sm:$0xff]
        %v1745 = vld [vmem:[%s3 + $0x38] sm:$0xff]
        %v1746 = vld [vmem:[%s3 + $0x40] sm:$0xff]
        %v1747 = vld [vmem:[%s3 + $0x48] sm:$0xff]
        %v1748 = vld [vmem:[%s3 + $0x50] sm:$0xff]
        %v1749 = vld [vmem:[%s3 + $0x58] sm:$0xff]
        %v1750 = vld [vmem:[%s3 + $0x60] sm:$0xff]
        %v1751 = vld [vmem:[%s3 + $0x68] sm:$0xff]
        %v1752 = vld [vmem:[%s3 + $0x70] sm:$0xff]
        %v1753 = vld [vmem:[%s3 + $0x78] sm:$0xff]
        %v1754 = vld [vmem:[%s3 + $0x80] sm:$0xff]
        %v1755 = vld [vmem:[%s3 + $0x88] sm:$0xff]
        %v1756 = vld [vmem:[%s3 + $0x90] sm:$0xff]
        %v1757 = vld [vmem:[%s3 + $0x98] sm:$0xff]
        %v1758 = vld [vmem:[%s3 + $0xa0] sm:$0xff]
        %v1759 = vld [vmem:[%s3 + $0xa8] sm:$0xff]
        %v1760 = vld [vmem:[%s3 + $0xb0] sm:$0xff]
        %v1761 = vld [vmem:[%s3 + $0xb8] sm:$0xff]
        %v1762 = vld [vmem:[%s3 + $0xc0] sm:$0xff]
        %v1763 = vld [vmem:[%s3 + $0xc8] sm:$0xff]
        %v1764 = vld [vmem:[%s3 + $0xd0] sm:$0xff]
        %v1765 = vld [vmem:[#allocation2] sm:$0x1]
        %v1767 = vlaneseq
        %v1768 = vshrl.u32 %v1767, 7
        %v1769 = vsub.s32 0, %v1768
        %v1770 = vrot.slane %v1765, %v1769
        %v1772 = vsel %vm1021, %v1716, 0
        %v1774 = vsel %vm1021, %v1719, 0
        %v1776 = vsel %vm1021, %v1722, 0
        %v1778 = vsel %vm1021, %v1725, 0
        %v1780 = vsel %vm1021, %v1728, 0
        %v1782 = vsel %vm1021, %v1731, 0
        %v1784 = vsel %vm1021, %v1734, 0
        %v1786 = vsel %vm1021, %v1737, 0
        %1788 = vmatprep.subr.mxu0 0.0
        %1789 = vmatpush1.msra.mxu0 %v1753
        %1790 = vmatprep.subr.mxu0 0.0
        %1791 = vmatpush1.msra.mxu0 %v1752
        %1792 = vmatprep.subr.mxu0 0.0
        %1793 = vmatpush1.msra.mxu0 %v1751
        %1794 = vmatprep.subr.mxu0 0.0
        %1795 = vmatpush1.msra.mxu0 %v1750
        %1796 = vmatprep.subr.mxu0 0.0
        %1797 = vmatpush1.msra.mxu0 %v1749
        %1798 = vmatprep.subr.mxu0 0.0
        %1799 = vmatpush1.msra.mxu0 %v1748
        %1800 = vmatprep.subr.mxu0 0.0
        %1801 = vmatpush1.msra.mxu0 %v1747
        %1802 = vmatprep.subr.mxu0 0.0
        %1803 = vmatpush1.msra.mxu0 %v1746
        %1804 = vmatprep.subr.mxu0 0.0
        %1805 = vmatpush1.msra.mxu0 %v1745
        %1806 = vmatprep.subr.mxu0 0.0
        %1807 = vmatpush1.msra.mxu0 %v1744
        %1808 = vmatprep.subr.mxu0 0.0
        %1809 = vmatpush1.msra.mxu0 %v1743
        %1810 = vmatprep.subr.mxu0 0.0
        %1811 = vmatpush1.msra.mxu0 %v1742
        %1812 = vmatprep.subr.mxu0 0.0
        %1813 = vmatpush1.msra.mxu0 %v1741
        %1814 = vmatprep.subr.mxu0 0.0
        %1815 = vmatpush1.msra.mxu0 %v1740
        %1816 = vmatprep.subr.mxu0 0.0
        %1817 = vmatpush1.msra.mxu0 %v1739
        %1818 = vmatprep.subr.mxu0 0.0
        %1819 = vmatpush1.msra.mxu0 %v1738
        %1820 = vmatprep.subr.mxu0 0.0
        %1821 = vmatpush2.msra.mxu0 0.0
        %1822 = vmatprep.subr.mxu0 0.0
        %1823 = vmatpush2.msra.mxu0 0.0
        %1824 = vmatprep.subr.mxu0 0.0
        %1825 = vmatpush2.msra.mxu0 0.0
        %1826 = vmatprep.subr.mxu0 0.0
        %1827 = vmatpush2.msra.mxu0 0.0
        %1828 = vmatprep.subr.mxu0 0.0
        %1829 = vmatpush2.msra.mxu0 0.0
        %1830 = vmatprep.subr.mxu0 0.0
        %1831 = vmatpush2.msra.mxu0 %v1764
        %1832 = vmatprep.subr.mxu0 0.0
        %1833 = vmatpush2.msra.mxu0 %v1763
        %1834 = vmatprep.subr.mxu0 0.0
        %1835 = vmatpush2.msra.mxu0 %v1762
        %1836 = vmatprep.subr.mxu0 0.0
        %1837 = vmatpush2.msra.mxu0 %v1761
        %1838 = vmatprep.subr.mxu0 0.0
        %1839 = vmatpush2.msra.mxu0 %v1760
        %1840 = vmatprep.subr.mxu0 0.0
        %1841 = vmatpush2.msra.mxu0 %v1759
        %1842 = vmatprep.subr.mxu0 0.0
        %1843 = vmatpush2.msra.mxu0 %v1758
        %1844 = vmatprep.subr.mxu0 0.0
        %1845 = vmatpush2.msra.mxu0 %v1757
        %1846 = vmatprep.subr.mxu0 0.0
        %1847 = vmatpush2.msra.mxu0 %v1756
        %1848 = vmatprep.subr.mxu0 0.0
        %1849 = vmatpush2.msra.mxu0 %v1755
        %1850 = vmatprep.subr.mxu0 0.0
        %1851 = vmatpush2.msra.mxu0 %v1754
        %1852 = vmatprep.mubr.f32.mxu0 %v1772
        %1853 = vmatmul.mubr.f32.gmra.mxu0 %v1058
        %v1854 = vpop.f32.mrf.mxu0
        %v1855 = vadd.f32 %v1770, %v1854
        %v1856 = vpop.f32.mrf.mxu0
        %1857 = vmatprep.mubr.f32.mxu0 %v1774
        %1858 = vmatmul.mubr.f32.gmra.mxu0 %v1059
        %v1859 = vpop.f32.mrf.mxu0
        %v1860 = vadd.f32 %v1770, %v1859
        %v1861 = vpop.f32.mrf.mxu0
        %1862 = vmatprep.mubr.f32.mxu0 %v1776
        %1863 = vmatmul.mubr.f32.gmra.mxu0 %v1060
        %v1864 = vpop.f32.mrf.mxu0
        %v1865 = vadd.f32 %v1770, %v1864
        %v1866 = vpop.f32.mrf.mxu0
        %1867 = vmatprep.mubr.f32.mxu0 %v1778
        %1868 = vmatmul.mubr.f32.gmra.mxu0 %v1061
        %v1869 = vpop.f32.mrf.mxu0
        %v1870 = vadd.f32 %v1770, %v1869
        %v1871 = vpop.f32.mrf.mxu0
        %1872 = vmatprep.mubr.f32.mxu0 %v1780
        %1873 = vmatmul.mubr.f32.gmra.mxu0 %v1062
        %v1874 = vpop.f32.mrf.mxu0
        %v1875 = vadd.f32 %v1770, %v1874
        %v1876 = vpop.f32.mrf.mxu0
        %1877 = vmatprep.mubr.f32.mxu0 %v1782
        %1878 = vmatmul.mubr.f32.gmra.mxu0 %v1063
        %v1879 = vpop.f32.mrf.mxu0
        %v1880 = vadd.f32 %v1770, %v1879
        %v1881 = vpop.f32.mrf.mxu0
        %1882 = vmatprep.mubr.f32.mxu0 %v1784
        %1883 = vmatmul.mubr.f32.gmra.mxu0 %v1064
        %v1884 = vpop.f32.mrf.mxu0
        %v1885 = vadd.f32 %v1770, %v1884
        %v1886 = vpop.f32.mrf.mxu0
        %1887 = vmatprep.mubr.f32.mxu0 %v1786
        %1888 = vmatmul.mubr.f32.gmra.mxu0 %v1065
        %v1889 = vpop.f32.mrf.mxu0
        %v1890 = vadd.f32 %v1770, %v1889
        %v1891 = vpop.f32.mrf.mxu0
        %1892 = vdwg.mxu0
        %vm1893 = vcmask 441344
        %1894 = vst.msk [vmem:[%s355] sm:$0xff] %vm1893, %v1855
        %1895 = vst.msk [vmem:[%s355 + $0x8] sm:$0xff] %vm1893, %v1860
        %1896 = vst.msk [vmem:[%s355 + $0x10] sm:$0xff] %vm1893, %v1865
        %1897 = vst.msk [vmem:[%s355 + $0x18] sm:$0xff] %vm1893, %v1870
        %1898 = vst.msk [vmem:[%s355 + $0x20] sm:$0xff] %vm1893, %v1875
        %1899 = vst.msk [vmem:[%s355 + $0x28] sm:$0xff] %vm1893, %v1880
        %1900 = vst.msk [vmem:[%s355 + $0x30] sm:$0xff] %vm1893, %v1885
        %1901 = vst.msk [vmem:[%s355 + $0x38] sm:$0xff] %vm1893, %v1890
        %p1902 = scmp.lt.s32.totalorder %s21, 1
        %s1903 = scalar_select %p1902, %s21, 1
        %p1904 = scmp.lt.s32.totalorder %s22, 3
        %s1905 = scalar_select %p1904, %s22, 3
        %s1906 = smul.addr %s1905, 8
        %s1907 = smul.addr %s1903, 32
        %s1908 = sadd.s32 %s1906, %s1907
        %s1909 = smul.addr %s1908, 8
        %s1910 = scalar_lea.vmem %s5, %s1909
        // Predicated region
        $region45: #{de_conv_block_3d_pallas.4} parent=39 // pred_check
          %p1911 = pneg %p179
        $region46: #{de_conv_block_3d_pallas.4} parent=39 // pred_check_branch
          %1913 = sbr.rel (%p1911) target = $region48
        $region47: #{de_conv_block_3d_pallas.4} parent=39 // pred_region
          _
        $region48: #{de_conv_block_3d_pallas.4} parent=39 // pred_fallthru
          _
      $region40: #{de_conv_block_3d_pallas.4} parent=5 // pred_fallthru
        _
      %p1914 = scmp.le.s32.totalorder 2, %s12
      // Predicated region
      $region49: #{de_conv_block_3d_pallas.4} parent=5 // pred_check
        %p1915 = pneg %p1914
      $region50: #{de_conv_block_3d_pallas.4} parent=5 // pred_check_branch
        %1917 = sbr.rel (%p1915) target = $region52
      $region51: #{de_conv_block_3d_pallas.4} parent=5 // pred_region
        %s1918 = ssub.s32 %s12, 2
        // Predicated region
        $region53: #{de_conv_block_3d_pallas.4} parent=51 // pred_check
          %p1919 = pneg %p185
        $region54: #{de_conv_block_3d_pallas.4} parent=51 // pred_check_branch
          %1921 = sbr.rel (%p1919) target = $region56
        $region55: #{de_conv_block_3d_pallas.4} parent=51 // pred_region
          %p1922 = scmp.lt.s32.totalorder %s23, 1
          %s1923 = scalar_select %p1922, %s23, 1
          %p1924 = scmp.lt.s32.totalorder %s24, 3
          %s1925 = scalar_select %p1924, %s24, 3
          %s1926 = smul.addr %s1925, 8
          %s1927 = smul.addr %s1923, 32
          %s1928 = sadd.s32 %s1926, %s1927
          %s1929 = smul.addr %s1928, 8
          %s1930 = scalar_lea.vmem %s5, %s1929
        $region56: #{de_conv_block_3d_pallas.4} parent=51 // pred_fallthru
          _
      $region52: #{de_conv_block_3d_pallas.4} parent=5 // pred_fallthru
        _
    $region6: #{de_conv_block_3d_pallas.4} parent=1 // loop_footer
      %s16 = sadd.s32 1, %s12
    $region7: #{de_conv_block_3d_pallas.4} parent=1 // loop_footer_branch
      %11 = sbr.rel target = $region3
    $region8: #{de_conv_block_3d_pallas.4} parent=1 // loop_exit
      _
    %1931 = vsyncpa [#allocation3], 1
    %s1932 = scalar_lea.sflag [#allocation3], 1
    %1933 = vsyncpa %s1932, 1

// kernel: de_conv_block_3d_pallas.5
$region0: #{de_conv_block_3d_pallas.5}
  #allocation0 [shape = 'u32[]', space=smem, size = 0x4, offset = 0x4, fixed_abs, tag = 'smem constant byte address 0x4 - core index']
  #allocation1 [shape = 'u32[144,128]{1,0:T(1,128)}', space=vmem, size = 0x12000, scoped, tag = 'internal scratch']
  %s0 = inlined_call_operand.vmem [shape: f32[512,216], index: 0, kind: input, shape index: {}]
  %s1 = inlined_call_operand.vmem [shape: f32[512,4], index: 1, kind: input, shape index: {}]
  %s2 = inlined_call_operand.vmem [shape: f32[216,8], index: 2, kind: input, shape index: {}]
  %s3 = inlined_call_operand.vmem [shape: f32[1,8], index: 3, kind: input, shape index: {}]
  %s4 = inlined_call_operand.vmem [shape: f32[4,8], index: 4, kind: input, shape index: {}]
  %s5 = inlined_call_operand.vmem [shape: f32[1,8], index: 5, kind: input, shape index: {}]
  %s6 = inlined_call_operand.vmem [shape: f32[512,8], index: 6, kind: output, shape index: {}]
  %s7 = sld [smem:[#allocation0]]
  $region57: #{de_conv_block_3d_pallas.5} parent=0
    _
  %s9 = ssub.s32 1, %s7
  %s10 = scalar_select 0, %s9, %s7
  loop: start=0, step=1, limit=4
  $region2: #{de_conv_block_3d_pallas.5} parent=0 // loop_pre_header
    _
  $region3: #{de_conv_block_3d_pallas.5} parent=0 // loop_header
    %s12 = sphi 0, %s16
    %p13 = scmp.ge.s32.totalorder %s12, 4
    %s22 = sphi 0, %s24
    %s25 = sphi 0, %s22
    %s26 = sphi 0, %s25
    %s42 = sphi 0, %s26
    %s48 = sphi 0, %s50
    %s51 = sphi 0, %s48
    %s52 = sphi 0, %s51
    %s68 = sphi 0, %s52
    %s72 = sphi 0, %s72
    %s74 = sphi 0, %s72
    %s75 = sphi 0, %s74
    %s89 = sphi 0, %s75
    %s93 = sphi 0, %s93
    %s95 = sphi 0, %s93
    %s96 = sphi 0, %s95
    %s110 = sphi 0, %s96
    %s114 = sphi 0, %s114
    %s116 = sphi 0, %s114
    %s117 = sphi 0, %s116
    %s131 = sphi 0, %s117
    %s135 = sphi 0, %s135
    %s137 = sphi 0, %s135
    %s138 = sphi 0, %s137
    %s152 = sphi 0, %s138
    %s158 = sphi 0, %s160
    %s161 = sphi 0, %s158
    %s162 = sphi 0, %s161
    %s178 = sphi 0, %s162
  $region4: #{de_conv_block_3d_pallas.5} parent=0 // loop_header_branch
    %15 = sbr.rel (%p13) target = $region8
  $region5: #{de_conv_block_3d_pallas.5} parent=0 // loop_body
    %s17 = ssub.s32 %s12, 1
    %s18 = ssub.s32 %s12, 2
    %s19 = sadd.s32 %s12, 1
    %s20 = ssub.s32 %s12, %s19
    %p21 = scmp.eq.s32.totalorder %s20, 0
    %s23 = sadd.s32 %s22, 1
    %s24 = scalar_select %p21, %s22, %s23
    %p27 = pneg %p21
    %p28 = scmp.eq.s32.totalorder %s12, 1
    %p29 = por %p27, %p28
    %p30 = scmp.ne.s32.totalorder %s22, %s25
    %p31 = scmp.eq.s32.totalorder %s12, 0
    %p32 = por %p30, %p31
    %p33 = scmp.ne.s32.totalorder %s22, %s25
    %p34 = scmp.eq.s32.totalorder %s17, 1
    %p35 = por %p33, %p34
    %p36 = scmp.ne.s32.totalorder %s25, %s26
    %p37 = scmp.eq.s32.totalorder %s17, 0
    %p38 = por %p36, %p37
    %p39 = scmp.ne.s32.totalorder %s25, %s26
    %p40 = scmp.eq.s32.totalorder %s18, 1
    %p41 = por %p39, %p40
    %p43 = scmp.ne.s32.totalorder %s26, %s42
    %p44 = scmp.eq.s32.totalorder %s18, 0
    %p45 = por %p43, %p44
    %s46 = ssub.s32 %s12, %s19
    %p47 = scmp.eq.s32.totalorder %s46, 0
    %s49 = sadd.s32 %s48, 1
    %s50 = scalar_select %p47, %s48, %s49
    %p53 = pneg %p47
    %p54 = scmp.eq.s32.totalorder %s12, 1
    %p55 = por %p53, %p54
    %p56 = scmp.ne.s32.totalorder %s48, %s51
    %p57 = scmp.eq.s32.totalorder %s12, 0
    %p58 = por %p56, %p57
    %p59 = scmp.ne.s32.totalorder %s48, %s51
    %p60 = scmp.eq.s32.totalorder %s17, 1
    %p61 = por %p59, %p60
    %p62 = scmp.ne.s32.totalorder %s51, %s52
    %p63 = scmp.eq.s32.totalorder %s17, 0
    %p64 = por %p62, %p63
    %p65 = scmp.ne.s32.totalorder %s51, %s52
    %p66 = scmp.eq.s32.totalorder %s18, 1
    %p67 = por %p65, %p66
    %p69 = scmp.ne.s32.totalorder %s52, %s68
    %p70 = scmp.eq.s32.totalorder %s18, 0
    %p71 = por %p69, %p70
    %s73 = sadd.s32 %s72, 1
    %p76 = scmp.eq.s32.totalorder %s12, 1
    %p77 = scmp.ne.s32.totalorder %s72, %s74
    %p78 = scmp.eq.s32.totalorder %s12, 0
    %p79 = por %p77, %p78
    %p80 = scmp.ne.s32.totalorder %s72, %s74
    %p81 = scmp.eq.s32.totalorder %s17, 1
    %p82 = por %p80, %p81
    %p83 = scmp.ne.s32.totalorder %s74, %s75
    %p84 = scmp.eq.s32.totalorder %s17, 0
    %p85 = por %p83, %p84
    %p86 = scmp.ne.s32.totalorder %s74, %s75
    %p87 = scmp.eq.s32.totalorder %s18, 1
    %p88 = por %p86, %p87
    %p90 = scmp.ne.s32.totalorder %s75, %s89
    %p91 = scmp.eq.s32.totalorder %s18, 0
    %p92 = por %p90, %p91
    %s94 = sadd.s32 %s93, 1
    %p97 = scmp.eq.s32.totalorder %s12, 1
    %p98 = scmp.ne.s32.totalorder %s93, %s95
    %p99 = scmp.eq.s32.totalorder %s12, 0
    %p100 = por %p98, %p99
    %p101 = scmp.ne.s32.totalorder %s93, %s95
    %p102 = scmp.eq.s32.totalorder %s17, 1
    %p103 = por %p101, %p102
    %p104 = scmp.ne.s32.totalorder %s95, %s96
    %p105 = scmp.eq.s32.totalorder %s17, 0
    %p106 = por %p104, %p105
    %p107 = scmp.ne.s32.totalorder %s95, %s96
    %p108 = scmp.eq.s32.totalorder %s18, 1
    %p109 = por %p107, %p108
    %p111 = scmp.ne.s32.totalorder %s96, %s110
    %p112 = scmp.eq.s32.totalorder %s18, 0
    %p113 = por %p111, %p112
    %s115 = sadd.s32 %s114, 1
    %p118 = scmp.eq.s32.totalorder %s12, 1
    %p119 = scmp.ne.s32.totalorder %s114, %s116
    %p120 = scmp.eq.s32.totalorder %s12, 0
    %p121 = por %p119, %p120
    %p122 = scmp.ne.s32.totalorder %s114, %s116
    %p123 = scmp.eq.s32.totalorder %s17, 1
    %p124 = por %p122, %p123
    %p125 = scmp.ne.s32.totalorder %s116, %s117
    %p126 = scmp.eq.s32.totalorder %s17, 0
    %p127 = por %p125, %p126
    %p128 = scmp.ne.s32.totalorder %s116, %s117
    %p129 = scmp.eq.s32.totalorder %s18, 1
    %p130 = por %p128, %p129
    %p132 = scmp.ne.s32.totalorder %s117, %s131
    %p133 = scmp.eq.s32.totalorder %s18, 0
    %p134 = por %p132, %p133
    %s136 = sadd.s32 %s135, 1
    %p139 = scmp.eq.s32.totalorder %s12, 1
    %p140 = scmp.ne.s32.totalorder %s135, %s137
    %p141 = scmp.eq.s32.totalorder %s12, 0
    %p142 = por %p140, %p141
    %p143 = scmp.ne.s32.totalorder %s135, %s137
    %p144 = scmp.eq.s32.totalorder %s17, 1
    %p145 = por %p143, %p144
    %p146 = scmp.ne.s32.totalorder %s137, %s138
    %p147 = scmp.eq.s32.totalorder %s17, 0
    %p148 = por %p146, %p147
    %p149 = scmp.ne.s32.totalorder %s137, %s138
    %p150 = scmp.eq.s32.totalorder %s18, 1
    %p151 = por %p149, %p150
    %p153 = scmp.ne.s32.totalorder %s138, %s152
    %p154 = scmp.eq.s32.totalorder %s18, 0
    %p155 = por %p153, %p154
    %s156 = ssub.s32 %s12, %s19
    %p157 = scmp.eq.s32.totalorder %s156, 0
    %s159 = sadd.s32 %s158, 1
    %s160 = scalar_select %p157, %s158, %s159
    %p163 = pneg %p157
    %p164 = scmp.eq.s32.totalorder %s12, 1
    %p165 = por %p163, %p164
    %p166 = scmp.ne.s32.totalorder %s158, %s161
    %p167 = scmp.eq.s32.totalorder %s12, 0
    %p168 = por %p166, %p167
    %p169 = scmp.ne.s32.totalorder %s158, %s161
    %p170 = scmp.eq.s32.totalorder %s17, 1
    %p171 = por %p169, %p170
    %p172 = scmp.ne.s32.totalorder %s161, %s162
    %p173 = scmp.eq.s32.totalorder %s17, 0
    %p174 = por %p172, %p173
    %p175 = scmp.ne.s32.totalorder %s161, %s162
    %p176 = scmp.eq.s32.totalorder %s18, 1
    %p177 = por %p175, %p176
    %p179 = scmp.ne.s32.totalorder %s162, %s178
    %p180 = scmp.eq.s32.totalorder %s18, 0
    %p181 = por %p179, %p180
    %p182 = scmp.le.s32.totalorder 1, %s12
    %p183 = scmp.lt.s32.totalorder %s12, 3
    %p184 = pnand %p182, %p183
    %p185 = pneg %p184
    // Predicated region
    $region9: #{de_conv_block_3d_pallas.5} parent=5 // pred_check
      _
    $region10: #{de_conv_block_3d_pallas.5} parent=5 // pred_check_branch
      %187 = sbr.rel (%p184) target = $region12
    $region11: #{de_conv_block_3d_pallas.5} parent=5 // pred_region
      %s188 = ssub.s32 %s12, 1
      // Predicated region
      $region13: #{de_conv_block_3d_pallas.5} parent=11 // pred_check
        %p189 = pneg %p85
      $region14: #{de_conv_block_3d_pallas.5} parent=11 // pred_check_branch
        %191 = sbr.rel (%p189) target = $region16
      $region15: #{de_conv_block_3d_pallas.5} parent=11 // pred_region
        _
      $region16: #{de_conv_block_3d_pallas.5} parent=11 // pred_fallthru
        _
      // Predicated region
      $region17: #{de_conv_block_3d_pallas.5} parent=11 // pred_check
        %p192 = pneg %p106
      $region18: #{de_conv_block_3d_pallas.5} parent=11 // pred_check_branch
        %194 = sbr.rel (%p192) target = $region20
      $region19: #{de_conv_block_3d_pallas.5} parent=11 // pred_region
        _
      $region20: #{de_conv_block_3d_pallas.5} parent=11 // pred_fallthru
        _
      // Predicated region
      $region21: #{de_conv_block_3d_pallas.5} parent=11 // pred_check
        %p195 = pneg %p127
      $region22: #{de_conv_block_3d_pallas.5} parent=11 // pred_check_branch
        %197 = sbr.rel (%p195) target = $region24
      $region23: #{de_conv_block_3d_pallas.5} parent=11 // pred_region
        _
      $region24: #{de_conv_block_3d_pallas.5} parent=11 // pred_fallthru
        _
      // Predicated region
      $region25: #{de_conv_block_3d_pallas.5} parent=11 // pred_check
        %p198 = pneg %p148
      $region26: #{de_conv_block_3d_pallas.5} parent=11 // pred_check_branch
        %200 = sbr.rel (%p198) target = $region28
      $region27: #{de_conv_block_3d_pallas.5} parent=11 // pred_region
        _
      $region28: #{de_conv_block_3d_pallas.5} parent=11 // pred_fallthru
        _
    $region12: #{de_conv_block_3d_pallas.5} parent=5 // pred_fallthru
      _
    %p201 = scmp.lt.s32.totalorder %s12, 2
    // Predicated region
    $region29: #{de_conv_block_3d_pallas.5} parent=5 // pred_check
      %p202 = pneg %p201
    $region30: #{de_conv_block_3d_pallas.5} parent=5 // pred_check_branch
      %204 = sbr.rel (%p202) target = $region32
    $region31: #{de_conv_block_3d_pallas.5} parent=5 // pred_region
      // Predicated region
      $region33: #{de_conv_block_3d_pallas.5} parent=31 // pred_check
        %p205 = pneg %p32
      $region34: #{de_conv_block_3d_pallas.5} parent=31 // pred_check_branch
        %207 = sbr.rel (%p205) target = $region36
      $region35: #{de_conv_block_3d_pallas.5} parent=31 // pred_region
        %s208 = smul.u32 32, %s12
        %p209 = scmp.lt.s32.totalorder %s208, 63
        %s210 = scalar_select %p209, %s208, 63
        %s211 = smul.addr %s210, 2
        %s212 = smul.addr %s211, 8
        %s213 = scalar_lea.vmem %s0, %s212
        %s214 = smul.u32 32, %s12
      $region36: #{de_conv_block_3d_pallas.5} parent=31 // pred_fallthru
        _
      // Predicated region
      $region37: #{de_conv_block_3d_pallas.5} parent=31 // pred_check
        %p215 = pneg %p58
      $region38: #{de_conv_block_3d_pallas.5} parent=31 // pred_check_branch
        %217 = sbr.rel (%p215) target = $region40
      $region39: #{de_conv_block_3d_pallas.5} parent=31 // pred_region
        %s218 = smul.u32 32, %s12
        %p219 = scmp.lt.s32.totalorder %s218, 63
        %s220 = scalar_select %p219, %s218, 63
        %s221 = smul.addr %s220, 8
        %s222 = scalar_lea.vmem %s1, %s221
        %s223 = smul.u32 32, %s12
      $region40: #{de_conv_block_3d_pallas.5} parent=31 // pred_fallthru
        _
    $region32: #{de_conv_block_3d_pallas.5} parent=5 // pred_fallthru
      _
    %p224 = scmp.le.s32.totalorder 1, %s12
    %p225 = scmp.lt.s32.totalorder %s12, 3
    %p226 = pnand %p224, %p225
    %p227 = pneg %p226
    // Predicated region
    $region41: #{de_conv_block_3d_pallas.5} parent=5 // pred_check
      _
    $region42: #{de_conv_block_3d_pallas.5} parent=5 // pred_check_branch
      %229 = sbr.rel (%p226) target = $region44
    $region43: #{de_conv_block_3d_pallas.5} parent=5 // pred_region
      %s230 = ssub.s32 %s12, 1
      %s231 = smul.u32 32, %s17
      %p232 = scmp.lt.s32.totalorder %s231, 63
      %s233 = scalar_select %p232, %s231, 63
      %s234 = smul.addr %s233, 2
      %s235 = smul.addr %s234, 8
      %s236 = scalar_lea.vmem %s0, %s235
      %p237 = pneg %p38
      %p238 = pneg %p35
      %s239 = smul.u32 32, %s17
      %p240 = scmp.lt.s32.totalorder %s239, 63
      %s241 = scalar_select %p240, %s239, 63
      %s242 = smul.addr %s241, 8
      %s243 = scalar_lea.vmem %s1, %s242
      %p244 = pneg %p64
      %p245 = pneg %p61
      %p246 = pneg %p85
      %p247 = pneg %p82
      %p248 = pneg %p106
      %p249 = pneg %p103
      %p250 = pneg %p127
      %p251 = pneg %p124
      %p252 = pneg %p148
      %p253 = pneg %p145
      %p254 = pneg %p174
      %p255 = pneg %p171
      %s256 = smul.u32 32, %s17
      %p257 = scmp.lt.s32.totalorder %s256, 63
      %s258 = scalar_select %p257, %s256, 63
      %s259 = smul.addr %s258, 8
      %s260 = scalar_lea.vmem %s6, %s259
      %s261 = smul.u32 32, %s17
      %p262 = scmp.lt.s32.totalorder %s261, 63
      %s263 = scalar_select %p262, %s261, 63
      %s264 = smul.addr %s263, 2
      %s265 = smul.addr %s264, 8
      %s266 = scalar_lea.vmem %s0, %s265
      %s267 = smul.u32 32, %s17
      %s268 = smul.u32 32, %s17
      %p269 = scmp.lt.s32.totalorder %s268, 63
      %s270 = scalar_select %p269, %s268, 63
      %s271 = smul.addr %s270, 8
      %s272 = scalar_lea.vmem %s1, %s271
      %s273 = smul.u32 32, %s17
      %s274 = smul.u32 32, %s17
      %p275 = scmp.lt.s32.totalorder %s274, 63
      %s276 = scalar_select %p275, %s274, 63
      %s277 = smul.addr %s276, 8
      %s278 = scalar_lea.vmem %s6, %s277
      %s279 = smul.u32 32, %s17
      %v280 = vld [vmem:[%s266] sm:$0xff]
      %v281 = vld [vmem:[%s266 + $0x8] sm:$0xff]
      %v282 = vld [vmem:[%s266 + $0x10] sm:$0xff]
      %v283 = vld [vmem:[%s266 + $0x18] sm:$0xff]
      %v284 = vld [vmem:[%s266 + $0x20] sm:$0xff]
      %v285 = vld [vmem:[%s266 + $0x28] sm:$0xff]
      %v286 = vld [vmem:[%s266 + $0x30] sm:$0xff]
      %v287 = vld [vmem:[%s266 + $0x38] sm:$0xff]
      %v288 = vld [vmem:[%s266 + $0x40] sm:$0xff]
      %v289 = vld [vmem:[%s266 + $0x48] sm:$0xff]
      %v290 = vld [vmem:[%s266 + $0x50] sm:$0xff]
      %v291 = vld [vmem:[%s266 + $0x58] sm:$0xff]
      %v292 = vld [vmem:[%s266 + $0x60] sm:$0xff]
      %v293 = vld [vmem:[%s266 + $0x68] sm:$0xff]
      %v294 = vld [vmem:[%s266 + $0x70] sm:$0xff]
      %v295 = vld [vmem:[%s266 + $0x78] sm:$0xff]
      %v296 = vld [vmem:[%s266 + $0x80] sm:$0xff]
      %v297 = vld [vmem:[%s266 + $0x88] sm:$0xff]
      %v298 = vld [vmem:[%s266 + $0x90] sm:$0xff]
      %v299 = vld [vmem:[%s266 + $0x98] sm:$0xff]
      %v300 = vld [vmem:[%s266 + $0xa0] sm:$0xff]
      %v301 = vld [vmem:[%s266 + $0xa8] sm:$0xff]
      %v302 = vld [vmem:[%s266 + $0xb0] sm:$0xff]
      %v303 = vld [vmem:[%s266 + $0xb8] sm:$0xff]
      %v304 = vld [vmem:[%s266 + $0xc0] sm:$0xff]
      %v305 = vld [vmem:[%s266 + $0xc8] sm:$0xff]
      %v306 = vld [vmem:[%s266 + $0xd0] sm:$0xff]
      %v307 = vld [vmem:[%s266 + $0xd8] sm:$0xff]
      %v308 = vld [vmem:[%s266 + $0xe0] sm:$0xff]
      %v309 = vld [vmem:[%s266 + $0xe8] sm:$0xff]
      %v310 = vld [vmem:[%s266 + $0xf0] sm:$0xff]
      %v311 = vld [vmem:[%s266 + $0xf8] sm:$0xff]
      %v312 = vld [vmem:[%s266 + $0x100] sm:$0xff]
      %v313 = vld [vmem:[%s266 + $0x108] sm:$0xff]
      %v314 = vld [vmem:[%s266 + $0x110] sm:$0xff]
      %v315 = vld [vmem:[%s266 + $0x118] sm:$0xff]
      %v316 = vld [vmem:[%s266 + $0x120] sm:$0xff]
      %v317 = vld [vmem:[%s266 + $0x128] sm:$0xff]
      %v318 = vld [vmem:[%s266 + $0x130] sm:$0xff]
      %v319 = vld [vmem:[%s266 + $0x138] sm:$0xff]
      %v320 = vld [vmem:[%s266 + $0x140] sm:$0xff]
      %v321 = vld [vmem:[%s266 + $0x148] sm:$0xff]
      %v322 = vld [vmem:[%s266 + $0x150] sm:$0xff]
      %v323 = vld [vmem:[%s266 + $0x158] sm:$0xff]
      %v324 = vld [vmem:[%s266 + $0x160] sm:$0xff]
      %v325 = vld [vmem:[%s266 + $0x168] sm:$0xff]
      %v326 = vld [vmem:[%s266 + $0x170] sm:$0xff]
      %v327 = vld [vmem:[%s266 + $0x178] sm:$0xff]
      %v328 = vld [vmem:[%s266 + $0x180] sm:$0xff]
      %v329 = vld [vmem:[%s266 + $0x188] sm:$0xff]
      %v330 = vld [vmem:[%s266 + $0x190] sm:$0xff]
      %v331 = vld [vmem:[%s266 + $0x198] sm:$0xff]
      %v332 = vld [vmem:[%s266 + $0x1a0] sm:$0xff]
      %v333 = vld [vmem:[%s266 + $0x1a8] sm:$0xff]
      %v334 = vld [vmem:[%s266 + $0x1b0] sm:$0xff]
      %v335 = vld [vmem:[%s266 + $0x1b8] sm:$0xff]
      %v336 = vld [vmem:[%s266 + $0x1c0] sm:$0xff]
      %v337 = vld [vmem:[%s266 + $0x1c8] sm:$0xff]
      %v338 = vld [vmem:[%s266 + $0x1d0] sm:$0xff]
      %v339 = vld [vmem:[%s266 + $0x1d8] sm:$0xff]
      %v340 = vld [vmem:[%s266 + $0x1e0] sm:$0xff]
      %v341 = vld [vmem:[%s266 + $0x1e8] sm:$0xff]
      %v342 = vld [vmem:[%s266 + $0x1f0] sm:$0xff]
      %v343 = vld [vmem:[%s266 + $0x1f8] sm:$0xff]
      %v344 = vld [vmem:[%s2] sm:$0xff]
      %v345 = vld [vmem:[%s2 + $0x8] sm:$0xff]
      %v346 = vld [vmem:[%s2 + $0x10] sm:$0xff]
      %v347 = vld [vmem:[%s2 + $0x18] sm:$0xff]
      %v348 = vld [vmem:[%s2 + $0x20] sm:$0xff]
      %v349 = vld [vmem:[%s2 + $0x28] sm:$0xff]
      %v350 = vld [vmem:[%s2 + $0x30] sm:$0xff]
      %v351 = vld [vmem:[%s2 + $0x38] sm:$0xff]
      %v352 = vld [vmem:[%s2 + $0x40] sm:$0xff]
      %v353 = vld [vmem:[%s2 + $0x48] sm:$0xff]
      %v354 = vld [vmem:[%s2 + $0x50] sm:$0xff]
      %v355 = vld [vmem:[%s2 + $0x58] sm:$0xff]
      %v356 = vld [vmem:[%s2 + $0x60] sm:$0xff]
      %v357 = vld [vmem:[%s2 + $0x68] sm:$0xff]
      %v358 = vld [vmem:[%s2 + $0x70] sm:$0xff]
      %v359 = vld [vmem:[%s2 + $0x78] sm:$0xff]
      %v360 = vld [vmem:[%s2 + $0x80] sm:$0xff]
      %v361 = vld [vmem:[%s2 + $0x88] sm:$0xff]
      %v362 = vld [vmem:[%s2 + $0x90] sm:$0xff]
      %v363 = vld [vmem:[%s2 + $0x98] sm:$0xff]
      %v364 = vld [vmem:[%s2 + $0xa0] sm:$0xff]
      %v365 = vld [vmem:[%s2 + $0xa8] sm:$0xff]
      %v366 = vld [vmem:[%s2 + $0xb0] sm:$0xff]
      %v367 = vld [vmem:[%s2 + $0xb8] sm:$0xff]
      %v368 = vld [vmem:[%s2 + $0xc0] sm:$0xff]
      %v369 = vld [vmem:[%s2 + $0xc8] sm:$0xff]
      %v370 = vld [vmem:[%s2 + $0xd0] sm:$0xff]
      %v371 = vld [vmem:[%s3] sm:$0x1]
      %v373 = vlaneseq
      %v374 = vshrl.u32 %v373, 7
      %v375 = vsub.s32 0, %v374
      %v376 = vrot.slane %v371, %v375
      %vm378 = vcmask 719872
      %v380 = vsel %vm378, %v281, 0
      %v383 = vsel %vm378, %v283, 0
      %v386 = vsel %vm378, %v285, 0
      %v389 = vsel %vm378, %v287, 0
      %v392 = vsel %vm378, %v289, 0
      %v395 = vsel %vm378, %v291, 0
      %v398 = vsel %vm378, %v293, 0
      %v401 = vsel %vm378, %v295, 0
      %v404 = vsel %vm378, %v297, 0
      %v407 = vsel %vm378, %v299, 0
      %v410 = vsel %vm378, %v301, 0
      %v413 = vsel %vm378, %v303, 0
      %v416 = vsel %vm378, %v305, 0
      %v419 = vsel %vm378, %v307, 0
      %v422 = vsel %vm378, %v309, 0
      %v425 = vsel %vm378, %v311, 0
      %v428 = vsel %vm378, %v313, 0
      %v431 = vsel %vm378, %v315, 0
      %v434 = vsel %vm378, %v317, 0
      %v437 = vsel %vm378, %v319, 0
      %v440 = vsel %vm378, %v321, 0
      %v443 = vsel %vm378, %v323, 0
      %v446 = vsel %vm378, %v325, 0
      %v449 = vsel %vm378, %v327, 0
      %v452 = vsel %vm378, %v329, 0
      %v455 = vsel %vm378, %v331, 0
      %v458 = vsel %vm378, %v333, 0
      %v461 = vsel %vm378, %v335, 0
      %v464 = vsel %vm378, %v337, 0
      %v467 = vsel %vm378, %v339, 0
      %v470 = vsel %vm378, %v341, 0
      %v473 = vsel %vm378, %v343, 0
      %475 = vmatprep.subr.mxu0 0.0
      %476 = vmatpush1.msra.mxu0 %v359
      %477 = vmatprep.subr.mxu0 0.0
      %478 = vmatpush1.msra.mxu0 %v358
      %479 = vmatprep.subr.mxu0 0.0
      %480 = vmatpush1.msra.mxu0 %v357
      %481 = vmatprep.subr.mxu0 0.0
      %482 = vmatpush1.msra.mxu0 %v356
      %483 = vmatprep.subr.mxu0 0.0
      %484 = vmatpush1.msra.mxu0 %v355
      %485 = vmatprep.subr.mxu0 0.0
      %486 = vmatpush1.msra.mxu0 %v354
      %487 = vmatprep.subr.mxu0 0.0
      %488 = vmatpush1.msra.mxu0 %v353
      %489 = vmatprep.subr.mxu0 0.0
      %490 = vmatpush1.msra.mxu0 %v352
      %491 = vmatprep.subr.mxu0 0.0
      %492 = vmatpush1.msra.mxu0 %v351
      %493 = vmatprep.subr.mxu0 0.0
      %494 = vmatpush1.msra.mxu0 %v350
      %495 = vmatprep.subr.mxu0 0.0
      %496 = vmatpush1.msra.mxu0 %v349
      %497 = vmatprep.subr.mxu0 0.0
      %498 = vmatpush1.msra.mxu0 %v348
      %499 = vmatprep.subr.mxu0 0.0
      %500 = vmatpush1.msra.mxu0 %v347
      %501 = vmatprep.subr.mxu0 0.0
      %502 = vmatpush1.msra.mxu0 %v346
      %503 = vmatprep.subr.mxu0 0.0
      %504 = vmatpush1.msra.mxu0 %v345
      %505 = vmatprep.subr.mxu0 0.0
      %506 = vmatpush1.msra.mxu0 %v344
      %507 = vmatprep.subr.mxu0 0.0
      %508 = vmatpush2.msra.mxu0 0.0
      %509 = vmatprep.subr.mxu0 0.0
      %510 = vmatpush2.msra.mxu0 0.0
      %511 = vmatprep.subr.mxu0 0.0
      %512 = vmatpush2.msra.mxu0 0.0
      %513 = vmatprep.subr.mxu0 0.0
      %514 = vmatpush2.msra.mxu0 0.0
      %515 = vmatprep.subr.mxu0 0.0
      %516 = vmatpush2.msra.mxu0 0.0
      %517 = vmatprep.subr.mxu0 0.0
      %518 = vmatpush2.msra.mxu0 %v370
      %519 = vmatprep.subr.mxu0 0.0
      %520 = vmatpush2.msra.mxu0 %v369
      %521 = vmatprep.subr.mxu0 0.0
      %522 = vmatpush2.msra.mxu0 %v368
      %523 = vmatprep.subr.mxu0 0.0
      %524 = vmatpush2.msra.mxu0 %v367
      %525 = vmatprep.subr.mxu0 0.0
      %526 = vmatpush2.msra.mxu0 %v366
      %527 = vmatprep.subr.mxu0 0.0
      %528 = vmatpush2.msra.mxu0 %v365
      %529 = vmatprep.subr.mxu0 0.0
      %530 = vmatpush2.msra.mxu0 %v364
      %531 = vmatprep.subr.mxu0 0.0
      %532 = vmatpush2.msra.mxu0 %v363
      %533 = vmatprep.subr.mxu0 0.0
      %534 = vmatpush2.msra.mxu0 %v362
      %535 = vmatprep.subr.mxu0 0.0
      %536 = vmatpush2.msra.mxu0 %v361
      %537 = vmatprep.subr.mxu0 0.0
      %538 = vmatpush2.msra.mxu0 %v360
      %539 = vmatprep.mubr.f32.mxu0 %v380
      %540 = vmatmul.mubr.f32.gmra.mxu0 %v280
      %v541 = vpop.f32.mrf.mxu0
      %v542 = vadd.f32 %v376, %v541
      %v543 = vpop.f32.mrf.mxu0
      %544 = vmatprep.mubr.f32.mxu0 %v383
      %545 = vmatmul.mubr.f32.gmra.mxu0 %v282
      %v546 = vpop.f32.mrf.mxu0
      %v547 = vadd.f32 %v376, %v546
      %v548 = vpop.f32.mrf.mxu0
      %549 = vmatprep.mubr.f32.mxu0 %v386
      %550 = vmatmul.mubr.f32.gmra.mxu0 %v284
      %v551 = vpop.f32.mrf.mxu0
      %v552 = vadd.f32 %v376, %v551
      %v553 = vpop.f32.mrf.mxu0
      %554 = vmatprep.mubr.f32.mxu0 %v389
      %555 = vmatmul.mubr.f32.gmra.mxu0 %v286
      %v556 = vpop.f32.mrf.mxu0
      %v557 = vadd.f32 %v376, %v556
      %v558 = vpop.f32.mrf.mxu0
      %559 = vmatprep.mubr.f32.mxu0 %v392
      %560 = vmatmul.mubr.f32.gmra.mxu0 %v288
      %v561 = vpop.f32.mrf.mxu0
      %v562 = vadd.f32 %v376, %v561
      %v563 = vpop.f32.mrf.mxu0
      %564 = vmatprep.mubr.f32.mxu0 %v395
      %565 = vmatmul.mubr.f32.gmra.mxu0 %v290
      %v566 = vpop.f32.mrf.mxu0
      %v567 = vadd.f32 %v376, %v566
      %v568 = vpop.f32.mrf.mxu0
      %569 = vmatprep.mubr.f32.mxu0 %v398
      %570 = vmatmul.mubr.f32.gmra.mxu0 %v292
      %v571 = vpop.f32.mrf.mxu0
      %v572 = vadd.f32 %v376, %v571
      %v573 = vpop.f32.mrf.mxu0
      %574 = vmatprep.mubr.f32.mxu0 %v401
      %575 = vmatmul.mubr.f32.gmra.mxu0 %v294
      %v576 = vpop.f32.mrf.mxu0
      %v577 = vadd.f32 %v376, %v576
      %v578 = vpop.f32.mrf.mxu0
      %579 = vmatprep.mubr.f32.mxu0 %v404
      %580 = vmatmul.mubr.f32.gmra.mxu0 %v296
      %v581 = vpop.f32.mrf.mxu0
      %v582 = vadd.f32 %v376, %v581
      %v583 = vpop.f32.mrf.mxu0
      %584 = vmatprep.mubr.f32.mxu0 %v407
      %585 = vmatmul.mubr.f32.gmra.mxu0 %v298
      %v586 = vpop.f32.mrf.mxu0
      %v587 = vadd.f32 %v376, %v586
      %v588 = vpop.f32.mrf.mxu0
      %589 = vmatprep.mubr.f32.mxu0 %v410
      %590 = vmatmul.mubr.f32.gmra.mxu0 %v300
      %v591 = vpop.f32.mrf.mxu0
      %v592 = vadd.f32 %v376, %v591
      %v593 = vpop.f32.mrf.mxu0
      %594 = vmatprep.mubr.f32.mxu0 %v413
      %595 = vmatmul.mubr.f32.gmra.mxu0 %v302
      %v596 = vpop.f32.mrf.mxu0
      %v597 = vadd.f32 %v376, %v596
      %v598 = vpop.f32.mrf.mxu0
      %599 = vmatprep.mubr.f32.mxu0 %v416
      %600 = vmatmul.mubr.f32.gmra.mxu0 %v304
      %v601 = vpop.f32.mrf.mxu0
      %v602 = vadd.f32 %v376, %v601
      %v603 = vpop.f32.mrf.mxu0
      %604 = vmatprep.mubr.f32.mxu0 %v419
      %605 = vmatmul.mubr.f32.gmra.mxu0 %v306
      %v606 = vpop.f32.mrf.mxu0
      %v607 = vadd.f32 %v376, %v606
      %v608 = vpop.f32.mrf.mxu0
      %609 = vmatprep.mubr.f32.mxu0 %v422
      %610 = vmatmul.mubr.f32.gmra.mxu0 %v308
      %v611 = vpop.f32.mrf.mxu0
      %v612 = vadd.f32 %v376, %v611
      %v613 = vpop.f32.mrf.mxu0
      %614 = vmatprep.mubr.f32.mxu0 %v425
      %615 = vmatmul.mubr.f32.gmra.mxu0 %v310
      %v616 = vpop.f32.mrf.mxu0
      %v617 = vadd.f32 %v376, %v616
      %v618 = vpop.f32.mrf.mxu0
      %619 = vmatprep.mubr.f32.mxu0 %v428
      %620 = vmatmul.mubr.f32.gmra.mxu0 %v312
      %v621 = vpop.f32.mrf.mxu0
      %v622 = vadd.f32 %v376, %v621
      %v623 = vpop.f32.mrf.mxu0
      %624 = vmatprep.mubr.f32.mxu0 %v431
      %625 = vmatmul.mubr.f32.gmra.mxu0 %v314
      %v626 = vpop.f32.mrf.mxu0
      %v627 = vadd.f32 %v376, %v626
      %v628 = vpop.f32.mrf.mxu0
      %629 = vmatprep.mubr.f32.mxu0 %v434
      %630 = vmatmul.mubr.f32.gmra.mxu0 %v316
      %v631 = vpop.f32.mrf.mxu0
      %v632 = vadd.f32 %v376, %v631
      %v633 = vpop.f32.mrf.mxu0
      %634 = vmatprep.mubr.f32.mxu0 %v437
      %635 = vmatmul.mubr.f32.gmra.mxu0 %v318
      %v636 = vpop.f32.mrf.mxu0
      %v637 = vadd.f32 %v376, %v636
      %v638 = vpop.f32.mrf.mxu0
      %639 = vmatprep.mubr.f32.mxu0 %v440
      %640 = vmatmul.mubr.f32.gmra.mxu0 %v320
      %v641 = vpop.f32.mrf.mxu0
      %v642 = vadd.f32 %v376, %v641
      %v643 = vpop.f32.mrf.mxu0
      %644 = vmatprep.mubr.f32.mxu0 %v443
      %645 = vmatmul.mubr.f32.gmra.mxu0 %v322
      %v646 = vpop.f32.mrf.mxu0
      %v647 = vadd.f32 %v376, %v646
      %v648 = vpop.f32.mrf.mxu0
      %649 = vmatprep.mubr.f32.mxu0 %v446
      %650 = vmatmul.mubr.f32.gmra.mxu0 %v324
      %v651 = vpop.f32.mrf.mxu0
      %v652 = vadd.f32 %v376, %v651
      %v653 = vpop.f32.mrf.mxu0
      %654 = vmatprep.mubr.f32.mxu0 %v449
      %655 = vmatmul.mubr.f32.gmra.mxu0 %v326
      %v656 = vpop.f32.mrf.mxu0
      %v657 = vadd.f32 %v376, %v656
      %v658 = vpop.f32.mrf.mxu0
      %659 = vmatprep.mubr.f32.mxu0 %v452
      %660 = vmatmul.mubr.f32.gmra.mxu0 %v328
      %v661 = vpop.f32.mrf.mxu0
      %v662 = vadd.f32 %v376, %v661
      %v663 = vpop.f32.mrf.mxu0
      %664 = vmatprep.mubr.f32.mxu0 %v455
      %665 = vmatmul.mubr.f32.gmra.mxu0 %v330
      %v666 = vpop.f32.mrf.mxu0
      %v667 = vadd.f32 %v376, %v666
      %v668 = vpop.f32.mrf.mxu0
      %669 = vmatprep.mubr.f32.mxu0 %v458
      %670 = vmatmul.mubr.f32.gmra.mxu0 %v332
      %v671 = vpop.f32.mrf.mxu0
      %v672 = vadd.f32 %v376, %v671
      %v673 = vpop.f32.mrf.mxu0
      %674 = vmatprep.mubr.f32.mxu0 %v461
      %675 = vmatmul.mubr.f32.gmra.mxu0 %v334
      %v676 = vpop.f32.mrf.mxu0
      %v677 = vadd.f32 %v376, %v676
      %v678 = vpop.f32.mrf.mxu0
      %679 = vmatprep.mubr.f32.mxu0 %v464
      %680 = vmatmul.mubr.f32.gmra.mxu0 %v336
      %v681 = vpop.f32.mrf.mxu0
      %v682 = vadd.f32 %v376, %v681
      %v683 = vpop.f32.mrf.mxu0
      %684 = vmatprep.mubr.f32.mxu0 %v467
      %685 = vmatmul.mubr.f32.gmra.mxu0 %v338
      %v686 = vpop.f32.mrf.mxu0
      %v687 = vadd.f32 %v376, %v686
      %v688 = vpop.f32.mrf.mxu0
      %689 = vmatprep.mubr.f32.mxu0 %v470
      %690 = vmatmul.mubr.f32.gmra.mxu0 %v340
      %v691 = vpop.f32.mrf.mxu0
      %v692 = vadd.f32 %v376, %v691
      %v693 = vpop.f32.mrf.mxu0
      %694 = vmatprep.mubr.f32.mxu0 %v473
      %695 = vmatmul.mubr.f32.gmra.mxu0 %v342
      %v696 = vpop.f32.mrf.mxu0
      %v697 = vadd.f32 %v376, %v696
      %v698 = vpop.f32.mrf.mxu0
      %699 = vdwg.mxu0
      %vm700 = vcmp.ge.f32.partialorder %v542, 0.0
      %vm701 = vcmp.ge.f32.partialorder %v547, 0.0
      %vm702 = vcmp.ge.f32.partialorder %v552, 0.0
      %vm703 = vcmp.ge.f32.partialorder %v557, 0.0
      %vm704 = vcmp.ge.f32.partialorder %v562, 0.0
      %vm705 = vcmp.ge.f32.partialorder %v567, 0.0
      %vm706 = vcmp.ge.f32.partialorder %v572, 0.0
      %vm707 = vcmp.ge.f32.partialorder %v577, 0.0
      %vm708 = vcmp.ge.f32.partialorder %v582, 0.0
      %vm709 = vcmp.ge.f32.partialorder %v587, 0.0
      %vm710 = vcmp.ge.f32.partialorder %v592, 0.0
      %vm711 = vcmp.ge.f32.partialorder %v597, 0.0
      %vm712 = vcmp.ge.f32.partialorder %v602, 0.0
      %vm713 = vcmp.ge.f32.partialorder %v607, 0.0
      %vm714 = vcmp.ge.f32.partialorder %v612, 0.0
      %vm715 = vcmp.ge.f32.partialorder %v617, 0.0
      %vm716 = vcmp.ge.f32.partialorder %v622, 0.0
      %vm717 = vcmp.ge.f32.partialorder %v627, 0.0
      %vm718 = vcmp.ge.f32.partialorder %v632, 0.0
      %vm719 = vcmp.ge.f32.partialorder %v637, 0.0
      %vm720 = vcmp.ge.f32.partialorder %v642, 0.0
      %vm721 = vcmp.ge.f32.partialorder %v647, 0.0
      %vm722 = vcmp.ge.f32.partialorder %v652, 0.0
      %vm723 = vcmp.ge.f32.partialorder %v657, 0.0
      %vm724 = vcmp.ge.f32.partialorder %v662, 0.0
      %vm725 = vcmp.ge.f32.partialorder %v667, 0.0
      %vm726 = vcmp.ge.f32.partialorder %v672, 0.0
      %vm727 = vcmp.ge.f32.partialorder %v677, 0.0
      %vm728 = vcmp.ge.f32.partialorder %v682, 0.0
      %vm729 = vcmp.ge.f32.partialorder %v687, 0.0
      %vm730 = vcmp.ge.f32.partialorder %v692, 0.0
      %vm731 = vcmp.ge.f32.partialorder %v697, 0.0
      %v732 = vmul.f32 %v542, 0.01
      %v733 = vmul.f32 %v547, 0.01
      %v734 = vmul.f32 %v552, 0.01
      %v735 = vmul.f32 %v557, 0.01
      %v736 = vmul.f32 %v562, 0.01
      %v737 = vmul.f32 %v567, 0.01
      %v738 = vmul.f32 %v572, 0.01
      %v739 = vmul.f32 %v577, 0.01
      %v740 = vmul.f32 %v582, 0.01
      %v741 = vmul.f32 %v587, 0.01
      %v742 = vmul.f32 %v592, 0.01
      %v743 = vmul.f32 %v597, 0.01
      %v744 = vmul.f32 %v602, 0.01
      %v745 = vmul.f32 %v607, 0.01
      %v746 = vmul.f32 %v612, 0.01
      %v747 = vmul.f32 %v617, 0.01
      %v748 = vmul.f32 %v622, 0.01
      %v749 = vmul.f32 %v627, 0.01
      %v750 = vmul.f32 %v632, 0.01
      %v751 = vmul.f32 %v637, 0.01
      %v752 = vmul.f32 %v642, 0.01
      %v753 = vmul.f32 %v647, 0.01
      %v754 = vmul.f32 %v652, 0.01
      %v755 = vmul.f32 %v657, 0.01
      %v756 = vmul.f32 %v662, 0.01
      %v757 = vmul.f32 %v667, 0.01
      %v758 = vmul.f32 %v672, 0.01
      %v759 = vmul.f32 %v677, 0.01
      %v760 = vmul.f32 %v682, 0.01
      %v761 = vmul.f32 %v687, 0.01
      %v762 = vmul.f32 %v692, 0.01
      %v763 = vmul.f32 %v697, 0.01
      %v764 = vsel %vm700, %v542, %v732
      %v765 = vsel %vm701, %v547, %v733
      %v766 = vsel %vm702, %v552, %v734
      %v767 = vsel %vm703, %v557, %v735
      %v768 = vsel %vm704, %v562, %v736
      %v769 = vsel %vm705, %v567, %v737
      %v770 = vsel %vm706, %v572, %v738
      %v771 = vsel %vm707, %v577, %v739
      %v772 = vsel %vm708, %v582, %v740
      %v773 = vsel %vm709, %v587, %v741
      %v774 = vsel %vm710, %v592, %v742
      %v775 = vsel %vm711, %v597, %v743
      %v776 = vsel %vm712, %v602, %v744
      %v777 = vsel %vm713, %v607, %v745
      %v778 = vsel %vm714, %v612, %v746
      %v779 = vsel %vm715, %v617, %v747
      %v780 = vsel %vm716, %v622, %v748
      %v781 = vsel %vm717, %v627, %v749
      %v782 = vsel %vm718, %v632, %v750
      %v783 = vsel %vm719, %v637, %v751
      %v784 = vsel %vm720, %v642, %v752
      %v785 = vsel %vm721, %v647, %v753
      %v786 = vsel %vm722, %v652, %v754
      %v787 = vsel %vm723, %v657, %v755
      %v788 = vsel %vm724, %v662, %v756
      %v789 = vsel %vm725, %v667, %v757
      %v790 = vsel %vm726, %v672, %v758
      %v791 = vsel %vm727, %v677, %v759
      %v792 = vsel %vm728, %v682, %v760
      %v793 = vsel %vm729, %v687, %v761
      %v794 = vsel %vm730, %v692, %v762
      %v795 = vsel %vm731, %v697, %v763
      %v796 = vld [vmem:[%s272] sm:$0xff]
      %v797 = vld [vmem:[%s272 + $0x8] sm:$0xff]
      %v798 = vld [vmem:[%s272 + $0x10] sm:$0xff]
      %v799 = vld [vmem:[%s272 + $0x18] sm:$0xff]
      %v800 = vld [vmem:[%s272 + $0x20] sm:$0xff]
      %v801 = vld [vmem:[%s272 + $0x28] sm:$0xff]
      %v802 = vld [vmem:[%s272 + $0x30] sm:$0xff]
      %v803 = vld [vmem:[%s272 + $0x38] sm:$0xff]
      %v804 = vld [vmem:[%s272 + $0x40] sm:$0xff]
      %v805 = vld [vmem:[%s272 + $0x48] sm:$0xff]
      %v806 = vld [vmem:[%s272 + $0x50] sm:$0xff]
      %v807 = vld [vmem:[%s272 + $0x58] sm:$0xff]
      %v808 = vld [vmem:[%s272 + $0x60] sm:$0xff]
      %v809 = vld [vmem:[%s272 + $0x68] sm:$0xff]
      %v810 = vld [vmem:[%s272 + $0x70] sm:$0xff]
      %v811 = vld [vmem:[%s272 + $0x78] sm:$0xff]
      %v812 = vld [vmem:[%s272 + $0x80] sm:$0xff]
      %v813 = vld [vmem:[%s272 + $0x88] sm:$0xff]
      %v814 = vld [vmem:[%s272 + $0x90] sm:$0xff]
      %v815 = vld [vmem:[%s272 + $0x98] sm:$0xff]
      %v816 = vld [vmem:[%s272 + $0xa0] sm:$0xff]
      %v817 = vld [vmem:[%s272 + $0xa8] sm:$0xff]
      %v818 = vld [vmem:[%s272 + $0xb0] sm:$0xff]
      %v819 = vld [vmem:[%s272 + $0xb8] sm:$0xff]
      %v820 = vld [vmem:[%s272 + $0xc0] sm:$0xff]
      %v821 = vld [vmem:[%s272 + $0xc8] sm:$0xff]
      %v822 = vld [vmem:[%s272 + $0xd0] sm:$0xff]
      %v823 = vld [vmem:[%s272 + $0xd8] sm:$0xff]
      %v824 = vld [vmem:[%s272 + $0xe0] sm:$0xff]
      %v825 = vld [vmem:[%s272 + $0xe8] sm:$0xff]
      %v826 = vld [vmem:[%s272 + $0xf0] sm:$0xff]
      %v827 = vld [vmem:[%s272 + $0xf8] sm:$0xff]
      %v828 = vld [vmem:[%s4] sm:$0xf]
      %v829 = vld [vmem:[%s5] sm:$0x1]
      %v831 = vlaneseq
      %v832 = vshrl.u32 %v831, 7
      %v833 = vsub.s32 0, %v832
      %v834 = vrot.slane %v829, %v833
      %vm836 = vcmask 31744
      %v838 = vsel %vm836, %v796, 0
      %v841 = vsel %vm836, %v797, 0
      %v844 = vsel %vm836, %v798, 0
      %v847 = vsel %vm836, %v799, 0
      %v850 = vsel %vm836, %v800, 0
      %v853 = vsel %vm836, %v801, 0
      %v856 = vsel %vm836, %v802, 0
      %v859 = vsel %vm836, %v803, 0
      %v862 = vsel %vm836, %v804, 0
      %v865 = vsel %vm836, %v805, 0
      %v868 = vsel %vm836, %v806, 0
      %v871 = vsel %vm836, %v807, 0
      %v874 = vsel %vm836, %v808, 0
      %v877 = vsel %vm836, %v809, 0
      %v880 = vsel %vm836, %v810, 0
      %v883 = vsel %vm836, %v811, 0
      %v886 = vsel %vm836, %v812, 0
      %v889 = vsel %vm836, %v813, 0
      %v892 = vsel %vm836, %v814, 0
      %v895 = vsel %vm836, %v815, 0
      %v898 = vsel %vm836, %v816, 0
      %v901 = vsel %vm836, %v817, 0
      %v904 = vsel %vm836, %v818, 0
      %v907 = vsel %vm836, %v819, 0
      %v910 = vsel %vm836, %v820, 0
      %v913 = vsel %vm836, %v821, 0
      %v916 = vsel %vm836, %v822, 0
      %v919 = vsel %vm836, %v823, 0
      %v922 = vsel %vm836, %v824, 0
      %v925 = vsel %vm836, %v825, 0
      %v928 = vsel %vm836, %v826, 0
      %v931 = vsel %vm836, %v827, 0
      %vm933 = vcmask 1043456
      %v935 = vsel %vm933, %v828, 0
      %937 = vmatprep.subr.mxu0 0.0
      %938 = vmatpush1.msra.mxu0 0.0
      %939 = vmatprep.subr.mxu0 0.0
      %940 = vmatpush1.msra.mxu0 0.0
      %941 = vmatprep.subr.mxu0 0.0
      %942 = vmatpush1.msra.mxu0 0.0
      %943 = vmatprep.subr.mxu0 0.0
      %944 = vmatpush1.msra.mxu0 0.0
      %945 = vmatprep.subr.mxu0 0.0
      %946 = vmatpush1.msra.mxu0 0.0
      %947 = vmatprep.subr.mxu0 0.0
      %948 = vmatpush1.msra.mxu0 0.0
      %949 = vmatprep.subr.mxu0 0.0
      %950 = vmatpush1.msra.mxu0 0.0
      %951 = vmatprep.subr.mxu0 0.0
      %952 = vmatpush1.msra.mxu0 0.0
      %953 = vmatprep.subr.mxu0 0.0
      %954 = vmatpush1.msra.mxu0 0.0
      %955 = vmatprep.subr.mxu0 0.0
      %956 = vmatpush1.msra.mxu0 0.0
      %957 = vmatprep.subr.mxu0 0.0
      %958 = vmatpush1.msra.mxu0 0.0
      %959 = vmatprep.subr.mxu0 0.0
      %960 = vmatpush1.msra.mxu0 0.0
      %961 = vmatprep.subr.mxu0 0.0
      %962 = vmatpush1.msra.mxu0 0.0
      %963 = vmatprep.subr.mxu0 0.0
      %964 = vmatpush1.msra.mxu0 0.0
      %965 = vmatprep.subr.mxu0 0.0
      %966 = vmatpush1.msra.mxu0 0.0
      %967 = vmatprep.subr.mxu0 0.0
      %968 = vmatpush1.msra.mxu0 %v935
      %969 = vmatprep.subr.mxu0 0.0
      %970 = vmatpush2.msra.mxu0 0.0
      %971 = vmatprep.subr.mxu0 0.0
      %972 = vmatpush2.msra.mxu0 0.0
      %973 = vmatprep.subr.mxu0 0.0
      %974 = vmatpush2.msra.mxu0 0.0
      %975 = vmatprep.subr.mxu0 0.0
      %976 = vmatpush2.msra.mxu0 0.0
      %977 = vmatprep.subr.mxu0 0.0
      %978 = vmatpush2.msra.mxu0 0.0
      %979 = vmatprep.subr.mxu0 0.0
      %980 = vmatpush2.msra.mxu0 0.0
      %981 = vmatprep.subr.mxu0 0.0
      %982 = vmatpush2.msra.mxu0 0.0
      %983 = vmatprep.subr.mxu0 0.0
      %984 = vmatpush2.msra.mxu0 0.0
      %985 = vmatprep.subr.mxu0 0.0
      %986 = vmatpush2.msra.mxu0 0.0
      %987 = vmatprep.subr.mxu0 0.0
      %988 = vmatpush2.msra.mxu0 0.0
      %989 = vmatprep.subr.mxu0 0.0
      %990 = vmatpush2.msra.mxu0 0.0
      %991 = vmatprep.subr.mxu0 0.0
      %992 = vmatpush2.msra.mxu0 0.0
      %993 = vmatprep.subr.mxu0 0.0
      %994 = vmatpush2.msra.mxu0 0.0
      %995 = vmatprep.subr.mxu0 0.0
      %996 = vmatpush2.msra.mxu0 0.0
      %997 = vmatprep.subr.mxu0 0.0
      %998 = vmatpush2.msra.mxu0 0.0
      %999 = vmatprep.subr.mxu0 0.0
      %1000 = vmatpush2.msra.mxu0 0.0
      %1001 = vmatprep.mubr.f32.mxu0 0.0
      %1002 = vmatmul.mubr.f32.gmra.mxu0 %v838
      %v1003 = vpop.f32.mrf.mxu0
      %v1004 = vadd.f32 %v834, %v1003
      %v1005 = vpop.f32.mrf.mxu0
      %1006 = vmatprep.mubr.f32.mxu0 0.0
      %1007 = vmatmul.mubr.f32.gmra.mxu0 %v841
      %v1008 = vpop.f32.mrf.mxu0
      %v1009 = vadd.f32 %v834, %v1008
      %v1010 = vpop.f32.mrf.mxu0
      %1011 = vmatprep.mubr.f32.mxu0 0.0
      %1012 = vmatmul.mubr.f32.gmra.mxu0 %v844
      %v1013 = vpop.f32.mrf.mxu0
      %v1014 = vadd.f32 %v834, %v1013
      %v1015 = vpop.f32.mrf.mxu0
      %1016 = vmatprep.mubr.f32.mxu0 0.0
      %1017 = vmatmul.mubr.f32.gmra.mxu0 %v847
      %v1018 = vpop.f32.mrf.mxu0
      %v1019 = vadd.f32 %v834, %v1018
      %v1020 = vpop.f32.mrf.mxu0
      %1021 = vmatprep.mubr.f32.mxu0 0.0
      %1022 = vmatmul.mubr.f32.gmra.mxu0 %v850
      %v1023 = vpop.f32.mrf.mxu0
      %v1024 = vadd.f32 %v834, %v1023
      %v1025 = vpop.f32.mrf.mxu0
      %1026 = vmatprep.mubr.f32.mxu0 0.0
      %1027 = vmatmul.mubr.f32.gmra.mxu0 %v853
      %v1028 = vpop.f32.mrf.mxu0
      %v1029 = vadd.f32 %v834, %v1028
      %v1030 = vpop.f32.mrf.mxu0
      %1031 = vmatprep.mubr.f32.mxu0 0.0
      %1032 = vmatmul.mubr.f32.gmra.mxu0 %v856
      %v1033 = vpop.f32.mrf.mxu0
      %v1034 = vadd.f32 %v834, %v1033
      %v1035 = vpop.f32.mrf.mxu0
      %1036 = vmatprep.mubr.f32.mxu0 0.0
      %1037 = vmatmul.mubr.f32.gmra.mxu0 %v859
      %v1038 = vpop.f32.mrf.mxu0
      %v1039 = vadd.f32 %v834, %v1038
      %v1040 = vpop.f32.mrf.mxu0
      %1041 = vmatprep.mubr.f32.mxu0 0.0
      %1042 = vmatmul.mubr.f32.gmra.mxu0 %v862
      %v1043 = vpop.f32.mrf.mxu0
      %v1044 = vadd.f32 %v834, %v1043
      %v1045 = vpop.f32.mrf.mxu0
      %1046 = vmatprep.mubr.f32.mxu0 0.0
      %1047 = vmatmul.mubr.f32.gmra.mxu0 %v865
      %v1048 = vpop.f32.mrf.mxu0
      %v1049 = vadd.f32 %v834, %v1048
      %v1050 = vpop.f32.mrf.mxu0
      %1051 = vmatprep.mubr.f32.mxu0 0.0
      %1052 = vmatmul.mubr.f32.gmra.mxu0 %v868
      %v1053 = vpop.f32.mrf.mxu0
      %v1054 = vadd.f32 %v834, %v1053
      %v1055 = vpop.f32.mrf.mxu0
      %1056 = vmatprep.mubr.f32.mxu0 0.0
      %1057 = vmatmul.mubr.f32.gmra.mxu0 %v871
      %v1058 = vpop.f32.mrf.mxu0
      %v1059 = vadd.f32 %v834, %v1058
      %v1060 = vpop.f32.mrf.mxu0
      %1061 = vmatprep.mubr.f32.mxu0 0.0
      %1062 = vmatmul.mubr.f32.gmra.mxu0 %v874
      %v1063 = vpop.f32.mrf.mxu0
      %v1064 = vadd.f32 %v834, %v1063
      %v1065 = vpop.f32.mrf.mxu0
      %1066 = vmatprep.mubr.f32.mxu0 0.0
      %1067 = vmatmul.mubr.f32.gmra.mxu0 %v877
      %v1068 = vpop.f32.mrf.mxu0
      %v1069 = vadd.f32 %v834, %v1068
      %v1070 = vpop.f32.mrf.mxu0
      %1071 = vmatprep.mubr.f32.mxu0 0.0
      %1072 = vmatmul.mubr.f32.gmra.mxu0 %v880
      %v1073 = vpop.f32.mrf.mxu0
      %v1074 = vadd.f32 %v834, %v1073
      %v1075 = vpop.f32.mrf.mxu0
      %1076 = vmatprep.mubr.f32.mxu0 0.0
      %1077 = vmatmul.mubr.f32.gmra.mxu0 %v883
      %v1078 = vpop.f32.mrf.mxu0
      %v1079 = vadd.f32 %v834, %v1078
      %v1080 = vpop.f32.mrf.mxu0
      %1081 = vmatprep.mubr.f32.mxu0 0.0
      %1082 = vmatmul.mubr.f32.gmra.mxu0 %v886
      %v1083 = vpop.f32.mrf.mxu0
      %v1084 = vadd.f32 %v834, %v1083
      %v1085 = vpop.f32.mrf.mxu0
      %1086 = vmatprep.mubr.f32.mxu0 0.0
      %1087 = vmatmul.mubr.f32.gmra.mxu0 %v889
      %v1088 = vpop.f32.mrf.mxu0
      %v1089 = vadd.f32 %v834, %v1088
      %v1090 = vpop.f32.mrf.mxu0
      %1091 = vmatprep.mubr.f32.mxu0 0.0
      %1092 = vmatmul.mubr.f32.gmra.mxu0 %v892
      %v1093 = vpop.f32.mrf.mxu0
      %v1094 = vadd.f32 %v834, %v1093
      %v1095 = vpop.f32.mrf.mxu0
      %1096 = vmatprep.mubr.f32.mxu0 0.0
      %1097 = vmatmul.mubr.f32.gmra.mxu0 %v895
      %v1098 = vpop.f32.mrf.mxu0
      %v1099 = vadd.f32 %v834, %v1098
      %v1100 = vpop.f32.mrf.mxu0
      %1101 = vmatprep.mubr.f32.mxu0 0.0
      %1102 = vmatmul.mubr.f32.gmra.mxu0 %v898
      %v1103 = vpop.f32.mrf.mxu0
      %v1104 = vadd.f32 %v834, %v1103
      %v1105 = vpop.f32.mrf.mxu0
      %1106 = vmatprep.mubr.f32.mxu0 0.0
      %1107 = vmatmul.mubr.f32.gmra.mxu0 %v901
      %v1108 = vpop.f32.mrf.mxu0
      %v1109 = vadd.f32 %v834, %v1108
      %v1110 = vpop.f32.mrf.mxu0
      %1111 = vmatprep.mubr.f32.mxu0 0.0
      %1112 = vmatmul.mubr.f32.gmra.mxu0 %v904
      %v1113 = vpop.f32.mrf.mxu0
      %v1114 = vadd.f32 %v834, %v1113
      %v1115 = vpop.f32.mrf.mxu0
      %1116 = vmatprep.mubr.f32.mxu0 0.0
      %1117 = vmatmul.mubr.f32.gmra.mxu0 %v907
      %v1118 = vpop.f32.mrf.mxu0
      %v1119 = vadd.f32 %v834, %v1118
      %v1120 = vpop.f32.mrf.mxu0
      %1121 = vmatprep.mubr.f32.mxu0 0.0
      %1122 = vmatmul.mubr.f32.gmra.mxu0 %v910
      %v1123 = vpop.f32.mrf.mxu0
      %v1124 = vadd.f32 %v834, %v1123
      %v1125 = vpop.f32.mrf.mxu0
      %1126 = vmatprep.mubr.f32.mxu0 0.0
      %1127 = vmatmul.mubr.f32.gmra.mxu0 %v913
      %v1128 = vpop.f32.mrf.mxu0
      %v1129 = vadd.f32 %v834, %v1128
      %v1130 = vpop.f32.mrf.mxu0
      %1131 = vmatprep.mubr.f32.mxu0 0.0
      %1132 = vmatmul.mubr.f32.gmra.mxu0 %v916
      %v1133 = vpop.f32.mrf.mxu0
      %v1134 = vadd.f32 %v834, %v1133
      %v1135 = vpop.f32.mrf.mxu0
      %1136 = vmatprep.mubr.f32.mxu0 0.0
      %1137 = vmatmul.mubr.f32.gmra.mxu0 %v919
      %v1138 = vpop.f32.mrf.mxu0
      %v1139 = vadd.f32 %v834, %v1138
      %v1140 = vpop.f32.mrf.mxu0
      %1141 = vmatprep.mubr.f32.mxu0 0.0
      %1142 = vmatmul.mubr.f32.gmra.mxu0 %v922
      %v1143 = vpop.f32.mrf.mxu0
      %v1144 = vadd.f32 %v834, %v1143
      %v1145 = vpop.f32.mrf.mxu0
      %1146 = vmatprep.mubr.f32.mxu0 0.0
      %1147 = vmatmul.mubr.f32.gmra.mxu0 %v925
      %v1148 = vpop.f32.mrf.mxu0
      %v1149 = vadd.f32 %v834, %v1148
      %v1150 = vpop.f32.mrf.mxu0
      %1151 = vmatprep.mubr.f32.mxu0 0.0
      %1152 = vmatmul.mubr.f32.gmra.mxu0 %v928
      %v1153 = vpop.f32.mrf.mxu0
      %v1154 = vadd.f32 %v834, %v1153
      %v1155 = vpop.f32.mrf.mxu0
      %1156 = vmatprep.mubr.f32.mxu0 0.0
      %1157 = vmatmul.mubr.f32.gmra.mxu0 %v931
      %v1158 = vpop.f32.mrf.mxu0
      %v1159 = vadd.f32 %v834, %v1158
      %v1160 = vpop.f32.mrf.mxu0
      %1161 = vdwg.mxu0
      %v1162 = vadd.f32 %v764, %v1004
      %v1163 = vadd.f32 %v765, %v1009
      %v1164 = vadd.f32 %v766, %v1014
      %v1165 = vadd.f32 %v767, %v1019
      %v1166 = vadd.f32 %v768, %v1024
      %v1167 = vadd.f32 %v769, %v1029
      %v1168 = vadd.f32 %v770, %v1034
      %v1169 = vadd.f32 %v771, %v1039
      %v1170 = vadd.f32 %v772, %v1044
      %v1171 = vadd.f32 %v773, %v1049
      %v1172 = vadd.f32 %v774, %v1054
      %v1173 = vadd.f32 %v775, %v1059
      %v1174 = vadd.f32 %v776, %v1064
      %v1175 = vadd.f32 %v777, %v1069
      %v1176 = vadd.f32 %v778, %v1074
      %v1177 = vadd.f32 %v779, %v1079
      %v1178 = vadd.f32 %v780, %v1084
      %v1179 = vadd.f32 %v781, %v1089
      %v1180 = vadd.f32 %v782, %v1094
      %v1181 = vadd.f32 %v783, %v1099
      %v1182 = vadd.f32 %v784, %v1104
      %v1183 = vadd.f32 %v785, %v1109
      %v1184 = vadd.f32 %v786, %v1114
      %v1185 = vadd.f32 %v787, %v1119
      %v1186 = vadd.f32 %v788, %v1124
      %v1187 = vadd.f32 %v789, %v1129
      %v1188 = vadd.f32 %v790, %v1134
      %v1189 = vadd.f32 %v791, %v1139
      %v1190 = vadd.f32 %v792, %v1144
      %v1191 = vadd.f32 %v793, %v1149
      %v1192 = vadd.f32 %v794, %v1154
      %v1193 = vadd.f32 %v795, %v1159
      %vm1194 = vcmask 64512
      %1195 = vst.msk [vmem:[%s278] sm:$0xff] %vm1194, %v1162
      %1196 = vst.msk [vmem:[%s278 + $0x8] sm:$0xff] %vm1194, %v1163
      %1197 = vst.msk [vmem:[%s278 + $0x10] sm:$0xff] %vm1194, %v1164
      %1198 = vst.msk [vmem:[%s278 + $0x18] sm:$0xff] %vm1194, %v1165
      %1199 = vst.msk [vmem:[%s278 + $0x20] sm:$0xff] %vm1194, %v1166
      %1200 = vst.msk [vmem:[%s278 + $0x28] sm:$0xff] %vm1194, %v1167
      %1201 = vst.msk [vmem:[%s278 + $0x30] sm:$0xff] %vm1194, %v1168
      %1202 = vst.msk [vmem:[%s278 + $0x38] sm:$0xff] %vm1194, %v1169
      %1203 = vst.msk [vmem:[%s278 + $0x40] sm:$0xff] %vm1194, %v1170
      %1204 = vst.msk [vmem:[%s278 + $0x48] sm:$0xff] %vm1194, %v1171
      %1205 = vst.msk [vmem:[%s278 + $0x50] sm:$0xff] %vm1194, %v1172
      %1206 = vst.msk [vmem:[%s278 + $0x58] sm:$0xff] %vm1194, %v1173
      %1207 = vst.msk [vmem:[%s278 + $0x60] sm:$0xff] %vm1194, %v1174
      %1208 = vst.msk [vmem:[%s278 + $0x68] sm:$0xff] %vm1194, %v1175
      %1209 = vst.msk [vmem:[%s278 + $0x70] sm:$0xff] %vm1194, %v1176
      %1210 = vst.msk [vmem:[%s278 + $0x78] sm:$0xff] %vm1194, %v1177
      %1211 = vst.msk [vmem:[%s278 + $0x80] sm:$0xff] %vm1194, %v1178
      %1212 = vst.msk [vmem:[%s278 + $0x88] sm:$0xff] %vm1194, %v1179
      %1213 = vst.msk [vmem:[%s278 + $0x90] sm:$0xff] %vm1194, %v1180
      %1214 = vst.msk [vmem:[%s278 + $0x98] sm:$0xff] %vm1194, %v1181
      %1215 = vst.msk [vmem:[%s278 + $0xa0] sm:$0xff] %vm1194, %v1182
      %1216 = vst.msk [vmem:[%s278 + $0xa8] sm:$0xff] %vm1194, %v1183
      %1217 = vst.msk [vmem:[%s278 + $0xb0] sm:$0xff] %vm1194, %v1184
      %1218 = vst.msk [vmem:[%s278 + $0xb8] sm:$0xff] %vm1194, %v1185
      %1219 = vst.msk [vmem:[%s278 + $0xc0] sm:$0xff] %vm1194, %v1186
      %1220 = vst.msk [vmem:[%s278 + $0xc8] sm:$0xff] %vm1194, %v1187
      %1221 = vst.msk [vmem:[%s278 + $0xd0] sm:$0xff] %vm1194, %v1188
      %1222 = vst.msk [vmem:[%s278 + $0xd8] sm:$0xff] %vm1194, %v1189
      %1223 = vst.msk [vmem:[%s278 + $0xe0] sm:$0xff] %vm1194, %v1190
      %1224 = vst.msk [vmem:[%s278 + $0xe8] sm:$0xff] %vm1194, %v1191
      %1225 = vst.msk [vmem:[%s278 + $0xf0] sm:$0xff] %vm1194, %v1192
      %1226 = vst.msk [vmem:[%s278 + $0xf8] sm:$0xff] %vm1194, %v1193
      %s1227 = smul.u32 32, %s17
      %p1228 = scmp.lt.s32.totalorder %s1227, 63
      %s1229 = scalar_select %p1228, %s1227, 63
      %s1230 = smul.addr %s1229, 8
      %s1231 = scalar_lea.vmem %s6, %s1230
      // Predicated region
      $region45: #{de_conv_block_3d_pallas.5} parent=43 // pred_check
        %p1232 = pneg %p171
      $region46: #{de_conv_block_3d_pallas.5} parent=43 // pred_check_branch
        %1234 = sbr.rel (%p1232) target = $region48
      $region47: #{de_conv_block_3d_pallas.5} parent=43 // pred_region
        %s1235 = smul.u32 32, %s17
      $region48: #{de_conv_block_3d_pallas.5} parent=43 // pred_fallthru
        _
    $region44: #{de_conv_block_3d_pallas.5} parent=5 // pred_fallthru
      _
    %p1236 = scmp.le.s32.totalorder 2, %s12
    // Predicated region
    $region49: #{de_conv_block_3d_pallas.5} parent=5 // pred_check
      %p1237 = pneg %p1236
    $region50: #{de_conv_block_3d_pallas.5} parent=5 // pred_check_branch
      %1239 = sbr.rel (%p1237) target = $region52
    $region51: #{de_conv_block_3d_pallas.5} parent=5 // pred_region
      %s1240 = ssub.s32 %s12, 2
      // Predicated region
      $region53: #{de_conv_block_3d_pallas.5} parent=51 // pred_check
        %p1241 = pneg %p177
      $region54: #{de_conv_block_3d_pallas.5} parent=51 // pred_check_branch
        %1243 = sbr.rel (%p1241) target = $region56
      $region55: #{de_conv_block_3d_pallas.5} parent=51 // pred_region
        %s1244 = smul.u32 32, %s18
        %p1245 = scmp.lt.s32.totalorder %s1244, 63
        %s1246 = scalar_select %p1245, %s1244, 63
        %s1247 = smul.addr %s1246, 8
        %s1248 = scalar_lea.vmem %s6, %s1247
      $region56: #{de_conv_block_3d_pallas.5} parent=51 // pred_fallthru
        _
    $region52: #{de_conv_block_3d_pallas.5} parent=5 // pred_fallthru
      _
  $region6: #{de_conv_block_3d_pallas.5} parent=0 // loop_footer
    %s16 = sadd.s32 1, %s12
  $region7: #{de_conv_block_3d_pallas.5} parent=0 // loop_footer_branch
    %11 = sbr.rel target = $region3
  $region8: #{de_conv_block_3d_pallas.5} parent=0 // loop_exit
    _

</llo_original>
